<compile_context>
chip_gen: v7x
topology: tpu7x:2x2x1
jax: 0.10.0
libtpu: 0.0.40
codegen_flags: <defaults>
</compile_context>

<pallas_src>
import jax
import jax.numpy as jnp
from jax import lax
from jax.experimental import pallas as pl
from jax.experimental.pallas import tpu as pltpu


def gru_encoder_kernel(emb_ref,                      # [T*Bp, E]   (bf16 or f32)
                       wih_f_ref, wih_b_ref,         # [E, 3H]     (bf16 or f32)
                       bias_f_ref, bias_b_ref,       # [1, 3H] f32 (bih + [bhh_r, bhh_z, 0])
                       whh_f_ref, bhhn_f_ref,        # [H, 3H] f32, [1, H] f32
                       whh_b_ref, bhhn_b_ref,        # [H, 3H] f32, [1, H] f32
                       wfc_f_ref, wfc_b_ref,         # [H, DH] f32 each
                       bfc_ref,                      # [1, DH] f32
                       out_f_ref, out_b_ref,         # [T*Bp, H] f32 outputs (lane-dense slabs)
                       hid_ref,                      # [Bp, DH] f32 output
                       gi_f_ref, gi_b_ref):          # scratch [T*Bp, 3H] f32 each
    H = whh_f_ref.shape[0]
    B = hid_ref.shape[0]               # padded batch (multiple of 8)
    T = gi_f_ref.shape[0] // B         # static at trace time

    # ---- 1) batched input projection per direction (MXU, f32 accumulation) ----
    # r/z halves of b_hh are already folded into bias_*; n-gate bias stays in the loop.
    emb = emb_ref[...]
    gi_f_ref[...] = (jnp.dot(emb, wih_f_ref[...],
                             preferred_element_type=jnp.float32) + bias_f_ref[...])
    gi_b_ref[...] = (jnp.dot(emb, wih_b_ref[...],
                             preferred_element_type=jnp.float32) + bias_b_ref[...])

    # ---- 2) loop-invariant loads / broadcasts hoisted out of the recurrence ----
    whh_f = whh_f_ref[...]
    whh_b = whh_b_ref[...]
    bhhn_f = jnp.broadcast_to(bhhn_f_ref[...], (B, H))    # only the n-gate bias is live
    bhhn_b = jnp.broadcast_to(bhhn_b_ref[...], (B, H))

    def gru_cell(gi, h_prev, whh, bhh_n):
        # PyTorch gate order: r, z, n.  gh has no r/z bias (folded into gi);
        # bhh_n must stay inside r*(...) to match n = tanh(gi_n + r*(h@W_hn + b_hn)).
        gh = jnp.dot(h_prev, whh, preferred_element_type=jnp.float32)
        r = jax.nn.sigmoid(gi[:, 0:H] + gh[:, 0:H])
        z = jax.nn.sigmoid(gi[:, H:2 * H] + gh[:, H:2 * H])
        n = jnp.tanh(gi[:, 2 * H:3 * H] + r * (gh[:, 2 * H:3 * H] + bhh_n))
        return (1.0 - z) * n + z * h_prev

    # ---- 3) fused fwd/bwd recurrence: each iteration advances both directions ----
    def body(i, carry):
        hf, hb = carry
        row_f = pl.multiple_of(i * B, B)
        row_b = pl.multiple_of((T - 1 - i) * B, B)
        gi_f = gi_f_ref[pl.ds(row_f, B), :]          # lane offset 0 (aligned slab)
        gi_b = gi_b_ref[pl.ds(row_b, B), :]          # lane offset 0 (aligned slab)
        hf = gru_cell(gi_f, hf, whh_f, bhhn_f)
        hb = gru_cell(gi_b, hb, whh_b, bhhn_b)
        out_f_ref[pl.ds(row_f, B), :] = hf           # lane-dense store, offset 0
        out_b_ref[pl.ds(row_b, B), :] = hb           # lane-dense store, offset 0
        return (hf, hb)

    h0 = jnp.zeros((B, H), jnp.float32)              # PyTorch default h0 = 0
    unroll = True if T <= 16 else 4                  # partial unroll at realistic T
    hf, hb = lax.fori_loop(0, T, body, (h0, h0), unroll=unroll)

    # ---- 4) hidden = tanh(cat(h_fwd, h_bwd) @ Wfc + bfc), split to avoid a concat ----
    proj = (jnp.dot(hf, wfc_f_ref[...], preferred_element_type=jnp.float32)
            + jnp.dot(hb, wfc_b_ref[...], preferred_element_type=jnp.float32)
            + bfc_ref[...])
    hid_ref[...] = jnp.tanh(proj)


def _padded_bytes(shape, dtype):
    """Bytes of an array after (sublane,128) tile padding of the trailing two dims."""
    itemsize = jnp.dtype(dtype).itemsize
    sublane = max(8, 32 // itemsize)   # 8 for f32, 16 for bf16
    shape = tuple(shape)
    if len(shape) == 1:
        shape = (1,) + shape
    lead = 1
    for d in shape[:-2]:
        lead *= d
    sub = -(-shape[-2] // sublane) * sublane
    lane = -(-shape[-1] // 128) * 128
    return itemsize * lead * sub * lane


def _vmem_cap_bytes():
    """Generation-aware VMEM cap (~80% of physical); safe on v7x's 64 MiB."""
    try:
        info = pltpu.get_tpu_info()
        cap = getattr(info, "vmem_capacity_bytes", None)
        if cap:
            return int(0.8 * cap)
    except Exception:
        pass
    return 48 * 1024 * 1024   # conservative fallback (below v7x physical VMEM)


def encoder_forward(src, params, mxu_bf16=True):
    # TODO(synk): dropout treated as identity (eval mode).
    emb = params["embedding"][src].astype(jnp.float32)   # [T, B, E] (gather glue)
    T, B, E = emb.shape
    H = params["whh_f"].shape[0]
    DH = params["wfc"].shape[1]

    # pad batch to a multiple of 8 (f32 sublane) so vreg rows are used
    Bp = ((B + 7) // 8) * 8
    if Bp != B:
        emb = jnp.pad(emb, ((0, 0), (0, Bp - B), (0, 0)))
    emb2d = emb.reshape(T * Bp, E)                        # free reshape outside the kernel

    # MXU operands may be bf16 (v6e/v7x win); all VPU/EUP work stays f32.
    mxu_dtype = jnp.bfloat16 if mxu_bf16 else jnp.float32
    emb2d = emb2d.astype(mxu_dtype)
    wih_f = params["wih_f"].astype(mxu_dtype)
    wih_b = params["wih_b"].astype(mxu_dtype)

    # fold the r/z halves of b_hh into the batched input-projection bias (f32);
    # the n-gate half must stay on the recurrent path (inside r * (...)).
    zH = jnp.zeros((1, H), jnp.float32)
    bias_f = params["bih_f"] + jnp.concatenate([params["bhh_f"][:, :2 * H], zH], axis=1)
    bias_b = params["bih_b"] + jnp.concatenate([params["bhh_b"][:, :2 * H], zH], axis=1)
    bhhn_f = params["bhh_f"][:, 2 * H:3 * H]
    bhhn_b = params["bhh_b"][:, 2 * H:3 * H]
    wfc_f = params["wfc"][0:H, :]
    wfc_b = params["wfc"][H:2 * H, :]

    # explicit VMEM budget sized to tile-padded residency (+headroom), capped per-generation
    resident = (
        _padded_bytes((T * Bp, E), mxu_dtype)                      # emb2d
        + 2 * _padded_bytes((E, 3 * H), mxu_dtype)                 # wih_f, wih_b
        + 2 * _padded_bytes((1, 3 * H), jnp.float32)               # bias_f, bias_b
        + 2 * _padded_bytes((H, 3 * H), jnp.float32)               # whh_f, whh_b
        + 2 * _padded_bytes((1, H), jnp.float32)                   # bhhn_f, bhhn_b
        + 2 * _padded_bytes((H, DH), jnp.float32)                  # wfc_f, wfc_b
        + _padded_bytes((1, DH), jnp.float32)                      # bfc
        + 2 * _padded_bytes((T * Bp, 3 * H), jnp.float32)          # gi scratches
        + 2 * _padded_bytes((T * Bp, H), jnp.float32)              # out_f, out_b
        + _padded_bytes((Bp, DH), jnp.float32)                     # hidden
    )
    vmem_limit = min(max(2 * resident, 16 * 1024 * 1024), _vmem_cap_bytes())

    out_f, out_b, hid = pl.pallas_call(
        gru_encoder_kernel,
        out_shape=(
            jax.ShapeDtypeStruct((T * Bp, H), jnp.float32),
            jax.ShapeDtypeStruct((T * Bp, H), jnp.float32),
            jax.ShapeDtypeStruct((Bp, DH), jnp.float32),
        ),
        in_specs=[pl.BlockSpec(memory_space=pltpu.MemorySpace.VMEM)] * 12,
        out_specs=(
            pl.BlockSpec(memory_space=pltpu.MemorySpace.VMEM),
            pl.BlockSpec(memory_space=pltpu.MemorySpace.VMEM),
            pl.BlockSpec(memory_space=pltpu.MemorySpace.VMEM),
        ),
        scratch_shapes=[
            pltpu.VMEM((T * Bp, 3 * H), jnp.float32),   # gi_f (lane-aligned slab)
            pltpu.VMEM((T * Bp, 3 * H), jnp.float32),   # gi_b (lane-aligned slab)
        ],
        compiler_params=pltpu.CompilerParams(vmem_limit_bytes=int(vmem_limit)),
    )(emb2d, wih_f, wih_b, bias_f, bias_b,
      params["whh_f"], bhhn_f,
      params["whh_b"], bhhn_b,
      wfc_f, wfc_b, params["bfc"])

    # recombine the two direction slabs in the wrapper (lane-dense stores in-kernel)
    out_f3 = out_f.reshape(T, Bp, H)[:, :B, :]
    out_b3 = out_b.reshape(T, Bp, H)[:, :B, :]
    outputs = jnp.concatenate([out_f3, out_b3], axis=-1)
    hidden = hid[:B, :]
    return outputs, hidden


def ref_encoder(src, params):
    """Pure-JAX reference of the PyTorch forward (eval mode)."""
    emb = params["embedding"][src]  # [T, B, E]
    H = params["whh_f"].shape[0]

    def cell(h, x, wih, whh, bih, bhh):
        gi = x @ wih + bih[0]
        gh = h @ whh + bhh[0]
        r = jax.nn.sigmoid(gi[:, 0:H] + gh[:, 0:H])
        z = jax.nn.sigmoid(gi[:, H:2 * H] + gh[:, H:2 * H])
        n = jnp.tanh(gi[:, 2 * H:] + r * gh[:, 2 * H:])
        return (1.0 - z) * n + z * h

    B = emb.shape[1]
    h = jnp.zeros((B, H), jnp.float32)
    fwd = []
    for t in range(emb.shape[0]):
        h = cell(h, emb[t], params["wih_f"], params["whh_f"],
                 params["bih_f"], params["bhh_f"])
        fwd.append(h)
    h_fwd = h

    h = jnp.zeros((B, H), jnp.float32)
    bwd = [None] * emb.shape[0]
    for t in range(emb.shape[0] - 1, -1, -1):
        h = cell(h, emb[t], params["wih_b"], params["whh_b"],
                 params["bih_b"], params["bhh_b"])
        bwd[t] = h
    h_bwd = h

    outputs = jnp.concatenate(
        [jnp.stack(fwd, axis=0), jnp.stack(bwd, axis=0)], axis=-1)
    hid = jnp.tanh(jnp.concatenate([h_fwd, h_bwd], axis=-1) @ params["wfc"]
                   + params["bfc"][0])
    return outputs, hid


def init_params(key, input_dim, emb_dim, enc_hid_dim, dec_hid_dim):
    keys = jax.random.split(key, 12)
    s = 0.1

    def u(k, shape):
        return jax.random.uniform(k, shape, jnp.float32, -s, s)

    return {
        "embedding": u(keys[0], (input_dim, emb_dim)),
        # forward-direction GRU (stored transposed vs. PyTorch: [in, 3H])
        "wih_f": u(keys[1], (emb_dim, 3 * enc_hid_dim)),
        "whh_f": u(keys[2], (enc_hid_dim, 3 * enc_hid_dim)),
        "bih_f": u(keys[3], (1, 3 * enc_hid_dim)),
        "bhh_f": u(keys[4], (1, 3 * enc_hid_dim)),
        # backward-direction GRU
        "wih_b": u(keys[5], (emb_dim, 3 * enc_hid_dim)),
        "whh_b": u(keys[6], (enc_hid_dim, 3 * enc_hid_dim)),
        "bih_b": u(keys[7], (1, 3 * enc_hid_dim)),
        "bhh_b": u(keys[8], (1, 3 * enc_hid_dim)),
        # fc: Linear(2*enc_hid, dec_hid), stored as [2H, DH]
        "wfc": u(keys[9], (2 * enc_hid_dim, dec_hid_dim)),
        "bfc": u(keys[10], (1, dec_hid_dim)),
    }


if __name__ == "__main__":
    INPUT_DIM = 50   # vocab size
    EMB_DIM = 32
    ENC_HID = 32
    DEC_HID = 32
    T, B = 8, 4      # B < 8 exercises the sublane-padding path

    key = jax.random.PRNGKey(0)
    k_param, k_src = jax.random.split(key)
    params = init_params(k_param, INPUT_DIM, EMB_DIM, ENC_HID, DEC_HID)
    src = jax.random.randint(k_src, (T, B), 0, INPUT_DIM, dtype=jnp.int32)

    ref_out, ref_hid = ref_encoder(src, params)

    # f32 MXU path: tight tolerance
    outputs, hidden = encoder_forward(src, params, mxu_bf16=False)
    outputs = jax.block_until_ready(outputs)
    hidden = jax.block_until_ready(hidden)
    assert outputs.shape == (T, B, 2 * ENC_HID)
    assert hidden.shape == (B, DEC_HID)
    assert jnp.allclose(outputs, ref_out, atol=1e-4, rtol=1e-4)
    assert jnp.allclose(hidden, ref_hid, atol=1e-4, rtol=1e-4)

    # bf16 MXU operands (v6e/v7x fast path): looser tolerance
    outputs_bf, hidden_bf = encoder_forward(src, params, mxu_bf16=True)
    outputs_bf = jax.block_until_ready(outputs_bf)
    hidden_bf = jax.block_until_ready(hidden_bf)
    assert jnp.allclose(outputs_bf, ref_out, atol=1e-2, rtol=1e-2)
    assert jnp.allclose(hidden_bf, ref_hid, atol=1e-2, rtol=1e-2)

    print("KERNEL_OK")
</pallas_src>

<mosaic_0001>
module attributes {stable_mosaic.version = 11 : i64} {
  func.func @gru_encoder_kernel(%arg0: memref<64x32xf32, #tpu.memory_space<vmem>>, %arg1: memref<32x96xf32, #tpu.memory_space<vmem>>, %arg2: memref<32x96xf32, #tpu.memory_space<vmem>>, %arg3: memref<1x96xf32, #tpu.memory_space<vmem>>, %arg4: memref<1x96xf32, #tpu.memory_space<vmem>>, %arg5: memref<32x96xf32, #tpu.memory_space<vmem>>, %arg6: memref<1x32xf32, #tpu.memory_space<vmem>>, %arg7: memref<32x96xf32, #tpu.memory_space<vmem>>, %arg8: memref<1x32xf32, #tpu.memory_space<vmem>>, %arg9: memref<32x32xf32, #tpu.memory_space<vmem>>, %arg10: memref<32x32xf32, #tpu.memory_space<vmem>>, %arg11: memref<1x32xf32, #tpu.memory_space<vmem>>, %arg12: memref<64x32xf32, #tpu.memory_space<vmem>>, %arg13: memref<64x32xf32, #tpu.memory_space<vmem>>, %arg14: memref<8x32xf32, #tpu.memory_space<vmem>>, %arg15: memref<64x96xf32, #tpu.memory_space<vmem>>, %arg16: memref<64x96xf32, #tpu.memory_space<vmem>>) attributes {dimension_semantics = [], scalar_prefetch = 0 : i64, scratch_operands = 2 : i64, tpu.core_type = #tpu.core_type<tc>} {
    %c0 = arith.constant 0 : index
    %c0_0 = arith.constant 0 : index
    %0 = vector.load %arg0[%c0, %c0_0] : memref<64x32xf32, #tpu.memory_space<vmem>>, vector<64x32xf32>
    %c0_1 = arith.constant 0 : index
    %c0_2 = arith.constant 0 : index
    %1 = vector.load %arg1[%c0_1, %c0_2] : memref<32x96xf32, #tpu.memory_space<vmem>>, vector<32x96xf32>
    %cst = arith.constant dense<0.000000e+00> : vector<64x96xf32>
    %2 = tpu.matmul %0, %1, %cst {dimension_numbers = #tpu.dot_dimension_numbers<[1], [0], [0], [1], [0, 0, 1, 1], [], []>} : vector<64x32xf32>, vector<32x96xf32>, vector<64x96xf32> -> vector<64x96xf32>
    %c0_3 = arith.constant 0 : index
    %c0_4 = arith.constant 0 : index
    %3 = vector.load %arg3[%c0_3, %c0_4] : memref<1x96xf32, #tpu.memory_space<vmem>>, vector<1x96xf32>
    %4 = vector.broadcast %3 : vector<1x96xf32> to vector<64x96xf32>
    %5 = arith.addf %2, %4 : vector<64x96xf32>
    %c0_5 = arith.constant 0 : index
    %c0_6 = arith.constant 0 : index
    %6 = vector.load %arg15[%c0_5, %c0_6] : memref<64x96xf32, #tpu.memory_space<vmem>>, vector<64x96xf32>
    tpu.vector_store %arg15[%c0_5, %c0_6], %5 {strides = array<i32>} : memref<64x96xf32, #tpu.memory_space<vmem>>, vector<64x96xf32>,
    %c0_7 = arith.constant 0 : index
    %c0_8 = arith.constant 0 : index
    %7 = vector.load %arg2[%c0_7, %c0_8] : memref<32x96xf32, #tpu.memory_space<vmem>>, vector<32x96xf32>
    %cst_9 = arith.constant dense<0.000000e+00> : vector<64x96xf32>
    %8 = tpu.matmul %0, %7, %cst_9 {dimension_numbers = #tpu.dot_dimension_numbers<[1], [0], [0], [1], [0, 0, 1, 1], [], []>} : vector<64x32xf32>, vector<32x96xf32>, vector<64x96xf32> -> vector<64x96xf32>
    %c0_10 = arith.constant 0 : index
    %c0_11 = arith.constant 0 : index
    %9 = vector.load %arg4[%c0_10, %c0_11] : memref<1x96xf32, #tpu.memory_space<vmem>>, vector<1x96xf32>
    %10 = vector.broadcast %9 : vector<1x96xf32> to vector<64x96xf32>
    %11 = arith.addf %8, %10 : vector<64x96xf32>
    %c0_12 = arith.constant 0 : index
    %c0_13 = arith.constant 0 : index
    %12 = vector.load %arg16[%c0_12, %c0_13] : memref<64x96xf32, #tpu.memory_space<vmem>>, vector<64x96xf32>
    tpu.vector_store %arg16[%c0_12, %c0_13], %11 {strides = array<i32>} : memref<64x96xf32, #tpu.memory_space<vmem>>, vector<64x96xf32>,
    %c0_14 = arith.constant 0 : index
    %c0_15 = arith.constant 0 : index
    %13 = vector.load %arg5[%c0_14, %c0_15] : memref<32x96xf32, #tpu.memory_space<vmem>>, vector<32x96xf32>
    %c0_16 = arith.constant 0 : index
    %c0_17 = arith.constant 0 : index
    %14 = vector.load %arg7[%c0_16, %c0_17] : memref<32x96xf32, #tpu.memory_space<vmem>>, vector<32x96xf32>
    %c0_18 = arith.constant 0 : index
    %c0_19 = arith.constant 0 : index
    %15 = vector.load %arg6[%c0_18, %c0_19] : memref<1x32xf32, #tpu.memory_space<vmem>>, vector<1x32xf32>
    %16 = vector.shape_cast %15 : vector<1x32xf32> to vector<1x32xf32>
    %17 = vector.broadcast %16 : vector<1x32xf32> to vector<8x32xf32>
    %c0_20 = arith.constant 0 : index
    %c0_21 = arith.constant 0 : index
    %18 = vector.load %arg8[%c0_20, %c0_21] : memref<1x32xf32, #tpu.memory_space<vmem>>, vector<1x32xf32>
    %19 = vector.shape_cast %18 : vector<1x32xf32> to vector<1x32xf32>
    %20 = vector.broadcast %19 : vector<1x32xf32> to vector<8x32xf32>
    %cst_22 = arith.constant 0.000000e+00 : f32
    %21 = vector.broadcast %cst_22 : f32 to vector<8x32xf32>
    %c0_i32 = arith.constant 0 : i32
    %c8_i32 = arith.constant 8 : i32
    %22 = arith.muli %c0_i32, %c8_i32 : i32
    %23 = tpu.assume_multiple %22, 8 : i32
    %c7_i32 = arith.constant 7 : i32
    %24 = arith.subi %c7_i32, %c0_i32 : i32
    %c8_i32_23 = arith.constant 8 : i32
    %25 = arith.muli %24, %c8_i32_23 : i32
    %26 = tpu.assume_multiple %25, 8 : i32
    %27 = arith.index_cast %23 : i32 to index
    %c0_24 = arith.constant 0 : index
    %28 = vector.load %arg15[%27, %c0_24] : memref<64x96xf32, #tpu.memory_space<vmem>>, vector<8x96xf32>
    %29 = arith.index_cast %26 : i32 to index
    %c0_25 = arith.constant 0 : index
    %30 = vector.load %arg16[%29, %c0_25] : memref<64x96xf32, #tpu.memory_space<vmem>>, vector<8x96xf32>
    %cst_26 = arith.constant dense<0.000000e+00> : vector<8x96xf32>
    %31 = tpu.matmul %21, %13, %cst_26 {dimension_numbers = #tpu.dot_dimension_numbers<[1], [0], [0], [1], [0, 0, 1, 1], [], []>} : vector<8x32xf32>, vector<32x96xf32>, vector<8x96xf32> -> vector<8x96xf32>
    %32 = vector.extract_strided_slice %28 {offsets = [0, 0], sizes = [8, 32], strides = [1, 1]} : vector<8x96xf32> to vector<8x32xf32>
    %33 = vector.extract_strided_slice %31 {offsets = [0, 0], sizes = [8, 32], strides = [1, 1]} : vector<8x96xf32> to vector<8x32xf32>
    %34 = arith.addf %32, %33 : vector<8x32xf32>
    %35 = arith.negf %34 : vector<8x32xf32>
    %36 = math.exp %35 : vector<8x32xf32>
    %cst_27 = arith.constant 1.000000e+00 : f32
    %37 = vector.broadcast %cst_27 : f32 to vector<8x32xf32>
    %38 = arith.addf %37, %36 : vector<8x32xf32>
    %39 = arith.divf %37, %38 : vector<8x32xf32>
    %40 = vector.extract_strided_slice %28 {offsets = [0, 32], sizes = [8, 32], strides = [1, 1]} : vector<8x96xf32> to vector<8x32xf32>
    %41 = vector.extract_strided_slice %31 {offsets = [0, 32], sizes = [8, 32], strides = [1, 1]} : vector<8x96xf32> to vector<8x32xf32>
    %42 = arith.addf %40, %41 : vector<8x32xf32>
    %43 = arith.negf %42 : vector<8x32xf32>
    %44 = math.exp %43 : vector<8x32xf32>
    %cst_28 = arith.constant 1.000000e+00 : f32
    %45 = vector.broadcast %cst_28 : f32 to vector<8x32xf32>
    %46 = arith.addf %45, %44 : vector<8x32xf32>
    %47 = arith.divf %45, %46 : vector<8x32xf32>
    %48 = vector.extract_strided_slice %28 {offsets = [0, 64], sizes = [8, 32], strides = [1, 1]} : vector<8x96xf32> to vector<8x32xf32>
    %49 = vector.extract_strided_slice %31 {offsets = [0, 64], sizes = [8, 32], strides = [1, 1]} : vector<8x96xf32> to vector<8x32xf32>
    %50 = arith.addf %49, %17 : vector<8x32xf32>
    %51 = arith.mulf %39, %50 : vector<8x32xf32>
    %52 = arith.addf %48, %51 : vector<8x32xf32>
    %53 = math.tanh %52 : vector<8x32xf32>
    %cst_29 = arith.constant 1.000000e+00 : f32
    %54 = vector.broadcast %cst_29 : f32 to vector<8x32xf32>
    %55 = arith.subf %54, %47 : vector<8x32xf32>
    %56 = arith.mulf %55, %53 : vector<8x32xf32>
    %57 = arith.mulf %47, %21 : vector<8x32xf32>
    %58 = arith.addf %56, %57 : vector<8x32xf32>
    %cst_30 = arith.constant dense<0.000000e+00> : vector<8x96xf32>
    %59 = tpu.matmul %21, %14, %cst_30 {dimension_numbers = #tpu.dot_dimension_numbers<[1], [0], [0], [1], [0, 0, 1, 1], [], []>} : vector<8x32xf32>, vector<32x96xf32>, vector<8x96xf32> -> vector<8x96xf32>
    %60 = vector.extract_strided_slice %30 {offsets = [0, 0], sizes = [8, 32], strides = [1, 1]} : vector<8x96xf32> to vector<8x32xf32>
    %61 = vector.extract_strided_slice %59 {offsets = [0, 0], sizes = [8, 32], strides = [1, 1]} : vector<8x96xf32> to vector<8x32xf32>
    %62 = arith.addf %60, %61 : vector<8x32xf32>
    %63 = arith.negf %62 : vector<8x32xf32>
    %64 = math.exp %63 : vector<8x32xf32>
    %cst_31 = arith.constant 1.000000e+00 : f32
    %65 = vector.broadcast %cst_31 : f32 to vector<8x32xf32>
    %66 = arith.addf %65, %64 : vector<8x32xf32>
    %67 = arith.divf %65, %66 : vector<8x32xf32>
    %68 = vector.extract_strided_slice %30 {offsets = [0, 32], sizes = [8, 32], strides = [1, 1]} : vector<8x96xf32> to vector<8x32xf32>
    %69 = vector.extract_strided_slice %59 {offsets = [0, 32], sizes = [8, 32], strides = [1, 1]} : vector<8x96xf32> to vector<8x32xf32>
    %70 = arith.addf %68, %69 : vector<8x32xf32>
    %71 = arith.negf %70 : vector<8x32xf32>
    %72 = math.exp %71 : vector<8x32xf32>
    %cst_32 = arith.constant 1.000000e+00 : f32
    %73 = vector.broadcast %cst_32 : f32 to vector<8x32xf32>
    %74 = arith.addf %73, %72 : vector<8x32xf32>
    %75 = arith.divf %73, %74 : vector<8x32xf32>
    %76 = vector.extract_strided_slice %30 {offsets = [0, 64], sizes = [8, 32], strides = [1, 1]} : vector<8x96xf32> to vector<8x32xf32>
    %77 = vector.extract_strided_slice %59 {offsets = [0, 64], sizes = [8, 32], strides = [1, 1]} : vector<8x96xf32> to vector<8x32xf32>
    %78 = arith.addf %77, %20 : vector<8x32xf32>
    %79 = arith.mulf %67, %78 : vector<8x32xf32>
    %80 = arith.addf %76, %79 : vector<8x32xf32>
    %81 = math.tanh %80 : vector<8x32xf32>
    %cst_33 = arith.constant 1.000000e+00 : f32
    %82 = vector.broadcast %cst_33 : f32 to vector<8x32xf32>
    %83 = arith.subf %82, %75 : vector<8x32xf32>
    %84 = arith.mulf %83, %81 : vector<8x32xf32>
    %85 = arith.mulf %75, %21 : vector<8x32xf32>
    %86 = arith.addf %84, %85 : vector<8x32xf32>
    %87 = arith.index_cast %23 : i32 to index
    %c0_34 = arith.constant 0 : index
    %88 = vector.load %arg12[%87, %c0_34] : memref<64x32xf32, #tpu.memory_space<vmem>>, vector<8x32xf32>
    tpu.vector_store %arg12[%87, %c0_34], %58 {strides = array<i32>} : memref<64x32xf32, #tpu.memory_space<vmem>>, vector<8x32xf32>,
    %89 = arith.index_cast %26 : i32 to index
    %c0_35 = arith.constant 0 : index
    %90 = vector.load %arg13[%89, %c0_35] : memref<64x32xf32, #tpu.memory_space<vmem>>, vector<8x32xf32>
    tpu.vector_store %arg13[%89, %c0_35], %86 {strides = array<i32>} : memref<64x32xf32, #tpu.memory_space<vmem>>, vector<8x32xf32>,
    %c1_i32 = arith.constant 1 : i32
    %c8_i32_36 = arith.constant 8 : i32
    %91 = arith.muli %c1_i32, %c8_i32_36 : i32
    %92 = tpu.assume_multiple %91, 8 : i32
    %c7_i32_37 = arith.constant 7 : i32
    %93 = arith.subi %c7_i32_37, %c1_i32 : i32
    %c8_i32_38 = arith.constant 8 : i32
    %94 = arith.muli %93, %c8_i32_38 : i32
    %95 = tpu.assume_multiple %94, 8 : i32
    %96 = arith.index_cast %92 : i32 to index
    %c0_39 = arith.constant 0 : index
    %97 = vector.load %arg15[%96, %c0_39] : memref<64x96xf32, #tpu.memory_space<vmem>>, vector<8x96xf32>
    %98 = arith.index_cast %95 : i32 to index
    %c0_40 = arith.constant 0 : index
    %99 = vector.load %arg16[%98, %c0_40] : memref<64x96xf32, #tpu.memory_space<vmem>>, vector<8x96xf32>
    %cst_41 = arith.constant dense<0.000000e+00> : vector<8x96xf32>
    %100 = tpu.matmul %58, %13, %cst_41 {dimension_numbers = #tpu.dot_dimension_numbers<[1], [0], [0], [1], [0, 0, 1, 1], [], []>} : vector<8x32xf32>, vector<32x96xf32>, vector<8x96xf32> -> vector<8x96xf32>
    %101 = vector.extract_strided_slice %97 {offsets = [0, 0], sizes = [8, 32], strides = [1, 1]} : vector<8x96xf32> to vector<8x32xf32>
    %102 = vector.extract_strided_slice %100 {offsets = [0, 0], sizes = [8, 32], strides = [1, 1]} : vector<8x96xf32> to vector<8x32xf32>
    %103 = arith.addf %101, %102 : vector<8x32xf32>
    %104 = arith.negf %103 : vector<8x32xf32>
    %105 = math.exp %104 : vector<8x32xf32>
    %cst_42 = arith.constant 1.000000e+00 : f32
    %106 = vector.broadcast %cst_42 : f32 to vector<8x32xf32>
    %107 = arith.addf %106, %105 : vector<8x32xf32>
    %108 = arith.divf %106, %107 : vector<8x32xf32>
    %109 = vector.extract_strided_slice %97 {offsets = [0, 32], sizes = [8, 32], strides = [1, 1]} : vector<8x96xf32> to vector<8x32xf32>
    %110 = vector.extract_strided_slice %100 {offsets = [0, 32], sizes = [8, 32], strides = [1, 1]} : vector<8x96xf32> to vector<8x32xf32>
    %111 = arith.addf %109, %110 : vector<8x32xf32>
    %112 = arith.negf %111 : vector<8x32xf32>
    %113 = math.exp %112 : vector<8x32xf32>
    %cst_43 = arith.constant 1.000000e+00 : f32
    %114 = vector.broadcast %cst_43 : f32 to vector<8x32xf32>
    %115 = arith.addf %114, %113 : vector<8x32xf32>
    %116 = arith.divf %114, %115 : vector<8x32xf32>
    %117 = vector.extract_strided_slice %97 {offsets = [0, 64], sizes = [8, 32], strides = [1, 1]} : vector<8x96xf32> to vector<8x32xf32>
    %118 = vector.extract_strided_slice %100 {offsets = [0, 64], sizes = [8, 32], strides = [1, 1]} : vector<8x96xf32> to vector<8x32xf32>
    %119 = arith.addf %118, %17 : vector<8x32xf32>
    %120 = arith.mulf %108, %119 : vector<8x32xf32>
    %121 = arith.addf %117, %120 : vector<8x32xf32>
    %122 = math.tanh %121 : vector<8x32xf32>
    %cst_44 = arith.constant 1.000000e+00 : f32
    %123 = vector.broadcast %cst_44 : f32 to vector<8x32xf32>
    %124 = arith.subf %123, %116 : vector<8x32xf32>
    %125 = arith.mulf %124, %122 : vector<8x32xf32>
    %126 = arith.mulf %116, %58 : vector<8x32xf32>
    %127 = arith.addf %125, %126 : vector<8x32xf32>
    %cst_45 = arith.constant dense<0.000000e+00> : vector<8x96xf32>
    %128 = tpu.matmul %86, %14, %cst_45 {dimension_numbers = #tpu.dot_dimension_numbers<[1], [0], [0], [1], [0, 0, 1, 1], [], []>} : vector<8x32xf32>, vector<32x96xf32>, vector<8x96xf32> -> vector<8x96xf32>
    %129 = vector.extract_strided_slice %99 {offsets = [0, 0], sizes = [8, 32], strides = [1, 1]} : vector<8x96xf32> to vector<8x32xf32>
    %130 = vector.extract_strided_slice %128 {offsets = [0, 0], sizes = [8, 32], strides = [1, 1]} : vector<8x96xf32> to vector<8x32xf32>
    %131 = arith.addf %129, %130 : vector<8x32xf32>
    %132 = arith.negf %131 : vector<8x32xf32>
    %133 = math.exp %132 : vector<8x32xf32>
    %cst_46 = arith.constant 1.000000e+00 : f32
    %134 = vector.broadcast %cst_46 : f32 to vector<8x32xf32>
    %135 = arith.addf %134, %133 : vector<8x32xf32>
    %136 = arith.divf %134, %135 : vector<8x32xf32>
    %137 = vector.extract_strided_slice %99 {offsets = [0, 32], sizes = [8, 32], strides = [1, 1]} : vector<8x96xf32> to vector<8x32xf32>
    %138 = vector.extract_strided_slice %128 {offsets = [0, 32], sizes = [8, 32], strides = [1, 1]} : vector<8x96xf32> to vector<8x32xf32>
    %139 = arith.addf %137, %138 : vector<8x32xf32>
    %140 = arith.negf %139 : vector<8x32xf32>
    %141 = math.exp %140 : vector<8x32xf32>
    %cst_47 = arith.constant 1.000000e+00 : f32
    %142 = vector.broadcast %cst_47 : f32 to vector<8x32xf32>
    %143 = arith.addf %142, %141 : vector<8x32xf32>
    %144 = arith.divf %142, %143 : vector<8x32xf32>
    %145 = vector.extract_strided_slice %99 {offsets = [0, 64], sizes = [8, 32], strides = [1, 1]} : vector<8x96xf32> to vector<8x32xf32>
    %146 = vector.extract_strided_slice %128 {offsets = [0, 64], sizes = [8, 32], strides = [1, 1]} : vector<8x96xf32> to vector<8x32xf32>
    %147 = arith.addf %146, %20 : vector<8x32xf32>
    %148 = arith.mulf %136, %147 : vector<8x32xf32>
    %149 = arith.addf %145, %148 : vector<8x32xf32>
    %150 = math.tanh %149 : vector<8x32xf32>
    %cst_48 = arith.constant 1.000000e+00 : f32
    %151 = vector.broadcast %cst_48 : f32 to vector<8x32xf32>
    %152 = arith.subf %151, %144 : vector<8x32xf32>
    %153 = arith.mulf %152, %150 : vector<8x32xf32>
    %154 = arith.mulf %144, %86 : vector<8x32xf32>
    %155 = arith.addf %153, %154 : vector<8x32xf32>
    %156 = arith.index_cast %92 : i32 to index
    %c0_49 = arith.constant 0 : index
    %157 = vector.load %arg12[%156, %c0_49] : memref<64x32xf32, #tpu.memory_space<vmem>>, vector<8x32xf32>
    tpu.vector_store %arg12[%156, %c0_49], %127 {strides = array<i32>} : memref<64x32xf32, #tpu.memory_space<vmem>>, vector<8x32xf32>,
    %158 = arith.index_cast %95 : i32 to index
    %c0_50 = arith.constant 0 : index
    %159 = vector.load %arg13[%158, %c0_50] : memref<64x32xf32, #tpu.memory_space<vmem>>, vector<8x32xf32>
    tpu.vector_store %arg13[%158, %c0_50], %155 {strides = array<i32>} : memref<64x32xf32, #tpu.memory_space<vmem>>, vector<8x32xf32>,
    %c2_i32 = arith.constant 2 : i32
    %c8_i32_51 = arith.constant 8 : i32
    %160 = arith.muli %c2_i32, %c8_i32_51 : i32
    %161 = tpu.assume_multiple %160, 8 : i32
    %c7_i32_52 = arith.constant 7 : i32
    %162 = arith.subi %c7_i32_52, %c2_i32 : i32
    %c8_i32_53 = arith.constant 8 : i32
    %163 = arith.muli %162, %c8_i32_53 : i32
    %164 = tpu.assume_multiple %163, 8 : i32
    %165 = arith.index_cast %161 : i32 to index
    %c0_54 = arith.constant 0 : index
    %166 = vector.load %arg15[%165, %c0_54] : memref<64x96xf32, #tpu.memory_space<vmem>>, vector<8x96xf32>
    %167 = arith.index_cast %164 : i32 to index
    %c0_55 = arith.constant 0 : index
    %168 = vector.load %arg16[%167, %c0_55] : memref<64x96xf32, #tpu.memory_space<vmem>>, vector<8x96xf32>
    %cst_56 = arith.constant dense<0.000000e+00> : vector<8x96xf32>
    %169 = tpu.matmul %127, %13, %cst_56 {dimension_numbers = #tpu.dot_dimension_numbers<[1], [0], [0], [1], [0, 0, 1, 1], [], []>} : vector<8x32xf32>, vector<32x96xf32>, vector<8x96xf32> -> vector<8x96xf32>
    %170 = vector.extract_strided_slice %166 {offsets = [0, 0], sizes = [8, 32], strides = [1, 1]} : vector<8x96xf32> to vector<8x32xf32>
    %171 = vector.extract_strided_slice %169 {offsets = [0, 0], sizes = [8, 32], strides = [1, 1]} : vector<8x96xf32> to vector<8x32xf32>
    %172 = arith.addf %170, %171 : vector<8x32xf32>
    %173 = arith.negf %172 : vector<8x32xf32>
    %174 = math.exp %173 : vector<8x32xf32>
    %cst_57 = arith.constant 1.000000e+00 : f32
    %175 = vector.broadcast %cst_57 : f32 to vector<8x32xf32>
    %176 = arith.addf %175, %174 : vector<8x32xf32>
    %177 = arith.divf %175, %176 : vector<8x32xf32>
    %178 = vector.extract_strided_slice %166 {offsets = [0, 32], sizes = [8, 32], strides = [1, 1]} : vector<8x96xf32> to vector<8x32xf32>
    %179 = vector.extract_strided_slice %169 {offsets = [0, 32], sizes = [8, 32], strides = [1, 1]} : vector<8x96xf32> to vector<8x32xf32>
    %180 = arith.addf %178, %179 : vector<8x32xf32>
    %181 = arith.negf %180 : vector<8x32xf32>
    %182 = math.exp %181 : vector<8x32xf32>
    %cst_58 = arith.constant 1.000000e+00 : f32
    %183 = vector.broadcast %cst_58 : f32 to vector<8x32xf32>
    %184 = arith.addf %183, %182 : vector<8x32xf32>
    %185 = arith.divf %183, %184 : vector<8x32xf32>
    %186 = vector.extract_strided_slice %166 {offsets = [0, 64], sizes = [8, 32], strides = [1, 1]} : vector<8x96xf32> to vector<8x32xf32>
    %187 = vector.extract_strided_slice %169 {offsets = [0, 64], sizes = [8, 32], strides = [1, 1]} : vector<8x96xf32> to vector<8x32xf32>
    %188 = arith.addf %187, %17 : vector<8x32xf32>
    %189 = arith.mulf %177, %188 : vector<8x32xf32>
    %190 = arith.addf %186, %189 : vector<8x32xf32>
    %191 = math.tanh %190 : vector<8x32xf32>
    %cst_59 = arith.constant 1.000000e+00 : f32
    %192 = vector.broadcast %cst_59 : f32 to vector<8x32xf32>
    %193 = arith.subf %192, %185 : vector<8x32xf32>
    %194 = arith.mulf %193, %191 : vector<8x32xf32>
    %195 = arith.mulf %185, %127 : vector<8x32xf32>
    %196 = arith.addf %194, %195 : vector<8x32xf32>
    %cst_60 = arith.constant dense<0.000000e+00> : vector<8x96xf32>
    %197 = tpu.matmul %155, %14, %cst_60 {dimension_numbers = #tpu.dot_dimension_numbers<[1], [0], [0], [1], [0, 0, 1, 1], [], []>} : vector<8x32xf32>, vector<32x96xf32>, vector<8x96xf32> -> vector<8x96xf32>
    %198 = vector.extract_strided_slice %168 {offsets = [0, 0], sizes = [8, 32], strides = [1, 1]} : vector<8x96xf32> to vector<8x32xf32>
    %199 = vector.extract_strided_slice %197 {offsets = [0, 0], sizes = [8, 32], strides = [1, 1]} : vector<8x96xf32> to vector<8x32xf32>
    %200 = arith.addf %198, %199 : vector<8x32xf32>
    %201 = arith.negf %200 : vector<8x32xf32>
    %202 = math.exp %201 : vector<8x32xf32>
    %cst_61 = arith.constant 1.000000e+00 : f32
    %203 = vector.broadcast %cst_61 : f32 to vector<8x32xf32>
    %204 = arith.addf %203, %202 : vector<8x32xf32>
    %205 = arith.divf %203, %204 : vector<8x32xf32>
    %206 = vector.extract_strided_slice %168 {offsets = [0, 32], sizes = [8, 32], strides = [1, 1]} : vector<8x96xf32> to vector<8x32xf32>
    %207 = vector.extract_strided_slice %197 {offsets = [0, 32], sizes = [8, 32], strides = [1, 1]} : vector<8x96xf32> to vector<8x32xf32>
    %208 = arith.addf %206, %207 : vector<8x32xf32>
    %209 = arith.negf %208 : vector<8x32xf32>
    %210 = math.exp %209 : vector<8x32xf32>
    %cst_62 = arith.constant 1.000000e+00 : f32
    %211 = vector.broadcast %cst_62 : f32 to vector<8x32xf32>
    %212 = arith.addf %211, %210 : vector<8x32xf32>
    %213 = arith.divf %211, %212 : vector<8x32xf32>
    %214 = vector.extract_strided_slice %168 {offsets = [0, 64], sizes = [8, 32], strides = [1, 1]} : vector<8x96xf32> to vector<8x32xf32>
    %215 = vector.extract_strided_slice %197 {offsets = [0, 64], sizes = [8, 32], strides = [1, 1]} : vector<8x96xf32> to vector<8x32xf32>
    %216 = arith.addf %215, %20 : vector<8x32xf32>
    %217 = arith.mulf %205, %216 : vector<8x32xf32>
    %218 = arith.addf %214, %217 : vector<8x32xf32>
    %219 = math.tanh %218 : vector<8x32xf32>
    %cst_63 = arith.constant 1.000000e+00 : f32
    %220 = vector.broadcast %cst_63 : f32 to vector<8x32xf32>
    %221 = arith.subf %220, %213 : vector<8x32xf32>
    %222 = arith.mulf %221, %219 : vector<8x32xf32>
    %223 = arith.mulf %213, %155 : vector<8x32xf32>
    %224 = arith.addf %222, %223 : vector<8x32xf32>
    %225 = arith.index_cast %161 : i32 to index
    %c0_64 = arith.constant 0 : index
    %226 = vector.load %arg12[%225, %c0_64] : memref<64x32xf32, #tpu.memory_space<vmem>>, vector<8x32xf32>
    tpu.vector_store %arg12[%225, %c0_64], %196 {strides = array<i32>} : memref<64x32xf32, #tpu.memory_space<vmem>>, vector<8x32xf32>,
    %227 = arith.index_cast %164 : i32 to index
    %c0_65 = arith.constant 0 : index
    %228 = vector.load %arg13[%227, %c0_65] : memref<64x32xf32, #tpu.memory_space<vmem>>, vector<8x32xf32>
    tpu.vector_store %arg13[%227, %c0_65], %224 {strides = array<i32>} : memref<64x32xf32, #tpu.memory_space<vmem>>, vector<8x32xf32>,
    %c3_i32 = arith.constant 3 : i32
    %c8_i32_66 = arith.constant 8 : i32
    %229 = arith.muli %c3_i32, %c8_i32_66 : i32
    %230 = tpu.assume_multiple %229, 8 : i32
    %c7_i32_67 = arith.constant 7 : i32
    %231 = arith.subi %c7_i32_67, %c3_i32 : i32
    %c8_i32_68 = arith.constant 8 : i32
    %232 = arith.muli %231, %c8_i32_68 : i32
    %233 = tpu.assume_multiple %232, 8 : i32
    %234 = arith.index_cast %230 : i32 to index
    %c0_69 = arith.constant 0 : index
    %235 = vector.load %arg15[%234, %c0_69] : memref<64x96xf32, #tpu.memory_space<vmem>>, vector<8x96xf32>
    %236 = arith.index_cast %233 : i32 to index
    %c0_70 = arith.constant 0 : index
    %237 = vector.load %arg16[%236, %c0_70] : memref<64x96xf32, #tpu.memory_space<vmem>>, vector<8x96xf32>
    %cst_71 = arith.constant dense<0.000000e+00> : vector<8x96xf32>
    %238 = tpu.matmul %196, %13, %cst_71 {dimension_numbers = #tpu.dot_dimension_numbers<[1], [0], [0], [1], [0, 0, 1, 1], [], []>} : vector<8x32xf32>, vector<32x96xf32>, vector<8x96xf32> -> vector<8x96xf32>
    %239 = vector.extract_strided_slice %235 {offsets = [0, 0], sizes = [8, 32], strides = [1, 1]} : vector<8x96xf32> to vector<8x32xf32>
    %240 = vector.extract_strided_slice %238 {offsets = [0, 0], sizes = [8, 32], strides = [1, 1]} : vector<8x96xf32> to vector<8x32xf32>
    %241 = arith.addf %239, %240 : vector<8x32xf32>
    %242 = arith.negf %241 : vector<8x32xf32>
    %243 = math.exp %242 : vector<8x32xf32>
    %cst_72 = arith.constant 1.000000e+00 : f32
    %244 = vector.broadcast %cst_72 : f32 to vector<8x32xf32>
    %245 = arith.addf %244, %243 : vector<8x32xf32>
    %246 = arith.divf %244, %245 : vector<8x32xf32>
    %247 = vector.extract_strided_slice %235 {offsets = [0, 32], sizes = [8, 32], strides = [1, 1]} : vector<8x96xf32> to vector<8x32xf32>
    %248 = vector.extract_strided_slice %238 {offsets = [0, 32], sizes = [8, 32], strides = [1, 1]} : vector<8x96xf32> to vector<8x32xf32>
    %249 = arith.addf %247, %248 : vector<8x32xf32>
    %250 = arith.negf %249 : vector<8x32xf32>
    %251 = math.exp %250 : vector<8x32xf32>
    %cst_73 = arith.constant 1.000000e+00 : f32
    %252 = vector.broadcast %cst_73 : f32 to vector<8x32xf32>
    %253 = arith.addf %252, %251 : vector<8x32xf32>
    %254 = arith.divf %252, %253 : vector<8x32xf32>
    %255 = vector.extract_strided_slice %235 {offsets = [0, 64], sizes = [8, 32], strides = [1, 1]} : vector<8x96xf32> to vector<8x32xf32>
    %256 = vector.extract_strided_slice %238 {offsets = [0, 64], sizes = [8, 32], strides = [1, 1]} : vector<8x96xf32> to vector<8x32xf32>
    %257 = arith.addf %256, %17 : vector<8x32xf32>
    %258 = arith.mulf %246, %257 : vector<8x32xf32>
    %259 = arith.addf %255, %258 : vector<8x32xf32>
    %260 = math.tanh %259 : vector<8x32xf32>
    %cst_74 = arith.constant 1.000000e+00 : f32
    %261 = vector.broadcast %cst_74 : f32 to vector<8x32xf32>
    %262 = arith.subf %261, %254 : vector<8x32xf32>
    %263 = arith.mulf %262, %260 : vector<8x32xf32>
    %264 = arith.mulf %254, %196 : vector<8x32xf32>
    %265 = arith.addf %263, %264 : vector<8x32xf32>
    %cst_75 = arith.constant dense<0.000000e+00> : vector<8x96xf32>
    %266 = tpu.matmul %224, %14, %cst_75 {dimension_numbers = #tpu.dot_dimension_numbers<[1], [0], [0], [1], [0, 0, 1, 1], [], []>} : vector<8x32xf32>, vector<32x96xf32>, vector<8x96xf32> -> vector<8x96xf32>
    %267 = vector.extract_strided_slice %237 {offsets = [0, 0], sizes = [8, 32], strides = [1, 1]} : vector<8x96xf32> to vector<8x32xf32>
    %268 = vector.extract_strided_slice %266 {offsets = [0, 0], sizes = [8, 32], strides = [1, 1]} : vector<8x96xf32> to vector<8x32xf32>
    %269 = arith.addf %267, %268 : vector<8x32xf32>
    %270 = arith.negf %269 : vector<8x32xf32>
    %271 = math.exp %270 : vector<8x32xf32>
    %cst_76 = arith.constant 1.000000e+00 : f32
    %272 = vector.broadcast %cst_76 : f32 to vector<8x32xf32>
    %273 = arith.addf %272, %271 : vector<8x32xf32>
    %274 = arith.divf %272, %273 : vector<8x32xf32>
    %275 = vector.extract_strided_slice %237 {offsets = [0, 32], sizes = [8, 32], strides = [1, 1]} : vector<8x96xf32> to vector<8x32xf32>
    %276 = vector.extract_strided_slice %266 {offsets = [0, 32], sizes = [8, 32], strides = [1, 1]} : vector<8x96xf32> to vector<8x32xf32>
    %277 = arith.addf %275, %276 : vector<8x32xf32>
    %278 = arith.negf %277 : vector<8x32xf32>
    %279 = math.exp %278 : vector<8x32xf32>
    %cst_77 = arith.constant 1.000000e+00 : f32
    %280 = vector.broadcast %cst_77 : f32 to vector<8x32xf32>
    %281 = arith.addf %280, %279 : vector<8x32xf32>
    %282 = arith.divf %280, %281 : vector<8x32xf32>
    %283 = vector.extract_strided_slice %237 {offsets = [0, 64], sizes = [8, 32], strides = [1, 1]} : vector<8x96xf32> to vector<8x32xf32>
    %284 = vector.extract_strided_slice %266 {offsets = [0, 64], sizes = [8, 32], strides = [1, 1]} : vector<8x96xf32> to vector<8x32xf32>
    %285 = arith.addf %284, %20 : vector<8x32xf32>
    %286 = arith.mulf %274, %285 : vector<8x32xf32>
    %287 = arith.addf %283, %286 : vector<8x32xf32>
    %288 = math.tanh %287 : vector<8x32xf32>
    %cst_78 = arith.constant 1.000000e+00 : f32
    %289 = vector.broadcast %cst_78 : f32 to vector<8x32xf32>
    %290 = arith.subf %289, %282 : vector<8x32xf32>
    %291 = arith.mulf %290, %288 : vector<8x32xf32>
    %292 = arith.mulf %282, %224 : vector<8x32xf32>
    %293 = arith.addf %291, %292 : vector<8x32xf32>
    %294 = arith.index_cast %230 : i32 to index
    %c0_79 = arith.constant 0 : index
    %295 = vector.load %arg12[%294, %c0_79] : memref<64x32xf32, #tpu.memory_space<vmem>>, vector<8x32xf32>
    tpu.vector_store %arg12[%294, %c0_79], %265 {strides = array<i32>} : memref<64x32xf32, #tpu.memory_space<vmem>>, vector<8x32xf32>,
    %296 = arith.index_cast %233 : i32 to index
    %c0_80 = arith.constant 0 : index
    %297 = vector.load %arg13[%296, %c0_80] : memref<64x32xf32, #tpu.memory_space<vmem>>, vector<8x32xf32>
    tpu.vector_store %arg13[%296, %c0_80], %293 {strides = array<i32>} : memref<64x32xf32, #tpu.memory_space<vmem>>, vector<8x32xf32>,
    %c4_i32 = arith.constant 4 : i32
    %c8_i32_81 = arith.constant 8 : i32
    %298 = arith.muli %c4_i32, %c8_i32_81 : i32
    %299 = tpu.assume_multiple %298, 8 : i32
    %c7_i32_82 = arith.constant 7 : i32
    %300 = arith.subi %c7_i32_82, %c4_i32 : i32
    %c8_i32_83 = arith.constant 8 : i32
    %301 = arith.muli %300, %c8_i32_83 : i32
    %302 = tpu.assume_multiple %301, 8 : i32
    %303 = arith.index_cast %299 : i32 to index
    %c0_84 = arith.constant 0 : index
    %304 = vector.load %arg15[%303, %c0_84] : memref<64x96xf32, #tpu.memory_space<vmem>>, vector<8x96xf32>
    %305 = arith.index_cast %302 : i32 to index
    %c0_85 = arith.constant 0 : index
    %306 = vector.load %arg16[%305, %c0_85] : memref<64x96xf32, #tpu.memory_space<vmem>>, vector<8x96xf32>
    %cst_86 = arith.constant dense<0.000000e+00> : vector<8x96xf32>
    %307 = tpu.matmul %265, %13, %cst_86 {dimension_numbers = #tpu.dot_dimension_numbers<[1], [0], [0], [1], [0, 0, 1, 1], [], []>} : vector<8x32xf32>, vector<32x96xf32>, vector<8x96xf32> -> vector<8x96xf32>
    %308 = vector.extract_strided_slice %304 {offsets = [0, 0], sizes = [8, 32], strides = [1, 1]} : vector<8x96xf32> to vector<8x32xf32>
    %309 = vector.extract_strided_slice %307 {offsets = [0, 0], sizes = [8, 32], strides = [1, 1]} : vector<8x96xf32> to vector<8x32xf32>
    %310 = arith.addf %308, %309 : vector<8x32xf32>
    %311 = arith.negf %310 : vector<8x32xf32>
    %312 = math.exp %311 : vector<8x32xf32>
    %cst_87 = arith.constant 1.000000e+00 : f32
    %313 = vector.broadcast %cst_87 : f32 to vector<8x32xf32>
    %314 = arith.addf %313, %312 : vector<8x32xf32>
    %315 = arith.divf %313, %314 : vector<8x32xf32>
    %316 = vector.extract_strided_slice %304 {offsets = [0, 32], sizes = [8, 32], strides = [1, 1]} : vector<8x96xf32> to vector<8x32xf32>
    %317 = vector.extract_strided_slice %307 {offsets = [0, 32], sizes = [8, 32], strides = [1, 1]} : vector<8x96xf32> to vector<8x32xf32>
    %318 = arith.addf %316, %317 : vector<8x32xf32>
    %319 = arith.negf %318 : vector<8x32xf32>
    %320 = math.exp %319 : vector<8x32xf32>
    %cst_88 = arith.constant 1.000000e+00 : f32
    %321 = vector.broadcast %cst_88 : f32 to vector<8x32xf32>
    %322 = arith.addf %321, %320 : vector<8x32xf32>
    %323 = arith.divf %321, %322 : vector<8x32xf32>
    %324 = vector.extract_strided_slice %304 {offsets = [0, 64], sizes = [8, 32], strides = [1, 1]} : vector<8x96xf32> to vector<8x32xf32>
    %325 = vector.extract_strided_slice %307 {offsets = [0, 64], sizes = [8, 32], strides = [1, 1]} : vector<8x96xf32> to vector<8x32xf32>
    %326 = arith.addf %325, %17 : vector<8x32xf32>
    %327 = arith.mulf %315, %326 : vector<8x32xf32>
    %328 = arith.addf %324, %327 : vector<8x32xf32>
    %329 = math.tanh %328 : vector<8x32xf32>
    %cst_89 = arith.constant 1.000000e+00 : f32
    %330 = vector.broadcast %cst_89 : f32 to vector<8x32xf32>
    %331 = arith.subf %330, %323 : vector<8x32xf32>
    %332 = arith.mulf %331, %329 : vector<8x32xf32>
    %333 = arith.mulf %323, %265 : vector<8x32xf32>
    %334 = arith.addf %332, %333 : vector<8x32xf32>
    %cst_90 = arith.constant dense<0.000000e+00> : vector<8x96xf32>
    %335 = tpu.matmul %293, %14, %cst_90 {dimension_numbers = #tpu.dot_dimension_numbers<[1], [0], [0], [1], [0, 0, 1, 1], [], []>} : vector<8x32xf32>, vector<32x96xf32>, vector<8x96xf32> -> vector<8x96xf32>
    %336 = vector.extract_strided_slice %306 {offsets = [0, 0], sizes = [8, 32], strides = [1, 1]} : vector<8x96xf32> to vector<8x32xf32>
    %337 = vector.extract_strided_slice %335 {offsets = [0, 0], sizes = [8, 32], strides = [1, 1]} : vector<8x96xf32> to vector<8x32xf32>
    %338 = arith.addf %336, %337 : vector<8x32xf32>
    %339 = arith.negf %338 : vector<8x32xf32>
    %340 = math.exp %339 : vector<8x32xf32>
    %cst_91 = arith.constant 1.000000e+00 : f32
    %341 = vector.broadcast %cst_91 : f32 to vector<8x32xf32>
    %342 = arith.addf %341, %340 : vector<8x32xf32>
    %343 = arith.divf %341, %342 : vector<8x32xf32>
    %344 = vector.extract_strided_slice %306 {offsets = [0, 32], sizes = [8, 32], strides = [1, 1]} : vector<8x96xf32> to vector<8x32xf32>
    %345 = vector.extract_strided_slice %335 {offsets = [0, 32], sizes = [8, 32], strides = [1, 1]} : vector<8x96xf32> to vector<8x32xf32>
    %346 = arith.addf %344, %345 : vector<8x32xf32>
    %347 = arith.negf %346 : vector<8x32xf32>
    %348 = math.exp %347 : vector<8x32xf32>
    %cst_92 = arith.constant 1.000000e+00 : f32
    %349 = vector.broadcast %cst_92 : f32 to vector<8x32xf32>
    %350 = arith.addf %349, %348 : vector<8x32xf32>
    %351 = arith.divf %349, %350 : vector<8x32xf32>
    %352 = vector.extract_strided_slice %306 {offsets = [0, 64], sizes = [8, 32], strides = [1, 1]} : vector<8x96xf32> to vector<8x32xf32>
    %353 = vector.extract_strided_slice %335 {offsets = [0, 64], sizes = [8, 32], strides = [1, 1]} : vector<8x96xf32> to vector<8x32xf32>
    %354 = arith.addf %353, %20 : vector<8x32xf32>
    %355 = arith.mulf %343, %354 : vector<8x32xf32>
    %356 = arith.addf %352, %355 : vector<8x32xf32>
    %357 = math.tanh %356 : vector<8x32xf32>
    %cst_93 = arith.constant 1.000000e+00 : f32
    %358 = vector.broadcast %cst_93 : f32 to vector<8x32xf32>
    %359 = arith.subf %358, %351 : vector<8x32xf32>
    %360 = arith.mulf %359, %357 : vector<8x32xf32>
    %361 = arith.mulf %351, %293 : vector<8x32xf32>
    %362 = arith.addf %360, %361 : vector<8x32xf32>
    %363 = arith.index_cast %299 : i32 to index
    %c0_94 = arith.constant 0 : index
    %364 = vector.load %arg12[%363, %c0_94] : memref<64x32xf32, #tpu.memory_space<vmem>>, vector<8x32xf32>
    tpu.vector_store %arg12[%363, %c0_94], %334 {strides = array<i32>} : memref<64x32xf32, #tpu.memory_space<vmem>>, vector<8x32xf32>,
    %365 = arith.index_cast %302 : i32 to index
    %c0_95 = arith.constant 0 : index
    %366 = vector.load %arg13[%365, %c0_95] : memref<64x32xf32, #tpu.memory_space<vmem>>, vector<8x32xf32>
    tpu.vector_store %arg13[%365, %c0_95], %362 {strides = array<i32>} : memref<64x32xf32, #tpu.memory_space<vmem>>, vector<8x32xf32>,
    %c5_i32 = arith.constant 5 : i32
    %c8_i32_96 = arith.constant 8 : i32
    %367 = arith.muli %c5_i32, %c8_i32_96 : i32
    %368 = tpu.assume_multiple %367, 8 : i32
    %c7_i32_97 = arith.constant 7 : i32
    %369 = arith.subi %c7_i32_97, %c5_i32 : i32
    %c8_i32_98 = arith.constant 8 : i32
    %370 = arith.muli %369, %c8_i32_98 : i32
    %371 = tpu.assume_multiple %370, 8 : i32
    %372 = arith.index_cast %368 : i32 to index
    %c0_99 = arith.constant 0 : index
    %373 = vector.load %arg15[%372, %c0_99] : memref<64x96xf32, #tpu.memory_space<vmem>>, vector<8x96xf32>
    %374 = arith.index_cast %371 : i32 to index
    %c0_100 = arith.constant 0 : index
    %375 = vector.load %arg16[%374, %c0_100] : memref<64x96xf32, #tpu.memory_space<vmem>>, vector<8x96xf32>
    %cst_101 = arith.constant dense<0.000000e+00> : vector<8x96xf32>
    %376 = tpu.matmul %334, %13, %cst_101 {dimension_numbers = #tpu.dot_dimension_numbers<[1], [0], [0], [1], [0, 0, 1, 1], [], []>} : vector<8x32xf32>, vector<32x96xf32>, vector<8x96xf32> -> vector<8x96xf32>
    %377 = vector.extract_strided_slice %373 {offsets = [0, 0], sizes = [8, 32], strides = [1, 1]} : vector<8x96xf32> to vector<8x32xf32>
    %378 = vector.extract_strided_slice %376 {offsets = [0, 0], sizes = [8, 32], strides = [1, 1]} : vector<8x96xf32> to vector<8x32xf32>
    %379 = arith.addf %377, %378 : vector<8x32xf32>
    %380 = arith.negf %379 : vector<8x32xf32>
    %381 = math.exp %380 : vector<8x32xf32>
    %cst_102 = arith.constant 1.000000e+00 : f32
    %382 = vector.broadcast %cst_102 : f32 to vector<8x32xf32>
    %383 = arith.addf %382, %381 : vector<8x32xf32>
    %384 = arith.divf %382, %383 : vector<8x32xf32>
    %385 = vector.extract_strided_slice %373 {offsets = [0, 32], sizes = [8, 32], strides = [1, 1]} : vector<8x96xf32> to vector<8x32xf32>
    %386 = vector.extract_strided_slice %376 {offsets = [0, 32], sizes = [8, 32], strides = [1, 1]} : vector<8x96xf32> to vector<8x32xf32>
    %387 = arith.addf %385, %386 : vector<8x32xf32>
    %388 = arith.negf %387 : vector<8x32xf32>
    %389 = math.exp %388 : vector<8x32xf32>
    %cst_103 = arith.constant 1.000000e+00 : f32
    %390 = vector.broadcast %cst_103 : f32 to vector<8x32xf32>
    %391 = arith.addf %390, %389 : vector<8x32xf32>
    %392 = arith.divf %390, %391 : vector<8x32xf32>
    %393 = vector.extract_strided_slice %373 {offsets = [0, 64], sizes = [8, 32], strides = [1, 1]} : vector<8x96xf32> to vector<8x32xf32>
    %394 = vector.extract_strided_slice %376 {offsets = [0, 64], sizes = [8, 32], strides = [1, 1]} : vector<8x96xf32> to vector<8x32xf32>
    %395 = arith.addf %394, %17 : vector<8x32xf32>
    %396 = arith.mulf %384, %395 : vector<8x32xf32>
    %397 = arith.addf %393, %396 : vector<8x32xf32>
    %398 = math.tanh %397 : vector<8x32xf32>
    %cst_104 = arith.constant 1.000000e+00 : f32
    %399 = vector.broadcast %cst_104 : f32 to vector<8x32xf32>
    %400 = arith.subf %399, %392 : vector<8x32xf32>
    %401 = arith.mulf %400, %398 : vector<8x32xf32>
    %402 = arith.mulf %392, %334 : vector<8x32xf32>
    %403 = arith.addf %401, %402 : vector<8x32xf32>
    %cst_105 = arith.constant dense<0.000000e+00> : vector<8x96xf32>
    %404 = tpu.matmul %362, %14, %cst_105 {dimension_numbers = #tpu.dot_dimension_numbers<[1], [0], [0], [1], [0, 0, 1, 1], [], []>} : vector<8x32xf32>, vector<32x96xf32>, vector<8x96xf32> -> vector<8x96xf32>
    %405 = vector.extract_strided_slice %375 {offsets = [0, 0], sizes = [8, 32], strides = [1, 1]} : vector<8x96xf32> to vector<8x32xf32>
    %406 = vector.extract_strided_slice %404 {offsets = [0, 0], sizes = [8, 32], strides = [1, 1]} : vector<8x96xf32> to vector<8x32xf32>
    %407 = arith.addf %405, %406 : vector<8x32xf32>
    %408 = arith.negf %407 : vector<8x32xf32>
    %409 = math.exp %408 : vector<8x32xf32>
    %cst_106 = arith.constant 1.000000e+00 : f32
    %410 = vector.broadcast %cst_106 : f32 to vector<8x32xf32>
    %411 = arith.addf %410, %409 : vector<8x32xf32>
    %412 = arith.divf %410, %411 : vector<8x32xf32>
    %413 = vector.extract_strided_slice %375 {offsets = [0, 32], sizes = [8, 32], strides = [1, 1]} : vector<8x96xf32> to vector<8x32xf32>
    %414 = vector.extract_strided_slice %404 {offsets = [0, 32], sizes = [8, 32], strides = [1, 1]} : vector<8x96xf32> to vector<8x32xf32>
    %415 = arith.addf %413, %414 : vector<8x32xf32>
    %416 = arith.negf %415 : vector<8x32xf32>
    %417 = math.exp %416 : vector<8x32xf32>
    %cst_107 = arith.constant 1.000000e+00 : f32
    %418 = vector.broadcast %cst_107 : f32 to vector<8x32xf32>
    %419 = arith.addf %418, %417 : vector<8x32xf32>
    %420 = arith.divf %418, %419 : vector<8x32xf32>
    %421 = vector.extract_strided_slice %375 {offsets = [0, 64], sizes = [8, 32], strides = [1, 1]} : vector<8x96xf32> to vector<8x32xf32>
    %422 = vector.extract_strided_slice %404 {offsets = [0, 64], sizes = [8, 32], strides = [1, 1]} : vector<8x96xf32> to vector<8x32xf32>
    %423 = arith.addf %422, %20 : vector<8x32xf32>
    %424 = arith.mulf %412, %423 : vector<8x32xf32>
    %425 = arith.addf %421, %424 : vector<8x32xf32>
    %426 = math.tanh %425 : vector<8x32xf32>
    %cst_108 = arith.constant 1.000000e+00 : f32
    %427 = vector.broadcast %cst_108 : f32 to vector<8x32xf32>
    %428 = arith.subf %427, %420 : vector<8x32xf32>
    %429 = arith.mulf %428, %426 : vector<8x32xf32>
    %430 = arith.mulf %420, %362 : vector<8x32xf32>
    %431 = arith.addf %429, %430 : vector<8x32xf32>
    %432 = arith.index_cast %368 : i32 to index
    %c0_109 = arith.constant 0 : index
    %433 = vector.load %arg12[%432, %c0_109] : memref<64x32xf32, #tpu.memory_space<vmem>>, vector<8x32xf32>
    tpu.vector_store %arg12[%432, %c0_109], %403 {strides = array<i32>} : memref<64x32xf32, #tpu.memory_space<vmem>>, vector<8x32xf32>,
    %434 = arith.index_cast %371 : i32 to index
    %c0_110 = arith.constant 0 : index
    %435 = vector.load %arg13[%434, %c0_110] : memref<64x32xf32, #tpu.memory_space<vmem>>, vector<8x32xf32>
    tpu.vector_store %arg13[%434, %c0_110], %431 {strides = array<i32>} : memref<64x32xf32, #tpu.memory_space<vmem>>, vector<8x32xf32>,
    %c6_i32 = arith.constant 6 : i32
    %c8_i32_111 = arith.constant 8 : i32
    %436 = arith.muli %c6_i32, %c8_i32_111 : i32
    %437 = tpu.assume_multiple %436, 8 : i32
    %c7_i32_112 = arith.constant 7 : i32
    %438 = arith.subi %c7_i32_112, %c6_i32 : i32
    %c8_i32_113 = arith.constant 8 : i32
    %439 = arith.muli %438, %c8_i32_113 : i32
    %440 = tpu.assume_multiple %439, 8 : i32
    %441 = arith.index_cast %437 : i32 to index
    %c0_114 = arith.constant 0 : index
    %442 = vector.load %arg15[%441, %c0_114] : memref<64x96xf32, #tpu.memory_space<vmem>>, vector<8x96xf32>
    %443 = arith.index_cast %440 : i32 to index
    %c0_115 = arith.constant 0 : index
    %444 = vector.load %arg16[%443, %c0_115] : memref<64x96xf32, #tpu.memory_space<vmem>>, vector<8x96xf32>
    %cst_116 = arith.constant dense<0.000000e+00> : vector<8x96xf32>
    %445 = tpu.matmul %403, %13, %cst_116 {dimension_numbers = #tpu.dot_dimension_numbers<[1], [0], [0], [1], [0, 0, 1, 1], [], []>} : vector<8x32xf32>, vector<32x96xf32>, vector<8x96xf32> -> vector<8x96xf32>
    %446 = vector.extract_strided_slice %442 {offsets = [0, 0], sizes = [8, 32], strides = [1, 1]} : vector<8x96xf32> to vector<8x32xf32>
    %447 = vector.extract_strided_slice %445 {offsets = [0, 0], sizes = [8, 32], strides = [1, 1]} : vector<8x96xf32> to vector<8x32xf32>
    %448 = arith.addf %446, %447 : vector<8x32xf32>
    %449 = arith.negf %448 : vector<8x32xf32>
    %450 = math.exp %449 : vector<8x32xf32>
    %cst_117 = arith.constant 1.000000e+00 : f32
    %451 = vector.broadcast %cst_117 : f32 to vector<8x32xf32>
    %452 = arith.addf %451, %450 : vector<8x32xf32>
    %453 = arith.divf %451, %452 : vector<8x32xf32>
    %454 = vector.extract_strided_slice %442 {offsets = [0, 32], sizes = [8, 32], strides = [1, 1]} : vector<8x96xf32> to vector<8x32xf32>
    %455 = vector.extract_strided_slice %445 {offsets = [0, 32], sizes = [8, 32], strides = [1, 1]} : vector<8x96xf32> to vector<8x32xf32>
    %456 = arith.addf %454, %455 : vector<8x32xf32>
    %457 = arith.negf %456 : vector<8x32xf32>
    %458 = math.exp %457 : vector<8x32xf32>
    %cst_118 = arith.constant 1.000000e+00 : f32
    %459 = vector.broadcast %cst_118 : f32 to vector<8x32xf32>
    %460 = arith.addf %459, %458 : vector<8x32xf32>
    %461 = arith.divf %459, %460 : vector<8x32xf32>
    %462 = vector.extract_strided_slice %442 {offsets = [0, 64], sizes = [8, 32], strides = [1, 1]} : vector<8x96xf32> to vector<8x32xf32>
    %463 = vector.extract_strided_slice %445 {offsets = [0, 64], sizes = [8, 32], strides = [1, 1]} : vector<8x96xf32> to vector<8x32xf32>
    %464 = arith.addf %463, %17 : vector<8x32xf32>
    %465 = arith.mulf %453, %464 : vector<8x32xf32>
    %466 = arith.addf %462, %465 : vector<8x32xf32>
    %467 = math.tanh %466 : vector<8x32xf32>
    %cst_119 = arith.constant 1.000000e+00 : f32
    %468 = vector.broadcast %cst_119 : f32 to vector<8x32xf32>
    %469 = arith.subf %468, %461 : vector<8x32xf32>
    %470 = arith.mulf %469, %467 : vector<8x32xf32>
    %471 = arith.mulf %461, %403 : vector<8x32xf32>
    %472 = arith.addf %470, %471 : vector<8x32xf32>
    %cst_120 = arith.constant dense<0.000000e+00> : vector<8x96xf32>
    %473 = tpu.matmul %431, %14, %cst_120 {dimension_numbers = #tpu.dot_dimension_numbers<[1], [0], [0], [1], [0, 0, 1, 1], [], []>} : vector<8x32xf32>, vector<32x96xf32>, vector<8x96xf32> -> vector<8x96xf32>
    %474 = vector.extract_strided_slice %444 {offsets = [0, 0], sizes = [8, 32], strides = [1, 1]} : vector<8x96xf32> to vector<8x32xf32>
    %475 = vector.extract_strided_slice %473 {offsets = [0, 0], sizes = [8, 32], strides = [1, 1]} : vector<8x96xf32> to vector<8x32xf32>
    %476 = arith.addf %474, %475 : vector<8x32xf32>
    %477 = arith.negf %476 : vector<8x32xf32>
    %478 = math.exp %477 : vector<8x32xf32>
    %cst_121 = arith.constant 1.000000e+00 : f32
    %479 = vector.broadcast %cst_121 : f32 to vector<8x32xf32>
    %480 = arith.addf %479, %478 : vector<8x32xf32>
    %481 = arith.divf %479, %480 : vector<8x32xf32>
    %482 = vector.extract_strided_slice %444 {offsets = [0, 32], sizes = [8, 32], strides = [1, 1]} : vector<8x96xf32> to vector<8x32xf32>
    %483 = vector.extract_strided_slice %473 {offsets = [0, 32], sizes = [8, 32], strides = [1, 1]} : vector<8x96xf32> to vector<8x32xf32>
    %484 = arith.addf %482, %483 : vector<8x32xf32>
    %485 = arith.negf %484 : vector<8x32xf32>
    %486 = math.exp %485 : vector<8x32xf32>
    %cst_122 = arith.constant 1.000000e+00 : f32
    %487 = vector.broadcast %cst_122 : f32 to vector<8x32xf32>
    %488 = arith.addf %487, %486 : vector<8x32xf32>
    %489 = arith.divf %487, %488 : vector<8x32xf32>
    %490 = vector.extract_strided_slice %444 {offsets = [0, 64], sizes = [8, 32], strides = [1, 1]} : vector<8x96xf32> to vector<8x32xf32>
    %491 = vector.extract_strided_slice %473 {offsets = [0, 64], sizes = [8, 32], strides = [1, 1]} : vector<8x96xf32> to vector<8x32xf32>
    %492 = arith.addf %491, %20 : vector<8x32xf32>
    %493 = arith.mulf %481, %492 : vector<8x32xf32>
    %494 = arith.addf %490, %493 : vector<8x32xf32>
    %495 = math.tanh %494 : vector<8x32xf32>
    %cst_123 = arith.constant 1.000000e+00 : f32
    %496 = vector.broadcast %cst_123 : f32 to vector<8x32xf32>
    %497 = arith.subf %496, %489 : vector<8x32xf32>
    %498 = arith.mulf %497, %495 : vector<8x32xf32>
    %499 = arith.mulf %489, %431 : vector<8x32xf32>
    %500 = arith.addf %498, %499 : vector<8x32xf32>
    %501 = arith.index_cast %437 : i32 to index
    %c0_124 = arith.constant 0 : index
    %502 = vector.load %arg12[%501, %c0_124] : memref<64x32xf32, #tpu.memory_space<vmem>>, vector<8x32xf32>
    tpu.vector_store %arg12[%501, %c0_124], %472 {strides = array<i32>} : memref<64x32xf32, #tpu.memory_space<vmem>>, vector<8x32xf32>,
    %503 = arith.index_cast %440 : i32 to index
    %c0_125 = arith.constant 0 : index
    %504 = vector.load %arg13[%503, %c0_125] : memref<64x32xf32, #tpu.memory_space<vmem>>, vector<8x32xf32>
    tpu.vector_store %arg13[%503, %c0_125], %500 {strides = array<i32>} : memref<64x32xf32, #tpu.memory_space<vmem>>, vector<8x32xf32>,
    %c7_i32_126 = arith.constant 7 : i32
    %c8_i32_127 = arith.constant 8 : i32
    %505 = arith.muli %c7_i32_126, %c8_i32_127 : i32
    %506 = tpu.assume_multiple %505, 8 : i32
    %c7_i32_128 = arith.constant 7 : i32
    %507 = arith.subi %c7_i32_128, %c7_i32_126 : i32
    %c8_i32_129 = arith.constant 8 : i32
    %508 = arith.muli %507, %c8_i32_129 : i32
    %509 = tpu.assume_multiple %508, 8 : i32
    %510 = arith.index_cast %506 : i32 to index
    %c0_130 = arith.constant 0 : index
    %511 = vector.load %arg15[%510, %c0_130] : memref<64x96xf32, #tpu.memory_space<vmem>>, vector<8x96xf32>
    %512 = arith.index_cast %509 : i32 to index
    %c0_131 = arith.constant 0 : index
    %513 = vector.load %arg16[%512, %c0_131] : memref<64x96xf32, #tpu.memory_space<vmem>>, vector<8x96xf32>
    %cst_132 = arith.constant dense<0.000000e+00> : vector<8x96xf32>
    %514 = tpu.matmul %472, %13, %cst_132 {dimension_numbers = #tpu.dot_dimension_numbers<[1], [0], [0], [1], [0, 0, 1, 1], [], []>} : vector<8x32xf32>, vector<32x96xf32>, vector<8x96xf32> -> vector<8x96xf32>
    %515 = vector.extract_strided_slice %511 {offsets = [0, 0], sizes = [8, 32], strides = [1, 1]} : vector<8x96xf32> to vector<8x32xf32>
    %516 = vector.extract_strided_slice %514 {offsets = [0, 0], sizes = [8, 32], strides = [1, 1]} : vector<8x96xf32> to vector<8x32xf32>
    %517 = arith.addf %515, %516 : vector<8x32xf32>
    %518 = arith.negf %517 : vector<8x32xf32>
    %519 = math.exp %518 : vector<8x32xf32>
    %cst_133 = arith.constant 1.000000e+00 : f32
    %520 = vector.broadcast %cst_133 : f32 to vector<8x32xf32>
    %521 = arith.addf %520, %519 : vector<8x32xf32>
    %522 = arith.divf %520, %521 : vector<8x32xf32>
    %523 = vector.extract_strided_slice %511 {offsets = [0, 32], sizes = [8, 32], strides = [1, 1]} : vector<8x96xf32> to vector<8x32xf32>
    %524 = vector.extract_strided_slice %514 {offsets = [0, 32], sizes = [8, 32], strides = [1, 1]} : vector<8x96xf32> to vector<8x32xf32>
    %525 = arith.addf %523, %524 : vector<8x32xf32>
    %526 = arith.negf %525 : vector<8x32xf32>
    %527 = math.exp %526 : vector<8x32xf32>
    %cst_134 = arith.constant 1.000000e+00 : f32
    %528 = vector.broadcast %cst_134 : f32 to vector<8x32xf32>
    %529 = arith.addf %528, %527 : vector<8x32xf32>
    %530 = arith.divf %528, %529 : vector<8x32xf32>
    %531 = vector.extract_strided_slice %511 {offsets = [0, 64], sizes = [8, 32], strides = [1, 1]} : vector<8x96xf32> to vector<8x32xf32>
    %532 = vector.extract_strided_slice %514 {offsets = [0, 64], sizes = [8, 32], strides = [1, 1]} : vector<8x96xf32> to vector<8x32xf32>
    %533 = arith.addf %532, %17 : vector<8x32xf32>
    %534 = arith.mulf %522, %533 : vector<8x32xf32>
    %535 = arith.addf %531, %534 : vector<8x32xf32>
    %536 = math.tanh %535 : vector<8x32xf32>
    %cst_135 = arith.constant 1.000000e+00 : f32
    %537 = vector.broadcast %cst_135 : f32 to vector<8x32xf32>
    %538 = arith.subf %537, %530 : vector<8x32xf32>
    %539 = arith.mulf %538, %536 : vector<8x32xf32>
    %540 = arith.mulf %530, %472 : vector<8x32xf32>
    %541 = arith.addf %539, %540 : vector<8x32xf32>
    %cst_136 = arith.constant dense<0.000000e+00> : vector<8x96xf32>
    %542 = tpu.matmul %500, %14, %cst_136 {dimension_numbers = #tpu.dot_dimension_numbers<[1], [0], [0], [1], [0, 0, 1, 1], [], []>} : vector<8x32xf32>, vector<32x96xf32>, vector<8x96xf32> -> vector<8x96xf32>
    %543 = vector.extract_strided_slice %513 {offsets = [0, 0], sizes = [8, 32], strides = [1, 1]} : vector<8x96xf32> to vector<8x32xf32>
    %544 = vector.extract_strided_slice %542 {offsets = [0, 0], sizes = [8, 32], strides = [1, 1]} : vector<8x96xf32> to vector<8x32xf32>
    %545 = arith.addf %543, %544 : vector<8x32xf32>
    %546 = arith.negf %545 : vector<8x32xf32>
    %547 = math.exp %546 : vector<8x32xf32>
    %cst_137 = arith.constant 1.000000e+00 : f32
    %548 = vector.broadcast %cst_137 : f32 to vector<8x32xf32>
    %549 = arith.addf %548, %547 : vector<8x32xf32>
    %550 = arith.divf %548, %549 : vector<8x32xf32>
    %551 = vector.extract_strided_slice %513 {offsets = [0, 32], sizes = [8, 32], strides = [1, 1]} : vector<8x96xf32> to vector<8x32xf32>
    %552 = vector.extract_strided_slice %542 {offsets = [0, 32], sizes = [8, 32], strides = [1, 1]} : vector<8x96xf32> to vector<8x32xf32>
    %553 = arith.addf %551, %552 : vector<8x32xf32>
    %554 = arith.negf %553 : vector<8x32xf32>
    %555 = math.exp %554 : vector<8x32xf32>
    %cst_138 = arith.constant 1.000000e+00 : f32
    %556 = vector.broadcast %cst_138 : f32 to vector<8x32xf32>
    %557 = arith.addf %556, %555 : vector<8x32xf32>
    %558 = arith.divf %556, %557 : vector<8x32xf32>
    %559 = vector.extract_strided_slice %513 {offsets = [0, 64], sizes = [8, 32], strides = [1, 1]} : vector<8x96xf32> to vector<8x32xf32>
    %560 = vector.extract_strided_slice %542 {offsets = [0, 64], sizes = [8, 32], strides = [1, 1]} : vector<8x96xf32> to vector<8x32xf32>
    %561 = arith.addf %560, %20 : vector<8x32xf32>
    %562 = arith.mulf %550, %561 : vector<8x32xf32>
    %563 = arith.addf %559, %562 : vector<8x32xf32>
    %564 = math.tanh %563 : vector<8x32xf32>
    %cst_139 = arith.constant 1.000000e+00 : f32
    %565 = vector.broadcast %cst_139 : f32 to vector<8x32xf32>
    %566 = arith.subf %565, %558 : vector<8x32xf32>
    %567 = arith.mulf %566, %564 : vector<8x32xf32>
    %568 = arith.mulf %558, %500 : vector<8x32xf32>
    %569 = arith.addf %567, %568 : vector<8x32xf32>
    %570 = arith.index_cast %506 : i32 to index
    %c0_140 = arith.constant 0 : index
    %571 = vector.load %arg12[%570, %c0_140] : memref<64x32xf32, #tpu.memory_space<vmem>>, vector<8x32xf32>
    tpu.vector_store %arg12[%570, %c0_140], %541 {strides = array<i32>} : memref<64x32xf32, #tpu.memory_space<vmem>>, vector<8x32xf32>,
    %572 = arith.index_cast %509 : i32 to index
    %c0_141 = arith.constant 0 : index
    %573 = vector.load %arg13[%572, %c0_141] : memref<64x32xf32, #tpu.memory_space<vmem>>, vector<8x32xf32>
    tpu.vector_store %arg13[%572, %c0_141], %569 {strides = array<i32>} : memref<64x32xf32, #tpu.memory_space<vmem>>, vector<8x32xf32>,
    %c8_i32_142 = arith.constant 8 : i32
    %c0_143 = arith.constant 0 : index
    %c0_144 = arith.constant 0 : index
    %574 = vector.load %arg9[%c0_143, %c0_144] : memref<32x32xf32, #tpu.memory_space<vmem>>, vector<32x32xf32>
    %cst_145 = arith.constant dense<0.000000e+00> : vector<8x32xf32>
    %575 = tpu.matmul %541, %574, %cst_145 {dimension_numbers = #tpu.dot_dimension_numbers<[1], [0], [0], [1], [0, 0, 1, 1], [], []>} : vector<8x32xf32>, vector<32x32xf32>, vector<8x32xf32> -> vector<8x32xf32>
    %c0_146 = arith.constant 0 : index
    %c0_147 = arith.constant 0 : index
    %576 = vector.load %arg10[%c0_146, %c0_147] : memref<32x32xf32, #tpu.memory_space<vmem>>, vector<32x32xf32>
    %cst_148 = arith.constant dense<0.000000e+00> : vector<8x32xf32>
    %577 = tpu.matmul %569, %576, %cst_148 {dimension_numbers = #tpu.dot_dimension_numbers<[1], [0], [0], [1], [0, 0, 1, 1], [], []>} : vector<8x32xf32>, vector<32x32xf32>, vector<8x32xf32> -> vector<8x32xf32>
    %578 = arith.addf %575, %577 : vector<8x32xf32>
    %c0_149 = arith.constant 0 : index
    %c0_150 = arith.constant 0 : index
    %579 = vector.load %arg11[%c0_149, %c0_150] : memref<1x32xf32, #tpu.memory_space<vmem>>, vector<1x32xf32>
    %580 = vector.broadcast %579 : vector<1x32xf32> to vector<8x32xf32>
    %581 = arith.addf %578, %580 : vector<8x32xf32>
    %582 = math.tanh %581 : vector<8x32xf32>
    %c0_151 = arith.constant 0 : index
    %c0_152 = arith.constant 0 : index
    %583 = vector.load %arg14[%c0_151, %c0_152] : memref<8x32xf32, #tpu.memory_space<vmem>>, vector<8x32xf32>
    tpu.vector_store %arg14[%c0_151, %c0_152], %582 {strides = array<i32>} : memref<8x32xf32, #tpu.memory_space<vmem>>, vector<8x32xf32>,
    return
  }
}

</mosaic_0001>

<llo_original>
// kernel: tpu_custom_call.1
$region0: #{tpu_custom_call.1}
  #allocation0 [shape = 'u32[]', space=smem, size = 0x4, offset = 0x4, fixed_abs, tag = 'smem constant byte address 0x4 - core index']
  #allocation1 [shape = 'u32[144,128]{1,0:T(1,128)}', space=vmem, size = 0x12000, scoped, tag = 'internal scratch']
  #allocation2 [shape = 'f32[64,96]{1,0:T(8,128)}', space=vmem, size = 0x8000, scoped, tag = 'scratch operand']
  #allocation3 [shape = 'f32[64,96]{1,0:T(8,128)}', space=vmem, size = 0x8000, scoped, tag = 'scratch operand']
  %s0 = inlined_call_operand.vmem [shape: f32[64,32], index: 0, kind: input, shape index: {}]
  %s1 = inlined_call_operand.vmem [shape: f32[32,96], index: 1, kind: input, shape index: {}]
  %s2 = inlined_call_operand.vmem [shape: f32[32,96], index: 2, kind: input, shape index: {}]
  %s3 = inlined_call_operand.vmem [shape: f32[1,96], index: 3, kind: input, shape index: {}]
  %s4 = inlined_call_operand.vmem [shape: f32[1,96], index: 4, kind: input, shape index: {}]
  %s5 = inlined_call_operand.vmem [shape: f32[32,96], index: 5, kind: input, shape index: {}]
  %s6 = inlined_call_operand.hbm [shape: f32[1,32], index: 6, kind: input, shape index: {}]
  %s7 = inlined_call_operand.hbm [shape: f32[32,96], index: 7, kind: input, shape index: {}]
  %s8 = inlined_call_operand.hbm [shape: f32[1,32], index: 8, kind: input, shape index: {}]
  %s9 = inlined_call_operand.vmem [shape: f32[32,32], index: 9, kind: input, shape index: {}]
  %s10 = inlined_call_operand.hbm [shape: f32[32,32], index: 10, kind: input, shape index: {}]
  %s11 = inlined_call_operand.vmem [shape: f32[1,32], index: 11, kind: input, shape index: {}]
  %s12 = inlined_call_operand.vmem [shape: f32[64,32], index: 12, kind: output, shape index: {0}]
  %s13 = inlined_call_operand.vmem [shape: f32[64,32], index: 13, kind: output, shape index: {1}]
  %s14 = inlined_call_operand.hbm [shape: f32[8,32], index: 14, kind: output, shape index: {2}]
  %15 = xla_tuple %s12, %s13, %s14
  %s16 = sld [smem:[#allocation0]]
  $region90: #{tpu_custom_call.1} parent=0
    _
  %s18 = ssub.s32 1, %s16
  %s19 = scalar_select 0, %s18, %s16
  $region1: #{tpu_custom_call.1} parent=0
    #allocation4 [shape = 'u8[512]{0}', space=vmem, size = 0x400, scoped, tag = 'input window, operand 6, single buffered']
    #allocation5 [shape = 's32[1]{0}', space=sflag, size = 0x4, scoped, tag = 'scoped memory for tpu_custom_call.1']
    #allocation6 [shape = 's32[1]{0}', space=sflag, size = 0x4, scoped, tag = 'scoped memory for tpu_custom_call.1']
    #allocation7 [shape = 'u8[16384]{0}', space=vmem, size = 0x4000, scoped, tag = 'input window, operand 7, single buffered']
    #allocation8 [shape = 's32[1]{0}', space=sflag, size = 0x4, scoped, tag = 'scoped memory for tpu_custom_call.1']
    #allocation9 [shape = 'u8[512]{0}', space=vmem, size = 0x400, scoped, tag = 'input window, operand 8, single buffered']
    #allocation10 [shape = 'u8[16384]{0}', space=vmem, size = 0x4000, scoped, tag = 'input window, operand 10, single buffered']
    #allocation11 [shape = 's32[1]{0}', space=sflag, size = 0x4, scoped, tag = 'scoped memory for tpu_custom_call.1']
    #allocation12 [shape = 'u8[4096]{0}', space=vmem, size = 0x1000, scoped, tag = 'output window, operand 2, single buffered']
    %20 = vsyncpa [#allocation5], 0
    %21 = vsyncpa [#allocation8], 0
    %22 = vsyncpa [#allocation11], 0
    %23 = vsyncpa [#allocation6], 0
    // Predicated region
    $region2: #{tpu_custom_call.1} parent=1 // pred_check
      _
    $region3: #{tpu_custom_call.1} parent=1 // pred_check_branch
      %25 = sbr.rel (0) target = $region5
    $region4: #{tpu_custom_call.1} parent=1 // pred_region
      _
    $region5: #{tpu_custom_call.1} parent=1 // pred_fallthru
      _
    // Predicated region
    $region6: #{tpu_custom_call.1} parent=1 // pred_check
      _
    $region7: #{tpu_custom_call.1} parent=1 // pred_check_branch
      %27 = sbr.rel (0) target = $region9
    $region8: #{tpu_custom_call.1} parent=1 // pred_region
      _
    $region9: #{tpu_custom_call.1} parent=1 // pred_fallthru
      _
    // Predicated region
    $region10: #{tpu_custom_call.1} parent=1 // pred_check
      _
    $region11: #{tpu_custom_call.1} parent=1 // pred_check_branch
      %29 = sbr.rel (0) target = $region13
    $region12: #{tpu_custom_call.1} parent=1 // pred_region
      _
    $region13: #{tpu_custom_call.1} parent=1 // pred_fallthru
      _
    // Predicated region
    $region14: #{tpu_custom_call.1} parent=1 // pred_check
      _
    $region15: #{tpu_custom_call.1} parent=1 // pred_check_branch
      %31 = sbr.rel (0) target = $region17
    $region16: #{tpu_custom_call.1} parent=1 // pred_region
      _
    $region17: #{tpu_custom_call.1} parent=1 // pred_fallthru
      _
    // Predicated region
    $region18: #{tpu_custom_call.1} parent=1 // pred_check
      _
    $region19: #{tpu_custom_call.1} parent=1 // pred_check_branch
      %33 = sbr.rel (0) target = $region21
    $region20: #{tpu_custom_call.1} parent=1 // pred_region
      _
    $region21: #{tpu_custom_call.1} parent=1 // pred_fallthru
      _
    // Predicated region
    $region22: #{tpu_custom_call.1} parent=1 // pred_check
      _
    $region23: #{tpu_custom_call.1} parent=1 // pred_check_branch
      %35 = sbr.rel (0) target = $region25
    $region24: #{tpu_custom_call.1} parent=1 // pred_region
      _
    $region25: #{tpu_custom_call.1} parent=1 // pred_fallthru
      _
    // Predicated region
    $region26: #{tpu_custom_call.1} parent=1 // pred_check
      _
    $region27: #{tpu_custom_call.1} parent=1 // pred_check_branch
      %37 = sbr.rel (0) target = $region29
    $region28: #{tpu_custom_call.1} parent=1 // pred_region
      %s39 = ssub.s32 16, 16
      %40 = vsyncadd [#allocation5], %s39
      %s42 = sshll.u32 [#allocation4], 4
      %s43 = int_to_ptr.vmem [resolvable:$true] %s42
      %45 = dma.hbm_to_vmem [thread:$0]  %s6, 16, %s43, [#allocation5]
    $region29: #{tpu_custom_call.1} parent=1 // pred_fallthru
      _
    // Predicated region
    $region30: #{tpu_custom_call.1} parent=1 // pred_check
      _
    $region31: #{tpu_custom_call.1} parent=1 // pred_check_branch
      %47 = sbr.rel (0) target = $region33
    $region32: #{tpu_custom_call.1} parent=1 // pred_region
      %s49 = ssub.s32 512, 512
      %50 = vsyncadd [#allocation8], %s49
      %s51 = sshll.u32 [#allocation7], 4
      %s52 = int_to_ptr.vmem [resolvable:$true] %s51
      %57 = dma.hbm_to_vmem [thread:$0]  %s7, 512, %s52, [#allocation8], 128, 128, 8
    $region33: #{tpu_custom_call.1} parent=1 // pred_fallthru
      _
    // Predicated region
    $region34: #{tpu_custom_call.1} parent=1 // pred_check
      _
    $region35: #{tpu_custom_call.1} parent=1 // pred_check_branch
      %59 = sbr.rel (0) target = $region37
    $region36: #{tpu_custom_call.1} parent=1 // pred_region
      %s61 = ssub.s32 16, 16
      %62 = vsyncadd [#allocation8], %s61
      %s64 = sshll.u32 [#allocation9], 4
      %s65 = int_to_ptr.vmem [resolvable:$true] %s64
      %67 = dma.hbm_to_vmem [thread:$0]  %s8, 16, %s65, [#allocation8]
    $region37: #{tpu_custom_call.1} parent=1 // pred_fallthru
      _
    // Predicated region
    $region38: #{tpu_custom_call.1} parent=1 // pred_check
      _
    $region39: #{tpu_custom_call.1} parent=1 // pred_check_branch
      %69 = sbr.rel (0) target = $region41
    $region40: #{tpu_custom_call.1} parent=1 // pred_region
      _
    $region41: #{tpu_custom_call.1} parent=1 // pred_fallthru
      _
    // Predicated region
    $region42: #{tpu_custom_call.1} parent=1 // pred_check
      _
    $region43: #{tpu_custom_call.1} parent=1 // pred_check_branch
      %71 = sbr.rel (0) target = $region45
    $region44: #{tpu_custom_call.1} parent=1 // pred_region
      %s73 = ssub.s32 512, 512
      %74 = vsyncadd [#allocation11], %s73
      %s75 = sshll.u32 [#allocation10], 4
      %s76 = int_to_ptr.vmem [resolvable:$true] %s75
      %81 = dma.hbm_to_vmem [thread:$0]  %s10, 512, %s76, [#allocation11], 128, 128, 8
    $region45: #{tpu_custom_call.1} parent=1 // pred_fallthru
      _
    // Predicated region
    $region46: #{tpu_custom_call.1} parent=1 // pred_check
      _
    $region47: #{tpu_custom_call.1} parent=1 // pred_check_branch
      %83 = sbr.rel (0) target = $region49
    $region48: #{tpu_custom_call.1} parent=1 // pred_region
      _
    $region49: #{tpu_custom_call.1} parent=1 // pred_fallthru
      _
    // Predicated region
    $region50: #{tpu_custom_call.1} parent=1 // pred_check
      _
    $region51: #{tpu_custom_call.1} parent=1 // pred_check_branch
      %85 = sbr.rel (0) target = $region53
    $region52: #{tpu_custom_call.1} parent=1 // pred_region
      %86 = dma.done [#allocation5], 16
    $region53: #{tpu_custom_call.1} parent=1 // pred_fallthru
      _
    // Predicated region
    $region54: #{tpu_custom_call.1} parent=1 // pred_check
      _
    $region55: #{tpu_custom_call.1} parent=1 // pred_check_branch
      %88 = sbr.rel (0) target = $region57
    $region56: #{tpu_custom_call.1} parent=1 // pred_region
      %89 = dma.done [#allocation8], 512
    $region57: #{tpu_custom_call.1} parent=1 // pred_fallthru
      _
    // Predicated region
    $region58: #{tpu_custom_call.1} parent=1 // pred_check
      _
    $region59: #{tpu_custom_call.1} parent=1 // pred_check_branch
      %91 = sbr.rel (0) target = $region61
    $region60: #{tpu_custom_call.1} parent=1 // pred_region
      %92 = dma.done [#allocation8], 16
    $region61: #{tpu_custom_call.1} parent=1 // pred_fallthru
      _
    // Predicated region
    $region62: #{tpu_custom_call.1} parent=1 // pred_check
      _
    $region63: #{tpu_custom_call.1} parent=1 // pred_check_branch
      %94 = sbr.rel (0) target = $region65
    $region64: #{tpu_custom_call.1} parent=1 // pred_region
      %95 = dma.done [#allocation11], 512
    $region65: #{tpu_custom_call.1} parent=1 // pred_fallthru
      _
    %v96 = vld [vmem:[%s0] sm:$0xff]
    %v97 = vld [vmem:[%s0 + $0x8] sm:$0xff]
    %v98 = vld [vmem:[%s0 + $0x10] sm:$0xff]
    %v99 = vld [vmem:[%s0 + $0x18] sm:$0xff]
    %v100 = vld [vmem:[%s0 + $0x20] sm:$0xff]
    %v101 = vld [vmem:[%s0 + $0x28] sm:$0xff]
    %v102 = vld [vmem:[%s0 + $0x30] sm:$0xff]
    %v103 = vld [vmem:[%s0 + $0x38] sm:$0xff]
    %v104 = vld [vmem:[%s1] sm:$0xff]
    %v105 = vld [vmem:[%s1 + $0x8] sm:$0xff]
    %v106 = vld [vmem:[%s1 + $0x10] sm:$0xff]
    %v107 = vld [vmem:[%s1 + $0x18] sm:$0xff]
    %v108 = vld [vmem:[%s3] sm:$0x1]
    %v110 = vlaneseq
    %v111 = vshrl.u32 %v110, 7
    %v112 = vsub.s32 0, %v111
    %v113 = vrot.slane %v108, %v112
    %vm115 = vcmask 261120
    %v117 = vsel %vm115, %v96, 0
    %v120 = vsel %vm115, %v97, 0
    %v123 = vsel %vm115, %v98, 0
    %v126 = vsel %vm115, %v99, 0
    %v129 = vsel %vm115, %v100, 0
    %v132 = vsel %vm115, %v101, 0
    %v135 = vsel %vm115, %v102, 0
    %v138 = vsel %vm115, %v103, 0
    %140 = vmatprep.subr.mxu0 0.0
    %141 = vmatpush1.msra.mxu0 %v104
    %142 = vmatprep.subr.mxu0 0.0
    %143 = vmatpush1.msra.mxu0 %v105
    %144 = vmatprep.subr.mxu0 0.0
    %145 = vmatpush1.msra.mxu0 %v106
    %146 = vmatprep.subr.mxu0 0.0
    %147 = vmatpush1.msra.mxu0 %v107
    %148 = vmatprep.subr.mxu0 0.0
    %149 = vmatpush1.msra.mxu0 0.0
    %150 = vmatprep.subr.mxu0 0.0
    %151 = vmatpush1.msra.mxu0 0.0
    %152 = vmatprep.subr.mxu0 0.0
    %153 = vmatpush1.msra.mxu0 0.0
    %154 = vmatprep.subr.mxu0 0.0
    %155 = vmatpush1.msra.mxu0 0.0
    %156 = vmatprep.subr.mxu0 0.0
    %157 = vmatpush1.msra.mxu0 0.0
    %158 = vmatprep.subr.mxu0 0.0
    %159 = vmatpush1.msra.mxu0 0.0
    %160 = vmatprep.subr.mxu0 0.0
    %161 = vmatpush1.msra.mxu0 0.0
    %162 = vmatprep.subr.mxu0 0.0
    %163 = vmatpush1.msra.mxu0 0.0
    %164 = vmatprep.subr.mxu0 0.0
    %165 = vmatpush1.msra.mxu0 0.0
    %166 = vmatprep.subr.mxu0 0.0
    %167 = vmatpush1.msra.mxu0 0.0
    %168 = vmatprep.subr.mxu0 0.0
    %169 = vmatpush1.msra.mxu0 0.0
    %170 = vmatprep.subr.mxu0 0.0
    %171 = vmatpush1.msra.mxu0 0.0
    %172 = vmatprep.subr.mxu0 0.0
    %173 = vmatpush1.msra.mxu0 0.0
    %174 = vmatprep.subr.mxu0 0.0
    %175 = vmatpush1.msra.mxu0 0.0
    %176 = vmatprep.subr.mxu0 0.0
    %177 = vmatpush1.msra.mxu0 0.0
    %178 = vmatprep.subr.mxu0 0.0
    %179 = vmatpush1.msra.mxu0 0.0
    %180 = vmatprep.subr.mxu0 0.0
    %181 = vmatpush1.msra.mxu0 0.0
    %182 = vmatprep.subr.mxu0 0.0
    %183 = vmatpush1.msra.mxu0 0.0
    %184 = vmatprep.subr.mxu0 0.0
    %185 = vmatpush1.msra.mxu0 0.0
    %186 = vmatprep.subr.mxu0 0.0
    %187 = vmatpush1.msra.mxu0 0.0
    %188 = vmatprep.subr.mxu0 0.0
    %189 = vmatpush1.msra.mxu0 0.0
    %190 = vmatprep.subr.mxu0 0.0
    %191 = vmatpush1.msra.mxu0 0.0
    %192 = vmatprep.subr.mxu0 0.0
    %193 = vmatpush1.msra.mxu0 0.0
    %194 = vmatprep.subr.mxu0 0.0
    %195 = vmatpush1.msra.mxu0 0.0
    %196 = vmatprep.subr.mxu0 0.0
    %197 = vmatpush1.msra.mxu0 0.0
    %198 = vmatprep.subr.mxu0 0.0
    %199 = vmatpush1.msra.mxu0 0.0
    %200 = vmatprep.subr.mxu0 0.0
    %201 = vmatpush1.msra.mxu0 0.0
    %202 = vmatprep.subr.mxu0 0.0
    %203 = vmatpush1.msra.mxu0 0.0
    %204 = vmatprep.mubr.f32.mxu0 0.0
    %205 = vmatmul.mubr.f32.gmra.mrb[0].mxu0 %v117
    %v206 = vpop.f32.mrb[0].mxu0
    %v207 = vadd.f32 %v113, %v206
    %v208 = vpop.f32.mrb[0].mxu0
    %209 = vmatprep.mubr.f32.mxu0 0.0
    %210 = vmatmul.mubr.f32.gmra.mrb[0].mxu0 %v120
    %v211 = vpop.f32.mrb[0].mxu0
    %v212 = vadd.f32 %v113, %v211
    %v213 = vpop.f32.mrb[0].mxu0
    %214 = vmatprep.mubr.f32.mxu0 0.0
    %215 = vmatmul.mubr.f32.gmra.mrb[0].mxu0 %v123
    %v216 = vpop.f32.mrb[0].mxu0
    %v217 = vadd.f32 %v113, %v216
    %v218 = vpop.f32.mrb[0].mxu0
    %219 = vmatprep.mubr.f32.mxu0 0.0
    %220 = vmatmul.mubr.f32.gmra.mrb[0].mxu0 %v126
    %v221 = vpop.f32.mrb[0].mxu0
    %v222 = vadd.f32 %v113, %v221
    %v223 = vpop.f32.mrb[0].mxu0
    %224 = vmatprep.mubr.f32.mxu0 0.0
    %225 = vmatmul.mubr.f32.gmra.mrb[0].mxu0 %v129
    %v226 = vpop.f32.mrb[0].mxu0
    %v227 = vadd.f32 %v113, %v226
    %v228 = vpop.f32.mrb[0].mxu0
    %229 = vmatprep.mubr.f32.mxu0 0.0
    %230 = vmatmul.mubr.f32.gmra.mrb[0].mxu0 %v132
    %v231 = vpop.f32.mrb[0].mxu0
    %v232 = vadd.f32 %v113, %v231
    %v233 = vpop.f32.mrb[0].mxu0
    %234 = vmatprep.mubr.f32.mxu0 0.0
    %235 = vmatmul.mubr.f32.gmra.mrb[0].mxu0 %v135
    %v236 = vpop.f32.mrb[0].mxu0
    %v237 = vadd.f32 %v113, %v236
    %v238 = vpop.f32.mrb[0].mxu0
    %239 = vmatprep.mubr.f32.mxu0 0.0
    %240 = vmatmul.mubr.f32.gmra.mrb[0].mxu0 %v138
    %v241 = vpop.f32.mrb[0].mxu0
    %v242 = vadd.f32 %v113, %v241
    %v243 = vpop.f32.mrb[0].mxu0
    %244 = vdwg.mxu0
    %vm245 = vcmask 785408
    %246 = vst.msk [vmem:[#allocation2] sm:$0xff] %vm245, %v207
    %247 = vst.msk [vmem:[#allocation2 + $0x8] sm:$0xff] %vm245, %v212
    %248 = vst.msk [vmem:[#allocation2 + $0x10] sm:$0xff] %vm245, %v217
    %249 = vst.msk [vmem:[#allocation2 + $0x18] sm:$0xff] %vm245, %v222
    %250 = vst.msk [vmem:[#allocation2 + $0x20] sm:$0xff] %vm245, %v227
    %251 = vst.msk [vmem:[#allocation2 + $0x28] sm:$0xff] %vm245, %v232
    %252 = vst.msk [vmem:[#allocation2 + $0x30] sm:$0xff] %vm245, %v237
    %253 = vst.msk [vmem:[#allocation2 + $0x38] sm:$0xff] %vm245, %v242
    %v254 = vld [vmem:[%s2] sm:$0xff]
    %v255 = vld [vmem:[%s2 + $0x8] sm:$0xff]
    %v256 = vld [vmem:[%s2 + $0x10] sm:$0xff]
    %v257 = vld [vmem:[%s2 + $0x18] sm:$0xff]
    %v258 = vld [vmem:[%s4] sm:$0x1]
    %v260 = vlaneseq
    %v261 = vshrl.u32 %v260, 7
    %v262 = vsub.s32 0, %v261
    %v263 = vrot.slane %v258, %v262
    %265 = vmatprep.subr.mxu0 0.0
    %266 = vmatpush1.msra.mxu0 %v254
    %267 = vmatprep.subr.mxu0 0.0
    %268 = vmatpush1.msra.mxu0 %v255
    %269 = vmatprep.subr.mxu0 0.0
    %270 = vmatpush1.msra.mxu0 %v256
    %271 = vmatprep.subr.mxu0 0.0
    %272 = vmatpush1.msra.mxu0 %v257
    %273 = vmatprep.subr.mxu0 0.0
    %274 = vmatpush1.msra.mxu0 0.0
    %275 = vmatprep.subr.mxu0 0.0
    %276 = vmatpush1.msra.mxu0 0.0
    %277 = vmatprep.subr.mxu0 0.0
    %278 = vmatpush1.msra.mxu0 0.0
    %279 = vmatprep.subr.mxu0 0.0
    %280 = vmatpush1.msra.mxu0 0.0
    %281 = vmatprep.subr.mxu0 0.0
    %282 = vmatpush1.msra.mxu0 0.0
    %283 = vmatprep.subr.mxu0 0.0
    %284 = vmatpush1.msra.mxu0 0.0
    %285 = vmatprep.subr.mxu0 0.0
    %286 = vmatpush1.msra.mxu0 0.0
    %287 = vmatprep.subr.mxu0 0.0
    %288 = vmatpush1.msra.mxu0 0.0
    %289 = vmatprep.subr.mxu0 0.0
    %290 = vmatpush1.msra.mxu0 0.0
    %291 = vmatprep.subr.mxu0 0.0
    %292 = vmatpush1.msra.mxu0 0.0
    %293 = vmatprep.subr.mxu0 0.0
    %294 = vmatpush1.msra.mxu0 0.0
    %295 = vmatprep.subr.mxu0 0.0
    %296 = vmatpush1.msra.mxu0 0.0
    %297 = vmatprep.subr.mxu0 0.0
    %298 = vmatpush1.msra.mxu0 0.0
    %299 = vmatprep.subr.mxu0 0.0
    %300 = vmatpush1.msra.mxu0 0.0
    %301 = vmatprep.subr.mxu0 0.0
    %302 = vmatpush1.msra.mxu0 0.0
    %303 = vmatprep.subr.mxu0 0.0
    %304 = vmatpush1.msra.mxu0 0.0
    %305 = vmatprep.subr.mxu0 0.0
    %306 = vmatpush1.msra.mxu0 0.0
    %307 = vmatprep.subr.mxu0 0.0
    %308 = vmatpush1.msra.mxu0 0.0
    %309 = vmatprep.subr.mxu0 0.0
    %310 = vmatpush1.msra.mxu0 0.0
    %311 = vmatprep.subr.mxu0 0.0
    %312 = vmatpush1.msra.mxu0 0.0
    %313 = vmatprep.subr.mxu0 0.0
    %314 = vmatpush1.msra.mxu0 0.0
    %315 = vmatprep.subr.mxu0 0.0
    %316 = vmatpush1.msra.mxu0 0.0
    %317 = vmatprep.subr.mxu0 0.0
    %318 = vmatpush1.msra.mxu0 0.0
    %319 = vmatprep.subr.mxu0 0.0
    %320 = vmatpush1.msra.mxu0 0.0
    %321 = vmatprep.subr.mxu0 0.0
    %322 = vmatpush1.msra.mxu0 0.0
    %323 = vmatprep.subr.mxu0 0.0
    %324 = vmatpush1.msra.mxu0 0.0
    %325 = vmatprep.subr.mxu0 0.0
    %326 = vmatpush1.msra.mxu0 0.0
    %327 = vmatprep.subr.mxu0 0.0
    %328 = vmatpush1.msra.mxu0 0.0
    %329 = vmatprep.mubr.f32.mxu0 0.0
    %330 = vmatmul.mubr.f32.gmra.mrb[0].mxu0 %v117
    %v331 = vpop.f32.mrb[0].mxu0
    %v332 = vadd.f32 %v263, %v331
    %v333 = vpop.f32.mrb[0].mxu0
    %334 = vmatprep.mubr.f32.mxu0 0.0
    %335 = vmatmul.mubr.f32.gmra.mrb[0].mxu0 %v120
    %v336 = vpop.f32.mrb[0].mxu0
    %v337 = vadd.f32 %v263, %v336
    %v338 = vpop.f32.mrb[0].mxu0
    %339 = vmatprep.mubr.f32.mxu0 0.0
    %340 = vmatmul.mubr.f32.gmra.mrb[0].mxu0 %v123
    %v341 = vpop.f32.mrb[0].mxu0
    %v342 = vadd.f32 %v263, %v341
    %v343 = vpop.f32.mrb[0].mxu0
    %344 = vmatprep.mubr.f32.mxu0 0.0
    %345 = vmatmul.mubr.f32.gmra.mrb[0].mxu0 %v126
    %v346 = vpop.f32.mrb[0].mxu0
    %v347 = vadd.f32 %v263, %v346
    %v348 = vpop.f32.mrb[0].mxu0
    %349 = vmatprep.mubr.f32.mxu0 0.0
    %350 = vmatmul.mubr.f32.gmra.mrb[0].mxu0 %v129
    %v351 = vpop.f32.mrb[0].mxu0
    %v352 = vadd.f32 %v263, %v351
    %v353 = vpop.f32.mrb[0].mxu0
    %354 = vmatprep.mubr.f32.mxu0 0.0
    %355 = vmatmul.mubr.f32.gmra.mrb[0].mxu0 %v132
    %v356 = vpop.f32.mrb[0].mxu0
    %v357 = vadd.f32 %v263, %v356
    %v358 = vpop.f32.mrb[0].mxu0
    %359 = vmatprep.mubr.f32.mxu0 0.0
    %360 = vmatmul.mubr.f32.gmra.mrb[0].mxu0 %v135
    %v361 = vpop.f32.mrb[0].mxu0
    %v362 = vadd.f32 %v263, %v361
    %v363 = vpop.f32.mrb[0].mxu0
    %364 = vmatprep.mubr.f32.mxu0 0.0
    %365 = vmatmul.mubr.f32.gmra.mrb[0].mxu0 %v138
    %v366 = vpop.f32.mrb[0].mxu0
    %v367 = vadd.f32 %v263, %v366
    %v368 = vpop.f32.mrb[0].mxu0
    %369 = vdwg.mxu0
    %370 = vst.msk [vmem:[#allocation3] sm:$0xff] %vm245, %v332
    %371 = vst.msk [vmem:[#allocation3 + $0x8] sm:$0xff] %vm245, %v337
    %372 = vst.msk [vmem:[#allocation3 + $0x10] sm:$0xff] %vm245, %v342
    %373 = vst.msk [vmem:[#allocation3 + $0x18] sm:$0xff] %vm245, %v347
    %374 = vst.msk [vmem:[#allocation3 + $0x20] sm:$0xff] %vm245, %v352
    %375 = vst.msk [vmem:[#allocation3 + $0x28] sm:$0xff] %vm245, %v357
    %376 = vst.msk [vmem:[#allocation3 + $0x30] sm:$0xff] %vm245, %v362
    %377 = vst.msk [vmem:[#allocation3 + $0x38] sm:$0xff] %vm245, %v367
    %v378 = vld [vmem:[%s5] sm:$0xff]
    %v379 = vld [vmem:[%s5 + $0x8] sm:$0xff]
    %v380 = vld [vmem:[%s5 + $0x10] sm:$0xff]
    %v381 = vld [vmem:[%s5 + $0x18] sm:$0xff]
    %v382 = vld [vmem:[#allocation7] sm:$0xff]
    %v383 = vld [vmem:[#allocation7 + $0x8] sm:$0xff]
    %v384 = vld [vmem:[#allocation7 + $0x10] sm:$0xff]
    %v385 = vld [vmem:[#allocation7 + $0x18] sm:$0xff]
    %v386 = vld [vmem:[#allocation4] sm:$0x1]
    %v388 = vlaneseq
    %v389 = vshrl.u32 %v388, 7
    %v390 = vsub.s32 0, %v389
    %v391 = vrot.slane %v386, %v390
    %v392 = vld [vmem:[#allocation9] sm:$0x1]
    %v394 = vlaneseq
    %v395 = vshrl.u32 %v394, 7
    %v396 = vsub.s32 0, %v395
    %v397 = vrot.slane %v392, %v396
    %v398 = vld [vmem:[#allocation2] sm:$0xff]
    %s399 = scalar_lea.vmem [#allocation3], 56
    %v400 = vld [vmem:[%s399] sm:$0xff]
    %v402 = vsel %vm115, 0.0, 0
    %404 = vmatprep.subr.mxu0 0.0
    %405 = vmatpush1.msra.mxu0 %v378
    %406 = vmatprep.subr.mxu0 0.0
    %407 = vmatpush1.msra.mxu0 %v379
    %408 = vmatprep.subr.mxu0 0.0
    %409 = vmatpush1.msra.mxu0 %v380
    %410 = vmatprep.subr.mxu0 0.0
    %411 = vmatpush1.msra.mxu0 %v381
    %412 = vmatprep.subr.mxu0 0.0
    %413 = vmatpush1.msra.mxu0 0.0
    %414 = vmatprep.subr.mxu0 0.0
    %415 = vmatpush1.msra.mxu0 0.0
    %416 = vmatprep.subr.mxu0 0.0
    %417 = vmatpush1.msra.mxu0 0.0
    %418 = vmatprep.subr.mxu0 0.0
    %419 = vmatpush1.msra.mxu0 0.0
    %420 = vmatprep.subr.mxu0 0.0
    %421 = vmatpush1.msra.mxu0 0.0
    %422 = vmatprep.subr.mxu0 0.0
    %423 = vmatpush1.msra.mxu0 0.0
    %424 = vmatprep.subr.mxu0 0.0
    %425 = vmatpush1.msra.mxu0 0.0
    %426 = vmatprep.subr.mxu0 0.0
    %427 = vmatpush1.msra.mxu0 0.0
    %428 = vmatprep.subr.mxu0 0.0
    %429 = vmatpush1.msra.mxu0 0.0
    %430 = vmatprep.subr.mxu0 0.0
    %431 = vmatpush1.msra.mxu0 0.0
    %432 = vmatprep.subr.mxu0 0.0
    %433 = vmatpush1.msra.mxu0 0.0
    %434 = vmatprep.subr.mxu0 0.0
    %435 = vmatpush1.msra.mxu0 0.0
    %436 = vmatprep.subr.mxu0 0.0
    %437 = vmatpush1.msra.mxu0 0.0
    %438 = vmatprep.subr.mxu0 0.0
    %439 = vmatpush1.msra.mxu0 0.0
    %440 = vmatprep.subr.mxu0 0.0
    %441 = vmatpush1.msra.mxu0 0.0
    %442 = vmatprep.subr.mxu0 0.0
    %443 = vmatpush1.msra.mxu0 0.0
    %444 = vmatprep.subr.mxu0 0.0
    %445 = vmatpush1.msra.mxu0 0.0
    %446 = vmatprep.subr.mxu0 0.0
    %447 = vmatpush1.msra.mxu0 0.0
    %448 = vmatprep.subr.mxu0 0.0
    %449 = vmatpush1.msra.mxu0 0.0
    %450 = vmatprep.subr.mxu0 0.0
    %451 = vmatpush1.msra.mxu0 0.0
    %452 = vmatprep.subr.mxu0 0.0
    %453 = vmatpush1.msra.mxu0 0.0
    %454 = vmatprep.subr.mxu0 0.0
    %455 = vmatpush1.msra.mxu0 0.0
    %456 = vmatprep.subr.mxu0 0.0
    %457 = vmatpush1.msra.mxu0 0.0
    %458 = vmatprep.subr.mxu0 0.0
    %459 = vmatpush1.msra.mxu0 0.0
    %460 = vmatprep.subr.mxu0 0.0
    %461 = vmatpush1.msra.mxu0 0.0
    %462 = vmatprep.subr.mxu0 0.0
    %463 = vmatpush1.msra.mxu0 0.0
    %464 = vmatprep.subr.mxu0 0.0
    %465 = vmatpush1.msra.mxu0 0.0
    %466 = vmatprep.subr.mxu0 0.0
    %467 = vmatpush1.msra.mxu0 0.0
    %468 = vmatprep.mubr.f32.mxu0 0.0
    %469 = vmatmul.mubr.f32.gmra.mrb[0].mxu0 %v402
    %v470 = vpop.f32.mrb[0].mxu0
    %v471 = vadd.f32 0.0, %v470
    %v472 = vpop.f32.mrb[0].mxu0
    %473 = vdwg.mxu0
    %v474 = vadd.f32 %v398, %v471
    %v475 = vxor.u32 %v474, 2147483648
    %v476 = vmul.f32 %v475, 1.442695
    %v477 = vpow.pop %v476
    %v478 = vadd.f32 %v477, 1.0
    %v479 = vrcp.pop %v478
    %v480 = vmul.f32 1.0, %v479
    %481 = vrot.lane.b32.xlu0 %v391, 64
    %v482 = vpop.permute.xlu0 %481
    %v484 = vadd.f32 %v471, %v482
    %486 = vrot.lane.b32.xlu0 %v484, 64
    %v487 = vpop.permute.xlu0 %486
    %v489 = vmul.f32 %v480, %v487
    %491 = vrot.lane.b32.xlu0 %v489, 64
    %v492 = vpop.permute.xlu0 %491
    %v494 = vadd.f32 %v398, %v492
    %v495 = vtanh.pop %v494
    %v496 = vsub.f32 1.0, %v480
    %498 = vrot.lane.b32.xlu0 %v495, 96
    %v499 = vpop.permute.xlu0 %498
    %v501 = vmul.f32 %v496, %v499
    %v502 = vmul.f32 %v480, 0.0
    %v503 = vadd.f32 %v501, %v502
    %504 = vmatprep.subr.mxu0 0.0
    %505 = vmatpush1.msra.mxu0 %v382
    %506 = vmatprep.subr.mxu0 0.0
    %507 = vmatpush1.msra.mxu0 %v383
    %508 = vmatprep.subr.mxu0 0.0
    %509 = vmatpush1.msra.mxu0 %v384
    %510 = vmatprep.subr.mxu0 0.0
    %511 = vmatpush1.msra.mxu0 %v385
    %512 = vmatprep.subr.mxu0 0.0
    %513 = vmatpush1.msra.mxu0 0.0
    %514 = vmatprep.subr.mxu0 0.0
    %515 = vmatpush1.msra.mxu0 0.0
    %516 = vmatprep.subr.mxu0 0.0
    %517 = vmatpush1.msra.mxu0 0.0
    %518 = vmatprep.subr.mxu0 0.0
    %519 = vmatpush1.msra.mxu0 0.0
    %520 = vmatprep.subr.mxu0 0.0
    %521 = vmatpush1.msra.mxu0 0.0
    %522 = vmatprep.subr.mxu0 0.0
    %523 = vmatpush1.msra.mxu0 0.0
    %524 = vmatprep.subr.mxu0 0.0
    %525 = vmatpush1.msra.mxu0 0.0
    %526 = vmatprep.subr.mxu0 0.0
    %527 = vmatpush1.msra.mxu0 0.0
    %528 = vmatprep.subr.mxu0 0.0
    %529 = vmatpush1.msra.mxu0 0.0
    %530 = vmatprep.subr.mxu0 0.0
    %531 = vmatpush1.msra.mxu0 0.0
    %532 = vmatprep.subr.mxu0 0.0
    %533 = vmatpush1.msra.mxu0 0.0
    %534 = vmatprep.subr.mxu0 0.0
    %535 = vmatpush1.msra.mxu0 0.0
    %536 = vmatprep.subr.mxu0 0.0
    %537 = vmatpush1.msra.mxu0 0.0
    %538 = vmatprep.subr.mxu0 0.0
    %539 = vmatpush1.msra.mxu0 0.0
    %540 = vmatprep.subr.mxu0 0.0
    %541 = vmatpush1.msra.mxu0 0.0
    %542 = vmatprep.subr.mxu0 0.0
    %543 = vmatpush1.msra.mxu0 0.0
    %544 = vmatprep.subr.mxu0 0.0
    %545 = vmatpush1.msra.mxu0 0.0
    %546 = vmatprep.subr.mxu0 0.0
    %547 = vmatpush1.msra.mxu0 0.0
    %548 = vmatprep.subr.mxu0 0.0
    %549 = vmatpush1.msra.mxu0 0.0
    %550 = vmatprep.subr.mxu0 0.0
    %551 = vmatpush1.msra.mxu0 0.0
    %552 = vmatprep.subr.mxu0 0.0
    %553 = vmatpush1.msra.mxu0 0.0
    %554 = vmatprep.subr.mxu0 0.0
    %555 = vmatpush1.msra.mxu0 0.0
    %556 = vmatprep.subr.mxu0 0.0
    %557 = vmatpush1.msra.mxu0 0.0
    %558 = vmatprep.subr.mxu0 0.0
    %559 = vmatpush1.msra.mxu0 0.0
    %560 = vmatprep.subr.mxu0 0.0
    %561 = vmatpush1.msra.mxu0 0.0
    %562 = vmatprep.subr.mxu0 0.0
    %563 = vmatpush1.msra.mxu0 0.0
    %564 = vmatprep.subr.mxu0 0.0
    %565 = vmatpush1.msra.mxu0 0.0
    %566 = vmatprep.subr.mxu0 0.0
    %567 = vmatpush1.msra.mxu0 0.0
    %568 = vmatprep.mubr.f32.mxu0 0.0
    %569 = vmatmul.mubr.f32.gmra.mrb[0].mxu0 %v402
    %v570 = vpop.f32.mrb[0].mxu0
    %v571 = vadd.f32 0.0, %v570
    %v572 = vpop.f32.mrb[0].mxu0
    %573 = vdwg.mxu0
    %v574 = vadd.f32 %v400, %v571
    %v575 = vxor.u32 %v574, 2147483648
    %v576 = vmul.f32 %v575, 1.442695
    %v577 = vpow.pop %v576
    %v578 = vadd.f32 %v577, 1.0
    %v579 = vrcp.pop %v578
    %v580 = vmul.f32 1.0, %v579
    %581 = vrot.lane.b32.xlu0 %v397, 64
    %v582 = vpop.permute.xlu0 %581
    %v584 = vadd.f32 %v571, %v582
    %586 = vrot.lane.b32.xlu0 %v584, 64
    %v587 = vpop.permute.xlu0 %586
    %v589 = vmul.f32 %v580, %v587
    %591 = vrot.lane.b32.xlu0 %v589, 64
    %v592 = vpop.permute.xlu0 %591
    %v594 = vadd.f32 %v400, %v592
    %v595 = vtanh.pop %v594
    %v596 = vsub.f32 1.0, %v580
    %598 = vrot.lane.b32.xlu0 %v595, 96
    %v599 = vpop.permute.xlu0 %598
    %v601 = vmul.f32 %v596, %v599
    %v602 = vmul.f32 %v580, 0.0
    %v603 = vadd.f32 %v601, %v602
    %605 = vrot.lane.b32.xlu0 %v503, 96
    %v606 = vpop.permute.xlu0 %605
    %608 = vst.msk [vmem:[%s12] sm:$0xff] %vm115, %v606
    %610 = vrot.lane.b32.xlu0 %v603, 96
    %v611 = vpop.permute.xlu0 %610
    %s613 = scalar_lea.vmem %s13, 56
    %614 = vst.msk [vmem:[%s613] sm:$0xff] %vm115, %v611
    %s615 = scalar_lea.vmem [#allocation2], 8
    %v616 = vld [vmem:[%s615] sm:$0xff]
    %s617 = scalar_lea.vmem [#allocation3], 48
    %v618 = vld [vmem:[%s617] sm:$0xff]
    %v619 = vsel %vm115, %v606, 0
    %621 = vmatprep.subr.mxu0 0.0
    %622 = vmatpush1.msra.mxu0 %v378
    %623 = vmatprep.subr.mxu0 0.0
    %624 = vmatpush1.msra.mxu0 %v379
    %625 = vmatprep.subr.mxu0 0.0
    %626 = vmatpush1.msra.mxu0 %v380
    %627 = vmatprep.subr.mxu0 0.0
    %628 = vmatpush1.msra.mxu0 %v381
    %629 = vmatprep.subr.mxu0 0.0
    %630 = vmatpush1.msra.mxu0 0.0
    %631 = vmatprep.subr.mxu0 0.0
    %632 = vmatpush1.msra.mxu0 0.0
    %633 = vmatprep.subr.mxu0 0.0
    %634 = vmatpush1.msra.mxu0 0.0
    %635 = vmatprep.subr.mxu0 0.0
    %636 = vmatpush1.msra.mxu0 0.0
    %637 = vmatprep.subr.mxu0 0.0
    %638 = vmatpush1.msra.mxu0 0.0
    %639 = vmatprep.subr.mxu0 0.0
    %640 = vmatpush1.msra.mxu0 0.0
    %641 = vmatprep.subr.mxu0 0.0
    %642 = vmatpush1.msra.mxu0 0.0
    %643 = vmatprep.subr.mxu0 0.0
    %644 = vmatpush1.msra.mxu0 0.0
    %645 = vmatprep.subr.mxu0 0.0
    %646 = vmatpush1.msra.mxu0 0.0
    %647 = vmatprep.subr.mxu0 0.0
    %648 = vmatpush1.msra.mxu0 0.0
    %649 = vmatprep.subr.mxu0 0.0
    %650 = vmatpush1.msra.mxu0 0.0
    %651 = vmatprep.subr.mxu0 0.0
    %652 = vmatpush1.msra.mxu0 0.0
    %653 = vmatprep.subr.mxu0 0.0
    %654 = vmatpush1.msra.mxu0 0.0
    %655 = vmatprep.subr.mxu0 0.0
    %656 = vmatpush1.msra.mxu0 0.0
    %657 = vmatprep.subr.mxu0 0.0
    %658 = vmatpush1.msra.mxu0 0.0
    %659 = vmatprep.subr.mxu0 0.0
    %660 = vmatpush1.msra.mxu0 0.0
    %661 = vmatprep.subr.mxu0 0.0
    %662 = vmatpush1.msra.mxu0 0.0
    %663 = vmatprep.subr.mxu0 0.0
    %664 = vmatpush1.msra.mxu0 0.0
    %665 = vmatprep.subr.mxu0 0.0
    %666 = vmatpush1.msra.mxu0 0.0
    %667 = vmatprep.subr.mxu0 0.0
    %668 = vmatpush1.msra.mxu0 0.0
    %669 = vmatprep.subr.mxu0 0.0
    %670 = vmatpush1.msra.mxu0 0.0
    %671 = vmatprep.subr.mxu0 0.0
    %672 = vmatpush1.msra.mxu0 0.0
    %673 = vmatprep.subr.mxu0 0.0
    %674 = vmatpush1.msra.mxu0 0.0
    %675 = vmatprep.subr.mxu0 0.0
    %676 = vmatpush1.msra.mxu0 0.0
    %677 = vmatprep.subr.mxu0 0.0
    %678 = vmatpush1.msra.mxu0 0.0
    %679 = vmatprep.subr.mxu0 0.0
    %680 = vmatpush1.msra.mxu0 0.0
    %681 = vmatprep.subr.mxu0 0.0
    %682 = vmatpush1.msra.mxu0 0.0
    %683 = vmatprep.subr.mxu0 0.0
    %684 = vmatpush1.msra.mxu0 0.0
    %685 = vmatprep.mubr.f32.mxu0 0.0
    %686 = vmatmul.mubr.f32.gmra.mrb[0].mxu0 %v619
    %v687 = vpop.f32.mrb[0].mxu0
    %v688 = vadd.f32 0.0, %v687
    %v689 = vpop.f32.mrb[0].mxu0
    %690 = vdwg.mxu0
    %v691 = vadd.f32 %v616, %v688
    %v692 = vxor.u32 %v691, 2147483648
    %v693 = vmul.f32 %v692, 1.442695
    %v694 = vpow.pop %v693
    %v695 = vadd.f32 %v694, 1.0
    %v696 = vrcp.pop %v695
    %v697 = vmul.f32 1.0, %v696
    %v698 = vadd.f32 %v688, %v482
    %700 = vrot.lane.b32.xlu0 %v698, 64
    %v701 = vpop.permute.xlu0 %700
    %v703 = vmul.f32 %v697, %v701
    %705 = vrot.lane.b32.xlu0 %v703, 64
    %v706 = vpop.permute.xlu0 %705
    %v708 = vadd.f32 %v616, %v706
    %v709 = vtanh.pop %v708
    %v710 = vsub.f32 1.0, %v697
    %712 = vrot.lane.b32.xlu0 %v709, 96
    %v713 = vpop.permute.xlu0 %712
    %v715 = vmul.f32 %v710, %v713
    %v716 = vmul.f32 %v697, %v503
    %v717 = vadd.f32 %v715, %v716
    %v718 = vsel %vm115, %v611, 0
    %720 = vmatprep.subr.mxu0 0.0
    %721 = vmatpush1.msra.mxu0 %v382
    %722 = vmatprep.subr.mxu0 0.0
    %723 = vmatpush1.msra.mxu0 %v383
    %724 = vmatprep.subr.mxu0 0.0
    %725 = vmatpush1.msra.mxu0 %v384
    %726 = vmatprep.subr.mxu0 0.0
    %727 = vmatpush1.msra.mxu0 %v385
    %728 = vmatprep.subr.mxu0 0.0
    %729 = vmatpush1.msra.mxu0 0.0
    %730 = vmatprep.subr.mxu0 0.0
    %731 = vmatpush1.msra.mxu0 0.0
    %732 = vmatprep.subr.mxu0 0.0
    %733 = vmatpush1.msra.mxu0 0.0
    %734 = vmatprep.subr.mxu0 0.0
    %735 = vmatpush1.msra.mxu0 0.0
    %736 = vmatprep.subr.mxu0 0.0
    %737 = vmatpush1.msra.mxu0 0.0
    %738 = vmatprep.subr.mxu0 0.0
    %739 = vmatpush1.msra.mxu0 0.0
    %740 = vmatprep.subr.mxu0 0.0
    %741 = vmatpush1.msra.mxu0 0.0
    %742 = vmatprep.subr.mxu0 0.0
    %743 = vmatpush1.msra.mxu0 0.0
    %744 = vmatprep.subr.mxu0 0.0
    %745 = vmatpush1.msra.mxu0 0.0
    %746 = vmatprep.subr.mxu0 0.0
    %747 = vmatpush1.msra.mxu0 0.0
    %748 = vmatprep.subr.mxu0 0.0
    %749 = vmatpush1.msra.mxu0 0.0
    %750 = vmatprep.subr.mxu0 0.0
    %751 = vmatpush1.msra.mxu0 0.0
    %752 = vmatprep.subr.mxu0 0.0
    %753 = vmatpush1.msra.mxu0 0.0
    %754 = vmatprep.subr.mxu0 0.0
    %755 = vmatpush1.msra.mxu0 0.0
    %756 = vmatprep.subr.mxu0 0.0
    %757 = vmatpush1.msra.mxu0 0.0
    %758 = vmatprep.subr.mxu0 0.0
    %759 = vmatpush1.msra.mxu0 0.0
    %760 = vmatprep.subr.mxu0 0.0
    %761 = vmatpush1.msra.mxu0 0.0
    %762 = vmatprep.subr.mxu0 0.0
    %763 = vmatpush1.msra.mxu0 0.0
    %764 = vmatprep.subr.mxu0 0.0
    %765 = vmatpush1.msra.mxu0 0.0
    %766 = vmatprep.subr.mxu0 0.0
    %767 = vmatpush1.msra.mxu0 0.0
    %768 = vmatprep.subr.mxu0 0.0
    %769 = vmatpush1.msra.mxu0 0.0
    %770 = vmatprep.subr.mxu0 0.0
    %771 = vmatpush1.msra.mxu0 0.0
    %772 = vmatprep.subr.mxu0 0.0
    %773 = vmatpush1.msra.mxu0 0.0
    %774 = vmatprep.subr.mxu0 0.0
    %775 = vmatpush1.msra.mxu0 0.0
    %776 = vmatprep.subr.mxu0 0.0
    %777 = vmatpush1.msra.mxu0 0.0
    %778 = vmatprep.subr.mxu0 0.0
    %779 = vmatpush1.msra.mxu0 0.0
    %780 = vmatprep.subr.mxu0 0.0
    %781 = vmatpush1.msra.mxu0 0.0
    %782 = vmatprep.subr.mxu0 0.0
    %783 = vmatpush1.msra.mxu0 0.0
    %784 = vmatprep.mubr.f32.mxu0 0.0
    %785 = vmatmul.mubr.f32.gmra.mrb[0].mxu0 %v718
    %v786 = vpop.f32.mrb[0].mxu0
    %v787 = vadd.f32 0.0, %v786
    %v788 = vpop.f32.mrb[0].mxu0
    %789 = vdwg.mxu0
    %v790 = vadd.f32 %v618, %v787
    %v791 = vxor.u32 %v790, 2147483648
    %v792 = vmul.f32 %v791, 1.442695
    %v793 = vpow.pop %v792
    %v794 = vadd.f32 %v793, 1.0
    %v795 = vrcp.pop %v794
    %v796 = vmul.f32 1.0, %v795
    %v797 = vadd.f32 %v787, %v582
    %799 = vrot.lane.b32.xlu0 %v797, 64
    %v800 = vpop.permute.xlu0 %799
    %v802 = vmul.f32 %v796, %v800
    %804 = vrot.lane.b32.xlu0 %v802, 64
    %v805 = vpop.permute.xlu0 %804
    %v807 = vadd.f32 %v618, %v805
    %v808 = vtanh.pop %v807
    %v809 = vsub.f32 1.0, %v796
    %811 = vrot.lane.b32.xlu0 %v808, 96
    %v812 = vpop.permute.xlu0 %811
    %v814 = vmul.f32 %v809, %v812
    %v815 = vmul.f32 %v796, %v603
    %v816 = vadd.f32 %v814, %v815
    %818 = vrot.lane.b32.xlu0 %v717, 96
    %v819 = vpop.permute.xlu0 %818
    %s821 = scalar_lea.vmem %s12, 8
    %822 = vst.msk [vmem:[%s821] sm:$0xff] %vm115, %v819
    %824 = vrot.lane.b32.xlu0 %v816, 96
    %v825 = vpop.permute.xlu0 %824
    %s827 = scalar_lea.vmem %s13, 48
    %828 = vst.msk [vmem:[%s827] sm:$0xff] %vm115, %v825
    %s829 = scalar_lea.vmem [#allocation2], 16
    %v830 = vld [vmem:[%s829] sm:$0xff]
    %s831 = scalar_lea.vmem [#allocation3], 40
    %v832 = vld [vmem:[%s831] sm:$0xff]
    %v833 = vsel %vm115, %v819, 0
    %835 = vmatprep.subr.mxu0 0.0
    %836 = vmatpush1.msra.mxu0 %v378
    %837 = vmatprep.subr.mxu0 0.0
    %838 = vmatpush1.msra.mxu0 %v379
    %839 = vmatprep.subr.mxu0 0.0
    %840 = vmatpush1.msra.mxu0 %v380
    %841 = vmatprep.subr.mxu0 0.0
    %842 = vmatpush1.msra.mxu0 %v381
    %843 = vmatprep.subr.mxu0 0.0
    %844 = vmatpush1.msra.mxu0 0.0
    %845 = vmatprep.subr.mxu0 0.0
    %846 = vmatpush1.msra.mxu0 0.0
    %847 = vmatprep.subr.mxu0 0.0
    %848 = vmatpush1.msra.mxu0 0.0
    %849 = vmatprep.subr.mxu0 0.0
    %850 = vmatpush1.msra.mxu0 0.0
    %851 = vmatprep.subr.mxu0 0.0
    %852 = vmatpush1.msra.mxu0 0.0
    %853 = vmatprep.subr.mxu0 0.0
    %854 = vmatpush1.msra.mxu0 0.0
    %855 = vmatprep.subr.mxu0 0.0
    %856 = vmatpush1.msra.mxu0 0.0
    %857 = vmatprep.subr.mxu0 0.0
    %858 = vmatpush1.msra.mxu0 0.0
    %859 = vmatprep.subr.mxu0 0.0
    %860 = vmatpush1.msra.mxu0 0.0
    %861 = vmatprep.subr.mxu0 0.0
    %862 = vmatpush1.msra.mxu0 0.0
    %863 = vmatprep.subr.mxu0 0.0
    %864 = vmatpush1.msra.mxu0 0.0
    %865 = vmatprep.subr.mxu0 0.0
    %866 = vmatpush1.msra.mxu0 0.0
    %867 = vmatprep.subr.mxu0 0.0
    %868 = vmatpush1.msra.mxu0 0.0
    %869 = vmatprep.subr.mxu0 0.0
    %870 = vmatpush1.msra.mxu0 0.0
    %871 = vmatprep.subr.mxu0 0.0
    %872 = vmatpush1.msra.mxu0 0.0
    %873 = vmatprep.subr.mxu0 0.0
    %874 = vmatpush1.msra.mxu0 0.0
    %875 = vmatprep.subr.mxu0 0.0
    %876 = vmatpush1.msra.mxu0 0.0
    %877 = vmatprep.subr.mxu0 0.0
    %878 = vmatpush1.msra.mxu0 0.0
    %879 = vmatprep.subr.mxu0 0.0
    %880 = vmatpush1.msra.mxu0 0.0
    %881 = vmatprep.subr.mxu0 0.0
    %882 = vmatpush1.msra.mxu0 0.0
    %883 = vmatprep.subr.mxu0 0.0
    %884 = vmatpush1.msra.mxu0 0.0
    %885 = vmatprep.subr.mxu0 0.0
    %886 = vmatpush1.msra.mxu0 0.0
    %887 = vmatprep.subr.mxu0 0.0
    %888 = vmatpush1.msra.mxu0 0.0
    %889 = vmatprep.subr.mxu0 0.0
    %890 = vmatpush1.msra.mxu0 0.0
    %891 = vmatprep.subr.mxu0 0.0
    %892 = vmatpush1.msra.mxu0 0.0
    %893 = vmatprep.subr.mxu0 0.0
    %894 = vmatpush1.msra.mxu0 0.0
    %895 = vmatprep.subr.mxu0 0.0
    %896 = vmatpush1.msra.mxu0 0.0
    %897 = vmatprep.subr.mxu0 0.0
    %898 = vmatpush1.msra.mxu0 0.0
    %899 = vmatprep.mubr.f32.mxu0 0.0
    %900 = vmatmul.mubr.f32.gmra.mrb[0].mxu0 %v833
    %v901 = vpop.f32.mrb[0].mxu0
    %v902 = vadd.f32 0.0, %v901
    %v903 = vpop.f32.mrb[0].mxu0
    %904 = vdwg.mxu0
    %v905 = vadd.f32 %v830, %v902
    %v906 = vxor.u32 %v905, 2147483648
    %v907 = vmul.f32 %v906, 1.442695
    %v908 = vpow.pop %v907
    %v909 = vadd.f32 %v908, 1.0
    %v910 = vrcp.pop %v909
    %v911 = vmul.f32 1.0, %v910
    %v912 = vadd.f32 %v902, %v482
    %914 = vrot.lane.b32.xlu0 %v912, 64
    %v915 = vpop.permute.xlu0 %914
    %v917 = vmul.f32 %v911, %v915
    %919 = vrot.lane.b32.xlu0 %v917, 64
    %v920 = vpop.permute.xlu0 %919
    %v922 = vadd.f32 %v830, %v920
    %v923 = vtanh.pop %v922
    %v924 = vsub.f32 1.0, %v911
    %926 = vrot.lane.b32.xlu0 %v923, 96
    %v927 = vpop.permute.xlu0 %926
    %v929 = vmul.f32 %v924, %v927
    %v930 = vmul.f32 %v911, %v717
    %v931 = vadd.f32 %v929, %v930
    %v932 = vsel %vm115, %v825, 0
    %934 = vmatprep.subr.mxu0 0.0
    %935 = vmatpush1.msra.mxu0 %v382
    %936 = vmatprep.subr.mxu0 0.0
    %937 = vmatpush1.msra.mxu0 %v383
    %938 = vmatprep.subr.mxu0 0.0
    %939 = vmatpush1.msra.mxu0 %v384
    %940 = vmatprep.subr.mxu0 0.0
    %941 = vmatpush1.msra.mxu0 %v385
    %942 = vmatprep.subr.mxu0 0.0
    %943 = vmatpush1.msra.mxu0 0.0
    %944 = vmatprep.subr.mxu0 0.0
    %945 = vmatpush1.msra.mxu0 0.0
    %946 = vmatprep.subr.mxu0 0.0
    %947 = vmatpush1.msra.mxu0 0.0
    %948 = vmatprep.subr.mxu0 0.0
    %949 = vmatpush1.msra.mxu0 0.0
    %950 = vmatprep.subr.mxu0 0.0
    %951 = vmatpush1.msra.mxu0 0.0
    %952 = vmatprep.subr.mxu0 0.0
    %953 = vmatpush1.msra.mxu0 0.0
    %954 = vmatprep.subr.mxu0 0.0
    %955 = vmatpush1.msra.mxu0 0.0
    %956 = vmatprep.subr.mxu0 0.0
    %957 = vmatpush1.msra.mxu0 0.0
    %958 = vmatprep.subr.mxu0 0.0
    %959 = vmatpush1.msra.mxu0 0.0
    %960 = vmatprep.subr.mxu0 0.0
    %961 = vmatpush1.msra.mxu0 0.0
    %962 = vmatprep.subr.mxu0 0.0
    %963 = vmatpush1.msra.mxu0 0.0
    %964 = vmatprep.subr.mxu0 0.0
    %965 = vmatpush1.msra.mxu0 0.0
    %966 = vmatprep.subr.mxu0 0.0
    %967 = vmatpush1.msra.mxu0 0.0
    %968 = vmatprep.subr.mxu0 0.0
    %969 = vmatpush1.msra.mxu0 0.0
    %970 = vmatprep.subr.mxu0 0.0
    %971 = vmatpush1.msra.mxu0 0.0
    %972 = vmatprep.subr.mxu0 0.0
    %973 = vmatpush1.msra.mxu0 0.0
    %974 = vmatprep.subr.mxu0 0.0
    %975 = vmatpush1.msra.mxu0 0.0
    %976 = vmatprep.subr.mxu0 0.0
    %977 = vmatpush1.msra.mxu0 0.0
    %978 = vmatprep.subr.mxu0 0.0
    %979 = vmatpush1.msra.mxu0 0.0
    %980 = vmatprep.subr.mxu0 0.0
    %981 = vmatpush1.msra.mxu0 0.0
    %982 = vmatprep.subr.mxu0 0.0
    %983 = vmatpush1.msra.mxu0 0.0
    %984 = vmatprep.subr.mxu0 0.0
    %985 = vmatpush1.msra.mxu0 0.0
    %986 = vmatprep.subr.mxu0 0.0
    %987 = vmatpush1.msra.mxu0 0.0
    %988 = vmatprep.subr.mxu0 0.0
    %989 = vmatpush1.msra.mxu0 0.0
    %990 = vmatprep.subr.mxu0 0.0
    %991 = vmatpush1.msra.mxu0 0.0
    %992 = vmatprep.subr.mxu0 0.0
    %993 = vmatpush1.msra.mxu0 0.0
    %994 = vmatprep.subr.mxu0 0.0
    %995 = vmatpush1.msra.mxu0 0.0
    %996 = vmatprep.subr.mxu0 0.0
    %997 = vmatpush1.msra.mxu0 0.0
    %998 = vmatprep.mubr.f32.mxu0 0.0
    %999 = vmatmul.mubr.f32.gmra.mrb[0].mxu0 %v932
    %v1000 = vpop.f32.mrb[0].mxu0
    %v1001 = vadd.f32 0.0, %v1000
    %v1002 = vpop.f32.mrb[0].mxu0
    %1003 = vdwg.mxu0
    %v1004 = vadd.f32 %v832, %v1001
    %v1005 = vxor.u32 %v1004, 2147483648
    %v1006 = vmul.f32 %v1005, 1.442695
    %v1007 = vpow.pop %v1006
    %v1008 = vadd.f32 %v1007, 1.0
    %v1009 = vrcp.pop %v1008
    %v1010 = vmul.f32 1.0, %v1009
    %v1011 = vadd.f32 %v1001, %v582
    %1013 = vrot.lane.b32.xlu0 %v1011, 64
    %v1014 = vpop.permute.xlu0 %1013
    %v1016 = vmul.f32 %v1010, %v1014
    %1018 = vrot.lane.b32.xlu0 %v1016, 64
    %v1019 = vpop.permute.xlu0 %1018
    %v1021 = vadd.f32 %v832, %v1019
    %v1022 = vtanh.pop %v1021
    %v1023 = vsub.f32 1.0, %v1010
    %1025 = vrot.lane.b32.xlu0 %v1022, 96
    %v1026 = vpop.permute.xlu0 %1025
    %v1028 = vmul.f32 %v1023, %v1026
    %v1029 = vmul.f32 %v1010, %v816
    %v1030 = vadd.f32 %v1028, %v1029
    %1032 = vrot.lane.b32.xlu0 %v931, 96
    %v1033 = vpop.permute.xlu0 %1032
    %s1035 = scalar_lea.vmem %s12, 16
    %1036 = vst.msk [vmem:[%s1035] sm:$0xff] %vm115, %v1033
    %1038 = vrot.lane.b32.xlu0 %v1030, 96
    %v1039 = vpop.permute.xlu0 %1038
    %s1041 = scalar_lea.vmem %s13, 40
    %1042 = vst.msk [vmem:[%s1041] sm:$0xff] %vm115, %v1039
    %s1043 = scalar_lea.vmem [#allocation2], 24
    %v1044 = vld [vmem:[%s1043] sm:$0xff]
    %s1045 = scalar_lea.vmem [#allocation3], 32
    %v1046 = vld [vmem:[%s1045] sm:$0xff]
    %v1047 = vsel %vm115, %v1033, 0
    %1049 = vmatprep.subr.mxu0 0.0
    %1050 = vmatpush1.msra.mxu0 %v378
    %1051 = vmatprep.subr.mxu0 0.0
    %1052 = vmatpush1.msra.mxu0 %v379
    %1053 = vmatprep.subr.mxu0 0.0
    %1054 = vmatpush1.msra.mxu0 %v380
    %1055 = vmatprep.subr.mxu0 0.0
    %1056 = vmatpush1.msra.mxu0 %v381
    %1057 = vmatprep.subr.mxu0 0.0
    %1058 = vmatpush1.msra.mxu0 0.0
    %1059 = vmatprep.subr.mxu0 0.0
    %1060 = vmatpush1.msra.mxu0 0.0
    %1061 = vmatprep.subr.mxu0 0.0
    %1062 = vmatpush1.msra.mxu0 0.0
    %1063 = vmatprep.subr.mxu0 0.0
    %1064 = vmatpush1.msra.mxu0 0.0
    %1065 = vmatprep.subr.mxu0 0.0
    %1066 = vmatpush1.msra.mxu0 0.0
    %1067 = vmatprep.subr.mxu0 0.0
    %1068 = vmatpush1.msra.mxu0 0.0
    %1069 = vmatprep.subr.mxu0 0.0
    %1070 = vmatpush1.msra.mxu0 0.0
    %1071 = vmatprep.subr.mxu0 0.0
    %1072 = vmatpush1.msra.mxu0 0.0
    %1073 = vmatprep.subr.mxu0 0.0
    %1074 = vmatpush1.msra.mxu0 0.0
    %1075 = vmatprep.subr.mxu0 0.0
    %1076 = vmatpush1.msra.mxu0 0.0
    %1077 = vmatprep.subr.mxu0 0.0
    %1078 = vmatpush1.msra.mxu0 0.0
    %1079 = vmatprep.subr.mxu0 0.0
    %1080 = vmatpush1.msra.mxu0 0.0
    %1081 = vmatprep.subr.mxu0 0.0
    %1082 = vmatpush1.msra.mxu0 0.0
    %1083 = vmatprep.subr.mxu0 0.0
    %1084 = vmatpush1.msra.mxu0 0.0
    %1085 = vmatprep.subr.mxu0 0.0
    %1086 = vmatpush1.msra.mxu0 0.0
    %1087 = vmatprep.subr.mxu0 0.0
    %1088 = vmatpush1.msra.mxu0 0.0
    %1089 = vmatprep.subr.mxu0 0.0
    %1090 = vmatpush1.msra.mxu0 0.0
    %1091 = vmatprep.subr.mxu0 0.0
    %1092 = vmatpush1.msra.mxu0 0.0
    %1093 = vmatprep.subr.mxu0 0.0
    %1094 = vmatpush1.msra.mxu0 0.0
    %1095 = vmatprep.subr.mxu0 0.0
    %1096 = vmatpush1.msra.mxu0 0.0
    %1097 = vmatprep.subr.mxu0 0.0
    %1098 = vmatpush1.msra.mxu0 0.0
    %1099 = vmatprep.subr.mxu0 0.0
    %1100 = vmatpush1.msra.mxu0 0.0
    %1101 = vmatprep.subr.mxu0 0.0
    %1102 = vmatpush1.msra.mxu0 0.0
    %1103 = vmatprep.subr.mxu0 0.0
    %1104 = vmatpush1.msra.mxu0 0.0
    %1105 = vmatprep.subr.mxu0 0.0
    %1106 = vmatpush1.msra.mxu0 0.0
    %1107 = vmatprep.subr.mxu0 0.0
    %1108 = vmatpush1.msra.mxu0 0.0
    %1109 = vmatprep.subr.mxu0 0.0
    %1110 = vmatpush1.msra.mxu0 0.0
    %1111 = vmatprep.subr.mxu0 0.0
    %1112 = vmatpush1.msra.mxu0 0.0
    %1113 = vmatprep.mubr.f32.mxu0 0.0
    %1114 = vmatmul.mubr.f32.gmra.mrb[0].mxu0 %v1047
    %v1115 = vpop.f32.mrb[0].mxu0
    %v1116 = vadd.f32 0.0, %v1115
    %v1117 = vpop.f32.mrb[0].mxu0
    %1118 = vdwg.mxu0
    %v1119 = vadd.f32 %v1044, %v1116
    %v1120 = vxor.u32 %v1119, 2147483648
    %v1121 = vmul.f32 %v1120, 1.442695
    %v1122 = vpow.pop %v1121
    %v1123 = vadd.f32 %v1122, 1.0
    %v1124 = vrcp.pop %v1123
    %v1125 = vmul.f32 1.0, %v1124
    %v1126 = vadd.f32 %v1116, %v482
    %1128 = vrot.lane.b32.xlu0 %v1126, 64
    %v1129 = vpop.permute.xlu0 %1128
    %v1131 = vmul.f32 %v1125, %v1129
    %1133 = vrot.lane.b32.xlu0 %v1131, 64
    %v1134 = vpop.permute.xlu0 %1133
    %v1136 = vadd.f32 %v1044, %v1134
    %v1137 = vtanh.pop %v1136
    %v1138 = vsub.f32 1.0, %v1125
    %1140 = vrot.lane.b32.xlu0 %v1137, 96
    %v1141 = vpop.permute.xlu0 %1140
    %v1143 = vmul.f32 %v1138, %v1141
    %v1144 = vmul.f32 %v1125, %v931
    %v1145 = vadd.f32 %v1143, %v1144
    %v1146 = vsel %vm115, %v1039, 0
    %1148 = vmatprep.subr.mxu0 0.0
    %1149 = vmatpush1.msra.mxu0 %v382
    %1150 = vmatprep.subr.mxu0 0.0
    %1151 = vmatpush1.msra.mxu0 %v383
    %1152 = vmatprep.subr.mxu0 0.0
    %1153 = vmatpush1.msra.mxu0 %v384
    %1154 = vmatprep.subr.mxu0 0.0
    %1155 = vmatpush1.msra.mxu0 %v385
    %1156 = vmatprep.subr.mxu0 0.0
    %1157 = vmatpush1.msra.mxu0 0.0
    %1158 = vmatprep.subr.mxu0 0.0
    %1159 = vmatpush1.msra.mxu0 0.0
    %1160 = vmatprep.subr.mxu0 0.0
    %1161 = vmatpush1.msra.mxu0 0.0
    %1162 = vmatprep.subr.mxu0 0.0
    %1163 = vmatpush1.msra.mxu0 0.0
    %1164 = vmatprep.subr.mxu0 0.0
    %1165 = vmatpush1.msra.mxu0 0.0
    %1166 = vmatprep.subr.mxu0 0.0
    %1167 = vmatpush1.msra.mxu0 0.0
    %1168 = vmatprep.subr.mxu0 0.0
    %1169 = vmatpush1.msra.mxu0 0.0
    %1170 = vmatprep.subr.mxu0 0.0
    %1171 = vmatpush1.msra.mxu0 0.0
    %1172 = vmatprep.subr.mxu0 0.0
    %1173 = vmatpush1.msra.mxu0 0.0
    %1174 = vmatprep.subr.mxu0 0.0
    %1175 = vmatpush1.msra.mxu0 0.0
    %1176 = vmatprep.subr.mxu0 0.0
    %1177 = vmatpush1.msra.mxu0 0.0
    %1178 = vmatprep.subr.mxu0 0.0
    %1179 = vmatpush1.msra.mxu0 0.0
    %1180 = vmatprep.subr.mxu0 0.0
    %1181 = vmatpush1.msra.mxu0 0.0
    %1182 = vmatprep.subr.mxu0 0.0
    %1183 = vmatpush1.msra.mxu0 0.0
    %1184 = vmatprep.subr.mxu0 0.0
    %1185 = vmatpush1.msra.mxu0 0.0
    %1186 = vmatprep.subr.mxu0 0.0
    %1187 = vmatpush1.msra.mxu0 0.0
    %1188 = vmatprep.subr.mxu0 0.0
    %1189 = vmatpush1.msra.mxu0 0.0
    %1190 = vmatprep.subr.mxu0 0.0
    %1191 = vmatpush1.msra.mxu0 0.0
    %1192 = vmatprep.subr.mxu0 0.0
    %1193 = vmatpush1.msra.mxu0 0.0
    %1194 = vmatprep.subr.mxu0 0.0
    %1195 = vmatpush1.msra.mxu0 0.0
    %1196 = vmatprep.subr.mxu0 0.0
    %1197 = vmatpush1.msra.mxu0 0.0
    %1198 = vmatprep.subr.mxu0 0.0
    %1199 = vmatpush1.msra.mxu0 0.0
    %1200 = vmatprep.subr.mxu0 0.0
    %1201 = vmatpush1.msra.mxu0 0.0
    %1202 = vmatprep.subr.mxu0 0.0
    %1203 = vmatpush1.msra.mxu0 0.0
    %1204 = vmatprep.subr.mxu0 0.0
    %1205 = vmatpush1.msra.mxu0 0.0
    %1206 = vmatprep.subr.mxu0 0.0
    %1207 = vmatpush1.msra.mxu0 0.0
    %1208 = vmatprep.subr.mxu0 0.0
    %1209 = vmatpush1.msra.mxu0 0.0
    %1210 = vmatprep.subr.mxu0 0.0
    %1211 = vmatpush1.msra.mxu0 0.0
    %1212 = vmatprep.mubr.f32.mxu0 0.0
    %1213 = vmatmul.mubr.f32.gmra.mrb[0].mxu0 %v1146
    %v1214 = vpop.f32.mrb[0].mxu0
    %v1215 = vadd.f32 0.0, %v1214
    %v1216 = vpop.f32.mrb[0].mxu0
    %1217 = vdwg.mxu0
    %v1218 = vadd.f32 %v1046, %v1215
    %v1219 = vxor.u32 %v1218, 2147483648
    %v1220 = vmul.f32 %v1219, 1.442695
    %v1221 = vpow.pop %v1220
    %v1222 = vadd.f32 %v1221, 1.0
    %v1223 = vrcp.pop %v1222
    %v1224 = vmul.f32 1.0, %v1223
    %v1225 = vadd.f32 %v1215, %v582
    %1227 = vrot.lane.b32.xlu0 %v1225, 64
    %v1228 = vpop.permute.xlu0 %1227
    %v1230 = vmul.f32 %v1224, %v1228
    %1232 = vrot.lane.b32.xlu0 %v1230, 64
    %v1233 = vpop.permute.xlu0 %1232
    %v1235 = vadd.f32 %v1046, %v1233
    %v1236 = vtanh.pop %v1235
    %v1237 = vsub.f32 1.0, %v1224
    %1239 = vrot.lane.b32.xlu0 %v1236, 96
    %v1240 = vpop.permute.xlu0 %1239
    %v1242 = vmul.f32 %v1237, %v1240
    %v1243 = vmul.f32 %v1224, %v1030
    %v1244 = vadd.f32 %v1242, %v1243
    %1246 = vrot.lane.b32.xlu0 %v1145, 96
    %v1247 = vpop.permute.xlu0 %1246
    %s1249 = scalar_lea.vmem %s12, 24
    %1250 = vst.msk [vmem:[%s1249] sm:$0xff] %vm115, %v1247
    %1252 = vrot.lane.b32.xlu0 %v1244, 96
    %v1253 = vpop.permute.xlu0 %1252
    %s1255 = scalar_lea.vmem %s13, 32
    %1256 = vst.msk [vmem:[%s1255] sm:$0xff] %vm115, %v1253
    %s1257 = scalar_lea.vmem [#allocation2], 32
    %v1258 = vld [vmem:[%s1257] sm:$0xff]
    %s1259 = scalar_lea.vmem [#allocation3], 24
    %v1260 = vld [vmem:[%s1259] sm:$0xff]
    %v1261 = vsel %vm115, %v1247, 0
    %1263 = vmatprep.subr.mxu0 0.0
    %1264 = vmatpush1.msra.mxu0 %v378
    %1265 = vmatprep.subr.mxu0 0.0
    %1266 = vmatpush1.msra.mxu0 %v379
    %1267 = vmatprep.subr.mxu0 0.0
    %1268 = vmatpush1.msra.mxu0 %v380
    %1269 = vmatprep.subr.mxu0 0.0
    %1270 = vmatpush1.msra.mxu0 %v381
    %1271 = vmatprep.subr.mxu0 0.0
    %1272 = vmatpush1.msra.mxu0 0.0
    %1273 = vmatprep.subr.mxu0 0.0
    %1274 = vmatpush1.msra.mxu0 0.0
    %1275 = vmatprep.subr.mxu0 0.0
    %1276 = vmatpush1.msra.mxu0 0.0
    %1277 = vmatprep.subr.mxu0 0.0
    %1278 = vmatpush1.msra.mxu0 0.0
    %1279 = vmatprep.subr.mxu0 0.0
    %1280 = vmatpush1.msra.mxu0 0.0
    %1281 = vmatprep.subr.mxu0 0.0
    %1282 = vmatpush1.msra.mxu0 0.0
    %1283 = vmatprep.subr.mxu0 0.0
    %1284 = vmatpush1.msra.mxu0 0.0
    %1285 = vmatprep.subr.mxu0 0.0
    %1286 = vmatpush1.msra.mxu0 0.0
    %1287 = vmatprep.subr.mxu0 0.0
    %1288 = vmatpush1.msra.mxu0 0.0
    %1289 = vmatprep.subr.mxu0 0.0
    %1290 = vmatpush1.msra.mxu0 0.0
    %1291 = vmatprep.subr.mxu0 0.0
    %1292 = vmatpush1.msra.mxu0 0.0
    %1293 = vmatprep.subr.mxu0 0.0
    %1294 = vmatpush1.msra.mxu0 0.0
    %1295 = vmatprep.subr.mxu0 0.0
    %1296 = vmatpush1.msra.mxu0 0.0
    %1297 = vmatprep.subr.mxu0 0.0
    %1298 = vmatpush1.msra.mxu0 0.0
    %1299 = vmatprep.subr.mxu0 0.0
    %1300 = vmatpush1.msra.mxu0 0.0
    %1301 = vmatprep.subr.mxu0 0.0
    %1302 = vmatpush1.msra.mxu0 0.0
    %1303 = vmatprep.subr.mxu0 0.0
    %1304 = vmatpush1.msra.mxu0 0.0
    %1305 = vmatprep.subr.mxu0 0.0
    %1306 = vmatpush1.msra.mxu0 0.0
    %1307 = vmatprep.subr.mxu0 0.0
    %1308 = vmatpush1.msra.mxu0 0.0
    %1309 = vmatprep.subr.mxu0 0.0
    %1310 = vmatpush1.msra.mxu0 0.0
    %1311 = vmatprep.subr.mxu0 0.0
    %1312 = vmatpush1.msra.mxu0 0.0
    %1313 = vmatprep.subr.mxu0 0.0
    %1314 = vmatpush1.msra.mxu0 0.0
    %1315 = vmatprep.subr.mxu0 0.0
    %1316 = vmatpush1.msra.mxu0 0.0
    %1317 = vmatprep.subr.mxu0 0.0
    %1318 = vmatpush1.msra.mxu0 0.0
    %1319 = vmatprep.subr.mxu0 0.0
    %1320 = vmatpush1.msra.mxu0 0.0
    %1321 = vmatprep.subr.mxu0 0.0
    %1322 = vmatpush1.msra.mxu0 0.0
    %1323 = vmatprep.subr.mxu0 0.0
    %1324 = vmatpush1.msra.mxu0 0.0
    %1325 = vmatprep.subr.mxu0 0.0
    %1326 = vmatpush1.msra.mxu0 0.0
    %1327 = vmatprep.mubr.f32.mxu0 0.0
    %1328 = vmatmul.mubr.f32.gmra.mrb[0].mxu0 %v1261
    %v1329 = vpop.f32.mrb[0].mxu0
    %v1330 = vadd.f32 0.0, %v1329
    %v1331 = vpop.f32.mrb[0].mxu0
    %1332 = vdwg.mxu0
    %v1333 = vadd.f32 %v1258, %v1330
    %v1334 = vxor.u32 %v1333, 2147483648
    %v1335 = vmul.f32 %v1334, 1.442695
    %v1336 = vpow.pop %v1335
    %v1337 = vadd.f32 %v1336, 1.0
    %v1338 = vrcp.pop %v1337
    %v1339 = vmul.f32 1.0, %v1338
    %v1340 = vadd.f32 %v1330, %v482
    %1342 = vrot.lane.b32.xlu0 %v1340, 64
    %v1343 = vpop.permute.xlu0 %1342
    %v1345 = vmul.f32 %v1339, %v1343
    %1347 = vrot.lane.b32.xlu0 %v1345, 64
    %v1348 = vpop.permute.xlu0 %1347
    %v1350 = vadd.f32 %v1258, %v1348
    %v1351 = vtanh.pop %v1350
    %v1352 = vsub.f32 1.0, %v1339
    %1354 = vrot.lane.b32.xlu0 %v1351, 96
    %v1355 = vpop.permute.xlu0 %1354
    %v1357 = vmul.f32 %v1352, %v1355
    %v1358 = vmul.f32 %v1339, %v1145
    %v1359 = vadd.f32 %v1357, %v1358
    %v1360 = vsel %vm115, %v1253, 0
    %1362 = vmatprep.subr.mxu0 0.0
    %1363 = vmatpush1.msra.mxu0 %v382
    %1364 = vmatprep.subr.mxu0 0.0
    %1365 = vmatpush1.msra.mxu0 %v383
    %1366 = vmatprep.subr.mxu0 0.0
    %1367 = vmatpush1.msra.mxu0 %v384
    %1368 = vmatprep.subr.mxu0 0.0
    %1369 = vmatpush1.msra.mxu0 %v385
    %1370 = vmatprep.subr.mxu0 0.0
    %1371 = vmatpush1.msra.mxu0 0.0
    %1372 = vmatprep.subr.mxu0 0.0
    %1373 = vmatpush1.msra.mxu0 0.0
    %1374 = vmatprep.subr.mxu0 0.0
    %1375 = vmatpush1.msra.mxu0 0.0
    %1376 = vmatprep.subr.mxu0 0.0
    %1377 = vmatpush1.msra.mxu0 0.0
    %1378 = vmatprep.subr.mxu0 0.0
    %1379 = vmatpush1.msra.mxu0 0.0
    %1380 = vmatprep.subr.mxu0 0.0
    %1381 = vmatpush1.msra.mxu0 0.0
    %1382 = vmatprep.subr.mxu0 0.0
    %1383 = vmatpush1.msra.mxu0 0.0
    %1384 = vmatprep.subr.mxu0 0.0
    %1385 = vmatpush1.msra.mxu0 0.0
    %1386 = vmatprep.subr.mxu0 0.0
    %1387 = vmatpush1.msra.mxu0 0.0
    %1388 = vmatprep.subr.mxu0 0.0
    %1389 = vmatpush1.msra.mxu0 0.0
    %1390 = vmatprep.subr.mxu0 0.0
    %1391 = vmatpush1.msra.mxu0 0.0
    %1392 = vmatprep.subr.mxu0 0.0
    %1393 = vmatpush1.msra.mxu0 0.0
    %1394 = vmatprep.subr.mxu0 0.0
    %1395 = vmatpush1.msra.mxu0 0.0
    %1396 = vmatprep.subr.mxu0 0.0
    %1397 = vmatpush1.msra.mxu0 0.0
    %1398 = vmatprep.subr.mxu0 0.0
    %1399 = vmatpush1.msra.mxu0 0.0
    %1400 = vmatprep.subr.mxu0 0.0
    %1401 = vmatpush1.msra.mxu0 0.0
    %1402 = vmatprep.subr.mxu0 0.0
    %1403 = vmatpush1.msra.mxu0 0.0
    %1404 = vmatprep.subr.mxu0 0.0
    %1405 = vmatpush1.msra.mxu0 0.0
    %1406 = vmatprep.subr.mxu0 0.0
    %1407 = vmatpush1.msra.mxu0 0.0
    %1408 = vmatprep.subr.mxu0 0.0
    %1409 = vmatpush1.msra.mxu0 0.0
    %1410 = vmatprep.subr.mxu0 0.0
    %1411 = vmatpush1.msra.mxu0 0.0
    %1412 = vmatprep.subr.mxu0 0.0
    %1413 = vmatpush1.msra.mxu0 0.0
    %1414 = vmatprep.subr.mxu0 0.0
    %1415 = vmatpush1.msra.mxu0 0.0
    %1416 = vmatprep.subr.mxu0 0.0
    %1417 = vmatpush1.msra.mxu0 0.0
    %1418 = vmatprep.subr.mxu0 0.0
    %1419 = vmatpush1.msra.mxu0 0.0
    %1420 = vmatprep.subr.mxu0 0.0
    %1421 = vmatpush1.msra.mxu0 0.0
    %1422 = vmatprep.subr.mxu0 0.0
    %1423 = vmatpush1.msra.mxu0 0.0
    %1424 = vmatprep.subr.mxu0 0.0
    %1425 = vmatpush1.msra.mxu0 0.0
    %1426 = vmatprep.mubr.f32.mxu0 0.0
    %1427 = vmatmul.mubr.f32.gmra.mrb[0].mxu0 %v1360
    %v1428 = vpop.f32.mrb[0].mxu0
    %v1429 = vadd.f32 0.0, %v1428
    %v1430 = vpop.f32.mrb[0].mxu0
    %1431 = vdwg.mxu0
    %v1432 = vadd.f32 %v1260, %v1429
    %v1433 = vxor.u32 %v1432, 2147483648
    %v1434 = vmul.f32 %v1433, 1.442695
    %v1435 = vpow.pop %v1434
    %v1436 = vadd.f32 %v1435, 1.0
    %v1437 = vrcp.pop %v1436
    %v1438 = vmul.f32 1.0, %v1437
    %v1439 = vadd.f32 %v1429, %v582
    %1441 = vrot.lane.b32.xlu0 %v1439, 64
    %v1442 = vpop.permute.xlu0 %1441
    %v1444 = vmul.f32 %v1438, %v1442
    %1446 = vrot.lane.b32.xlu0 %v1444, 64
    %v1447 = vpop.permute.xlu0 %1446
    %v1449 = vadd.f32 %v1260, %v1447
    %v1450 = vtanh.pop %v1449
    %v1451 = vsub.f32 1.0, %v1438
    %1453 = vrot.lane.b32.xlu0 %v1450, 96
    %v1454 = vpop.permute.xlu0 %1453
    %v1456 = vmul.f32 %v1451, %v1454
    %v1457 = vmul.f32 %v1438, %v1244
    %v1458 = vadd.f32 %v1456, %v1457
    %1460 = vrot.lane.b32.xlu0 %v1359, 96
    %v1461 = vpop.permute.xlu0 %1460
    %s1463 = scalar_lea.vmem %s12, 32
    %1464 = vst.msk [vmem:[%s1463] sm:$0xff] %vm115, %v1461
    %1466 = vrot.lane.b32.xlu0 %v1458, 96
    %v1467 = vpop.permute.xlu0 %1466
    %s1469 = scalar_lea.vmem %s13, 24
    %1470 = vst.msk [vmem:[%s1469] sm:$0xff] %vm115, %v1467
    %s1471 = scalar_lea.vmem [#allocation2], 40
    %v1472 = vld [vmem:[%s1471] sm:$0xff]
    %s1473 = scalar_lea.vmem [#allocation3], 16
    %v1474 = vld [vmem:[%s1473] sm:$0xff]
    %v1475 = vsel %vm115, %v1461, 0
    %1477 = vmatprep.subr.mxu0 0.0
    %1478 = vmatpush1.msra.mxu0 %v378
    %1479 = vmatprep.subr.mxu0 0.0
    %1480 = vmatpush1.msra.mxu0 %v379
    %1481 = vmatprep.subr.mxu0 0.0
    %1482 = vmatpush1.msra.mxu0 %v380
    %1483 = vmatprep.subr.mxu0 0.0
    %1484 = vmatpush1.msra.mxu0 %v381
    %1485 = vmatprep.subr.mxu0 0.0
    %1486 = vmatpush1.msra.mxu0 0.0
    %1487 = vmatprep.subr.mxu0 0.0
    %1488 = vmatpush1.msra.mxu0 0.0
    %1489 = vmatprep.subr.mxu0 0.0
    %1490 = vmatpush1.msra.mxu0 0.0
    %1491 = vmatprep.subr.mxu0 0.0
    %1492 = vmatpush1.msra.mxu0 0.0
    %1493 = vmatprep.subr.mxu0 0.0
    %1494 = vmatpush1.msra.mxu0 0.0
    %1495 = vmatprep.subr.mxu0 0.0
    %1496 = vmatpush1.msra.mxu0 0.0
    %1497 = vmatprep.subr.mxu0 0.0
    %1498 = vmatpush1.msra.mxu0 0.0
    %1499 = vmatprep.subr.mxu0 0.0
    %1500 = vmatpush1.msra.mxu0 0.0
    %1501 = vmatprep.subr.mxu0 0.0
    %1502 = vmatpush1.msra.mxu0 0.0
    %1503 = vmatprep.subr.mxu0 0.0
    %1504 = vmatpush1.msra.mxu0 0.0
    %1505 = vmatprep.subr.mxu0 0.0
    %1506 = vmatpush1.msra.mxu0 0.0
    %1507 = vmatprep.subr.mxu0 0.0
    %1508 = vmatpush1.msra.mxu0 0.0
    %1509 = vmatprep.subr.mxu0 0.0
    %1510 = vmatpush1.msra.mxu0 0.0
    %1511 = vmatprep.subr.mxu0 0.0
    %1512 = vmatpush1.msra.mxu0 0.0
    %1513 = vmatprep.subr.mxu0 0.0
    %1514 = vmatpush1.msra.mxu0 0.0
    %1515 = vmatprep.subr.mxu0 0.0
    %1516 = vmatpush1.msra.mxu0 0.0
    %1517 = vmatprep.subr.mxu0 0.0
    %1518 = vmatpush1.msra.mxu0 0.0
    %1519 = vmatprep.subr.mxu0 0.0
    %1520 = vmatpush1.msra.mxu0 0.0
    %1521 = vmatprep.subr.mxu0 0.0
    %1522 = vmatpush1.msra.mxu0 0.0
    %1523 = vmatprep.subr.mxu0 0.0
    %1524 = vmatpush1.msra.mxu0 0.0
    %1525 = vmatprep.subr.mxu0 0.0
    %1526 = vmatpush1.msra.mxu0 0.0
    %1527 = vmatprep.subr.mxu0 0.0
    %1528 = vmatpush1.msra.mxu0 0.0
    %1529 = vmatprep.subr.mxu0 0.0
    %1530 = vmatpush1.msra.mxu0 0.0
    %1531 = vmatprep.subr.mxu0 0.0
    %1532 = vmatpush1.msra.mxu0 0.0
    %1533 = vmatprep.subr.mxu0 0.0
    %1534 = vmatpush1.msra.mxu0 0.0
    %1535 = vmatprep.subr.mxu0 0.0
    %1536 = vmatpush1.msra.mxu0 0.0
    %1537 = vmatprep.subr.mxu0 0.0
    %1538 = vmatpush1.msra.mxu0 0.0
    %1539 = vmatprep.subr.mxu0 0.0
    %1540 = vmatpush1.msra.mxu0 0.0
    %1541 = vmatprep.mubr.f32.mxu0 0.0
    %1542 = vmatmul.mubr.f32.gmra.mrb[0].mxu0 %v1475
    %v1543 = vpop.f32.mrb[0].mxu0
    %v1544 = vadd.f32 0.0, %v1543
    %v1545 = vpop.f32.mrb[0].mxu0
    %1546 = vdwg.mxu0
    %v1547 = vadd.f32 %v1472, %v1544
    %v1548 = vxor.u32 %v1547, 2147483648
    %v1549 = vmul.f32 %v1548, 1.442695
    %v1550 = vpow.pop %v1549
    %v1551 = vadd.f32 %v1550, 1.0
    %v1552 = vrcp.pop %v1551
    %v1553 = vmul.f32 1.0, %v1552
    %v1554 = vadd.f32 %v1544, %v482
    %1556 = vrot.lane.b32.xlu0 %v1554, 64
    %v1557 = vpop.permute.xlu0 %1556
    %v1559 = vmul.f32 %v1553, %v1557
    %1561 = vrot.lane.b32.xlu0 %v1559, 64
    %v1562 = vpop.permute.xlu0 %1561
    %v1564 = vadd.f32 %v1472, %v1562
    %v1565 = vtanh.pop %v1564
    %v1566 = vsub.f32 1.0, %v1553
    %1568 = vrot.lane.b32.xlu0 %v1565, 96
    %v1569 = vpop.permute.xlu0 %1568
    %v1571 = vmul.f32 %v1566, %v1569
    %v1572 = vmul.f32 %v1553, %v1359
    %v1573 = vadd.f32 %v1571, %v1572
    %v1574 = vsel %vm115, %v1467, 0
    %1576 = vmatprep.subr.mxu0 0.0
    %1577 = vmatpush1.msra.mxu0 %v382
    %1578 = vmatprep.subr.mxu0 0.0
    %1579 = vmatpush1.msra.mxu0 %v383
    %1580 = vmatprep.subr.mxu0 0.0
    %1581 = vmatpush1.msra.mxu0 %v384
    %1582 = vmatprep.subr.mxu0 0.0
    %1583 = vmatpush1.msra.mxu0 %v385
    %1584 = vmatprep.subr.mxu0 0.0
    %1585 = vmatpush1.msra.mxu0 0.0
    %1586 = vmatprep.subr.mxu0 0.0
    %1587 = vmatpush1.msra.mxu0 0.0
    %1588 = vmatprep.subr.mxu0 0.0
    %1589 = vmatpush1.msra.mxu0 0.0
    %1590 = vmatprep.subr.mxu0 0.0
    %1591 = vmatpush1.msra.mxu0 0.0
    %1592 = vmatprep.subr.mxu0 0.0
    %1593 = vmatpush1.msra.mxu0 0.0
    %1594 = vmatprep.subr.mxu0 0.0
    %1595 = vmatpush1.msra.mxu0 0.0
    %1596 = vmatprep.subr.mxu0 0.0
    %1597 = vmatpush1.msra.mxu0 0.0
    %1598 = vmatprep.subr.mxu0 0.0
    %1599 = vmatpush1.msra.mxu0 0.0
    %1600 = vmatprep.subr.mxu0 0.0
    %1601 = vmatpush1.msra.mxu0 0.0
    %1602 = vmatprep.subr.mxu0 0.0
    %1603 = vmatpush1.msra.mxu0 0.0
    %1604 = vmatprep.subr.mxu0 0.0
    %1605 = vmatpush1.msra.mxu0 0.0
    %1606 = vmatprep.subr.mxu0 0.0
    %1607 = vmatpush1.msra.mxu0 0.0
    %1608 = vmatprep.subr.mxu0 0.0
    %1609 = vmatpush1.msra.mxu0 0.0
    %1610 = vmatprep.subr.mxu0 0.0
    %1611 = vmatpush1.msra.mxu0 0.0
    %1612 = vmatprep.subr.mxu0 0.0
    %1613 = vmatpush1.msra.mxu0 0.0
    %1614 = vmatprep.subr.mxu0 0.0
    %1615 = vmatpush1.msra.mxu0 0.0
    %1616 = vmatprep.subr.mxu0 0.0
    %1617 = vmatpush1.msra.mxu0 0.0
    %1618 = vmatprep.subr.mxu0 0.0
    %1619 = vmatpush1.msra.mxu0 0.0
    %1620 = vmatprep.subr.mxu0 0.0
    %1621 = vmatpush1.msra.mxu0 0.0
    %1622 = vmatprep.subr.mxu0 0.0
    %1623 = vmatpush1.msra.mxu0 0.0
    %1624 = vmatprep.subr.mxu0 0.0
    %1625 = vmatpush1.msra.mxu0 0.0
    %1626 = vmatprep.subr.mxu0 0.0
    %1627 = vmatpush1.msra.mxu0 0.0
    %1628 = vmatprep.subr.mxu0 0.0
    %1629 = vmatpush1.msra.mxu0 0.0
    %1630 = vmatprep.subr.mxu0 0.0
    %1631 = vmatpush1.msra.mxu0 0.0
    %1632 = vmatprep.subr.mxu0 0.0
    %1633 = vmatpush1.msra.mxu0 0.0
    %1634 = vmatprep.subr.mxu0 0.0
    %1635 = vmatpush1.msra.mxu0 0.0
    %1636 = vmatprep.subr.mxu0 0.0
    %1637 = vmatpush1.msra.mxu0 0.0
    %1638 = vmatprep.subr.mxu0 0.0
    %1639 = vmatpush1.msra.mxu0 0.0
    %1640 = vmatprep.mubr.f32.mxu0 0.0
    %1641 = vmatmul.mubr.f32.gmra.mrb[0].mxu0 %v1574
    %v1642 = vpop.f32.mrb[0].mxu0
    %v1643 = vadd.f32 0.0, %v1642
    %v1644 = vpop.f32.mrb[0].mxu0
    %1645 = vdwg.mxu0
    %v1646 = vadd.f32 %v1474, %v1643
    %v1647 = vxor.u32 %v1646, 2147483648
    %v1648 = vmul.f32 %v1647, 1.442695
    %v1649 = vpow.pop %v1648
    %v1650 = vadd.f32 %v1649, 1.0
    %v1651 = vrcp.pop %v1650
    %v1652 = vmul.f32 1.0, %v1651
    %v1653 = vadd.f32 %v1643, %v582
    %1655 = vrot.lane.b32.xlu0 %v1653, 64
    %v1656 = vpop.permute.xlu0 %1655
    %v1658 = vmul.f32 %v1652, %v1656
    %1660 = vrot.lane.b32.xlu0 %v1658, 64
    %v1661 = vpop.permute.xlu0 %1660
    %v1663 = vadd.f32 %v1474, %v1661
    %v1664 = vtanh.pop %v1663
    %v1665 = vsub.f32 1.0, %v1652
    %1667 = vrot.lane.b32.xlu0 %v1664, 96
    %v1668 = vpop.permute.xlu0 %1667
    %v1670 = vmul.f32 %v1665, %v1668
    %v1671 = vmul.f32 %v1652, %v1458
    %v1672 = vadd.f32 %v1670, %v1671
    %1674 = vrot.lane.b32.xlu0 %v1573, 96
    %v1675 = vpop.permute.xlu0 %1674
    %s1677 = scalar_lea.vmem %s12, 40
    %1678 = vst.msk [vmem:[%s1677] sm:$0xff] %vm115, %v1675
    %1680 = vrot.lane.b32.xlu0 %v1672, 96
    %v1681 = vpop.permute.xlu0 %1680
    %s1683 = scalar_lea.vmem %s13, 16
    %1684 = vst.msk [vmem:[%s1683] sm:$0xff] %vm115, %v1681
    %s1685 = scalar_lea.vmem [#allocation2], 48
    %v1686 = vld [vmem:[%s1685] sm:$0xff]
    %s1687 = scalar_lea.vmem [#allocation3], 8
    %v1688 = vld [vmem:[%s1687] sm:$0xff]
    %v1689 = vsel %vm115, %v1675, 0
    %1691 = vmatprep.subr.mxu0 0.0
    %1692 = vmatpush1.msra.mxu0 %v378
    %1693 = vmatprep.subr.mxu0 0.0
    %1694 = vmatpush1.msra.mxu0 %v379
    %1695 = vmatprep.subr.mxu0 0.0
    %1696 = vmatpush1.msra.mxu0 %v380
    %1697 = vmatprep.subr.mxu0 0.0
    %1698 = vmatpush1.msra.mxu0 %v381
    %1699 = vmatprep.subr.mxu0 0.0
    %1700 = vmatpush1.msra.mxu0 0.0
    %1701 = vmatprep.subr.mxu0 0.0
    %1702 = vmatpush1.msra.mxu0 0.0
    %1703 = vmatprep.subr.mxu0 0.0
    %1704 = vmatpush1.msra.mxu0 0.0
    %1705 = vmatprep.subr.mxu0 0.0
    %1706 = vmatpush1.msra.mxu0 0.0
    %1707 = vmatprep.subr.mxu0 0.0
    %1708 = vmatpush1.msra.mxu0 0.0
    %1709 = vmatprep.subr.mxu0 0.0
    %1710 = vmatpush1.msra.mxu0 0.0
    %1711 = vmatprep.subr.mxu0 0.0
    %1712 = vmatpush1.msra.mxu0 0.0
    %1713 = vmatprep.subr.mxu0 0.0
    %1714 = vmatpush1.msra.mxu0 0.0
    %1715 = vmatprep.subr.mxu0 0.0
    %1716 = vmatpush1.msra.mxu0 0.0
    %1717 = vmatprep.subr.mxu0 0.0
    %1718 = vmatpush1.msra.mxu0 0.0
    %1719 = vmatprep.subr.mxu0 0.0
    %1720 = vmatpush1.msra.mxu0 0.0
    %1721 = vmatprep.subr.mxu0 0.0
    %1722 = vmatpush1.msra.mxu0 0.0
    %1723 = vmatprep.subr.mxu0 0.0
    %1724 = vmatpush1.msra.mxu0 0.0
    %1725 = vmatprep.subr.mxu0 0.0
    %1726 = vmatpush1.msra.mxu0 0.0
    %1727 = vmatprep.subr.mxu0 0.0
    %1728 = vmatpush1.msra.mxu0 0.0
    %1729 = vmatprep.subr.mxu0 0.0
    %1730 = vmatpush1.msra.mxu0 0.0
    %1731 = vmatprep.subr.mxu0 0.0
    %1732 = vmatpush1.msra.mxu0 0.0
    %1733 = vmatprep.subr.mxu0 0.0
    %1734 = vmatpush1.msra.mxu0 0.0
    %1735 = vmatprep.subr.mxu0 0.0
    %1736 = vmatpush1.msra.mxu0 0.0
    %1737 = vmatprep.subr.mxu0 0.0
    %1738 = vmatpush1.msra.mxu0 0.0
    %1739 = vmatprep.subr.mxu0 0.0
    %1740 = vmatpush1.msra.mxu0 0.0
    %1741 = vmatprep.subr.mxu0 0.0
    %1742 = vmatpush1.msra.mxu0 0.0
    %1743 = vmatprep.subr.mxu0 0.0
    %1744 = vmatpush1.msra.mxu0 0.0
    %1745 = vmatprep.subr.mxu0 0.0
    %1746 = vmatpush1.msra.mxu0 0.0
    %1747 = vmatprep.subr.mxu0 0.0
    %1748 = vmatpush1.msra.mxu0 0.0
    %1749 = vmatprep.subr.mxu0 0.0
    %1750 = vmatpush1.msra.mxu0 0.0
    %1751 = vmatprep.subr.mxu0 0.0
    %1752 = vmatpush1.msra.mxu0 0.0
    %1753 = vmatprep.subr.mxu0 0.0
    %1754 = vmatpush1.msra.mxu0 0.0
    %1755 = vmatprep.mubr.f32.mxu0 0.0
    %1756 = vmatmul.mubr.f32.gmra.mrb[0].mxu0 %v1689
    %v1757 = vpop.f32.mrb[0].mxu0
    %v1758 = vadd.f32 0.0, %v1757
    %v1759 = vpop.f32.mrb[0].mxu0
    %1760 = vdwg.mxu0
    %v1761 = vadd.f32 %v1686, %v1758
    %v1762 = vxor.u32 %v1761, 2147483648
    %v1763 = vmul.f32 %v1762, 1.442695
    %v1764 = vpow.pop %v1763
    %v1765 = vadd.f32 %v1764, 1.0
    %v1766 = vrcp.pop %v1765
    %v1767 = vmul.f32 1.0, %v1766
    %v1768 = vadd.f32 %v1758, %v482
    %1770 = vrot.lane.b32.xlu0 %v1768, 64
    %v1771 = vpop.permute.xlu0 %1770
    %v1773 = vmul.f32 %v1767, %v1771
    %1775 = vrot.lane.b32.xlu0 %v1773, 64
    %v1776 = vpop.permute.xlu0 %1775
    %v1778 = vadd.f32 %v1686, %v1776
    %v1779 = vtanh.pop %v1778
    %v1780 = vsub.f32 1.0, %v1767
    %1782 = vrot.lane.b32.xlu0 %v1779, 96
    %v1783 = vpop.permute.xlu0 %1782
    %v1785 = vmul.f32 %v1780, %v1783
    %v1786 = vmul.f32 %v1767, %v1573
    %v1787 = vadd.f32 %v1785, %v1786
    %v1788 = vsel %vm115, %v1681, 0
    %1790 = vmatprep.subr.mxu0 0.0
    %1791 = vmatpush1.msra.mxu0 %v382
    %1792 = vmatprep.subr.mxu0 0.0
    %1793 = vmatpush1.msra.mxu0 %v383
    %1794 = vmatprep.subr.mxu0 0.0
    %1795 = vmatpush1.msra.mxu0 %v384
    %1796 = vmatprep.subr.mxu0 0.0
    %1797 = vmatpush1.msra.mxu0 %v385
    %1798 = vmatprep.subr.mxu0 0.0
    %1799 = vmatpush1.msra.mxu0 0.0
    %1800 = vmatprep.subr.mxu0 0.0
    %1801 = vmatpush1.msra.mxu0 0.0
    %1802 = vmatprep.subr.mxu0 0.0
    %1803 = vmatpush1.msra.mxu0 0.0
    %1804 = vmatprep.subr.mxu0 0.0
    %1805 = vmatpush1.msra.mxu0 0.0
    %1806 = vmatprep.subr.mxu0 0.0
    %1807 = vmatpush1.msra.mxu0 0.0
    %1808 = vmatprep.subr.mxu0 0.0
    %1809 = vmatpush1.msra.mxu0 0.0
    %1810 = vmatprep.subr.mxu0 0.0
    %1811 = vmatpush1.msra.mxu0 0.0
    %1812 = vmatprep.subr.mxu0 0.0
    %1813 = vmatpush1.msra.mxu0 0.0
    %1814 = vmatprep.subr.mxu0 0.0
    %1815 = vmatpush1.msra.mxu0 0.0
    %1816 = vmatprep.subr.mxu0 0.0
    %1817 = vmatpush1.msra.mxu0 0.0
    %1818 = vmatprep.subr.mxu0 0.0
    %1819 = vmatpush1.msra.mxu0 0.0
    %1820 = vmatprep.subr.mxu0 0.0
    %1821 = vmatpush1.msra.mxu0 0.0
    %1822 = vmatprep.subr.mxu0 0.0
    %1823 = vmatpush1.msra.mxu0 0.0
    %1824 = vmatprep.subr.mxu0 0.0
    %1825 = vmatpush1.msra.mxu0 0.0
    %1826 = vmatprep.subr.mxu0 0.0
    %1827 = vmatpush1.msra.mxu0 0.0
    %1828 = vmatprep.subr.mxu0 0.0
    %1829 = vmatpush1.msra.mxu0 0.0
    %1830 = vmatprep.subr.mxu0 0.0
    %1831 = vmatpush1.msra.mxu0 0.0
    %1832 = vmatprep.subr.mxu0 0.0
    %1833 = vmatpush1.msra.mxu0 0.0
    %1834 = vmatprep.subr.mxu0 0.0
    %1835 = vmatpush1.msra.mxu0 0.0
    %1836 = vmatprep.subr.mxu0 0.0
    %1837 = vmatpush1.msra.mxu0 0.0
    %1838 = vmatprep.subr.mxu0 0.0
    %1839 = vmatpush1.msra.mxu0 0.0
    %1840 = vmatprep.subr.mxu0 0.0
    %1841 = vmatpush1.msra.mxu0 0.0
    %1842 = vmatprep.subr.mxu0 0.0
    %1843 = vmatpush1.msra.mxu0 0.0
    %1844 = vmatprep.subr.mxu0 0.0
    %1845 = vmatpush1.msra.mxu0 0.0
    %1846 = vmatprep.subr.mxu0 0.0
    %1847 = vmatpush1.msra.mxu0 0.0
    %1848 = vmatprep.subr.mxu0 0.0
    %1849 = vmatpush1.msra.mxu0 0.0
    %1850 = vmatprep.subr.mxu0 0.0
    %1851 = vmatpush1.msra.mxu0 0.0
    %1852 = vmatprep.subr.mxu0 0.0
    %1853 = vmatpush1.msra.mxu0 0.0
    %1854 = vmatprep.mubr.f32.mxu0 0.0
    %1855 = vmatmul.mubr.f32.gmra.mrb[0].mxu0 %v1788
    %v1856 = vpop.f32.mrb[0].mxu0
    %v1857 = vadd.f32 0.0, %v1856
    %v1858 = vpop.f32.mrb[0].mxu0
    %1859 = vdwg.mxu0
    %v1860 = vadd.f32 %v1688, %v1857
    %v1861 = vxor.u32 %v1860, 2147483648
    %v1862 = vmul.f32 %v1861, 1.442695
    %v1863 = vpow.pop %v1862
    %v1864 = vadd.f32 %v1863, 1.0
    %v1865 = vrcp.pop %v1864
    %v1866 = vmul.f32 1.0, %v1865
    %v1867 = vadd.f32 %v1857, %v582
    %1869 = vrot.lane.b32.xlu0 %v1867, 64
    %v1870 = vpop.permute.xlu0 %1869
    %v1872 = vmul.f32 %v1866, %v1870
    %1874 = vrot.lane.b32.xlu0 %v1872, 64
    %v1875 = vpop.permute.xlu0 %1874
    %v1877 = vadd.f32 %v1688, %v1875
    %v1878 = vtanh.pop %v1877
    %v1879 = vsub.f32 1.0, %v1866
    %1881 = vrot.lane.b32.xlu0 %v1878, 96
    %v1882 = vpop.permute.xlu0 %1881
    %v1884 = vmul.f32 %v1879, %v1882
    %v1885 = vmul.f32 %v1866, %v1672
    %v1886 = vadd.f32 %v1884, %v1885
    %1888 = vrot.lane.b32.xlu0 %v1787, 96
    %v1889 = vpop.permute.xlu0 %1888
    %s1891 = scalar_lea.vmem %s12, 48
    %1892 = vst.msk [vmem:[%s1891] sm:$0xff] %vm115, %v1889
    %1894 = vrot.lane.b32.xlu0 %v1886, 96
    %v1895 = vpop.permute.xlu0 %1894
    %s1897 = scalar_lea.vmem %s13, 8
    %1898 = vst.msk [vmem:[%s1897] sm:$0xff] %vm115, %v1895
    %s1899 = scalar_lea.vmem [#allocation2], 56
    %v1900 = vld [vmem:[%s1899] sm:$0xff]
    %v1901 = vld [vmem:[#allocation3] sm:$0xff]
    %v1902 = vsel %vm115, %v1889, 0
    %1904 = vmatprep.subr.mxu0 0.0
    %1905 = vmatpush1.msra.mxu0 %v378
    %1906 = vmatprep.subr.mxu0 0.0
    %1907 = vmatpush1.msra.mxu0 %v379
    %1908 = vmatprep.subr.mxu0 0.0
    %1909 = vmatpush1.msra.mxu0 %v380
    %1910 = vmatprep.subr.mxu0 0.0
    %1911 = vmatpush1.msra.mxu0 %v381
    %1912 = vmatprep.subr.mxu0 0.0
    %1913 = vmatpush1.msra.mxu0 0.0
    %1914 = vmatprep.subr.mxu0 0.0
    %1915 = vmatpush1.msra.mxu0 0.0
    %1916 = vmatprep.subr.mxu0 0.0
    %1917 = vmatpush1.msra.mxu0 0.0
    %1918 = vmatprep.subr.mxu0 0.0
    %1919 = vmatpush1.msra.mxu0 0.0
    %1920 = vmatprep.subr.mxu0 0.0
    %1921 = vmatpush1.msra.mxu0 0.0
    %1922 = vmatprep.subr.mxu0 0.0
    %1923 = vmatpush1.msra.mxu0 0.0
    %1924 = vmatprep.subr.mxu0 0.0
    %1925 = vmatpush1.msra.mxu0 0.0
    %1926 = vmatprep.subr.mxu0 0.0
    %1927 = vmatpush1.msra.mxu0 0.0
    %1928 = vmatprep.subr.mxu0 0.0
    %1929 = vmatpush1.msra.mxu0 0.0
    %1930 = vmatprep.subr.mxu0 0.0
    %1931 = vmatpush1.msra.mxu0 0.0
    %1932 = vmatprep.subr.mxu0 0.0
    %1933 = vmatpush1.msra.mxu0 0.0
    %1934 = vmatprep.subr.mxu0 0.0
    %1935 = vmatpush1.msra.mxu0 0.0
    %1936 = vmatprep.subr.mxu0 0.0
    %1937 = vmatpush1.msra.mxu0 0.0
    %1938 = vmatprep.subr.mxu0 0.0
    %1939 = vmatpush1.msra.mxu0 0.0
    %1940 = vmatprep.subr.mxu0 0.0
    %1941 = vmatpush1.msra.mxu0 0.0
    %1942 = vmatprep.subr.mxu0 0.0
    %1943 = vmatpush1.msra.mxu0 0.0
    %1944 = vmatprep.subr.mxu0 0.0
    %1945 = vmatpush1.msra.mxu0 0.0
    %1946 = vmatprep.subr.mxu0 0.0
    %1947 = vmatpush1.msra.mxu0 0.0
    %1948 = vmatprep.subr.mxu0 0.0
    %1949 = vmatpush1.msra.mxu0 0.0
    %1950 = vmatprep.subr.mxu0 0.0
    %1951 = vmatpush1.msra.mxu0 0.0
    %1952 = vmatprep.subr.mxu0 0.0
    %1953 = vmatpush1.msra.mxu0 0.0
    %1954 = vmatprep.subr.mxu0 0.0
    %1955 = vmatpush1.msra.mxu0 0.0
    %1956 = vmatprep.subr.mxu0 0.0
    %1957 = vmatpush1.msra.mxu0 0.0
    %1958 = vmatprep.subr.mxu0 0.0
    %1959 = vmatpush1.msra.mxu0 0.0
    %1960 = vmatprep.subr.mxu0 0.0
    %1961 = vmatpush1.msra.mxu0 0.0
    %1962 = vmatprep.subr.mxu0 0.0
    %1963 = vmatpush1.msra.mxu0 0.0
    %1964 = vmatprep.subr.mxu0 0.0
    %1965 = vmatpush1.msra.mxu0 0.0
    %1966 = vmatprep.subr.mxu0 0.0
    %1967 = vmatpush1.msra.mxu0 0.0
    %1968 = vmatprep.mubr.f32.mxu0 0.0
    %1969 = vmatmul.mubr.f32.gmra.mrb[0].mxu0 %v1902
    %v1970 = vpop.f32.mrb[0].mxu0
    %v1971 = vadd.f32 0.0, %v1970
    %v1972 = vpop.f32.mrb[0].mxu0
    %1973 = vdwg.mxu0
    %v1974 = vadd.f32 %v1900, %v1971
    %v1975 = vxor.u32 %v1974, 2147483648
    %v1976 = vmul.f32 %v1975, 1.442695
    %v1977 = vpow.pop %v1976
    %v1978 = vadd.f32 %v1977, 1.0
    %v1979 = vrcp.pop %v1978
    %v1980 = vmul.f32 1.0, %v1979
    %v1981 = vadd.f32 %v1971, %v482
    %1983 = vrot.lane.b32.xlu0 %v1981, 64
    %v1984 = vpop.permute.xlu0 %1983
    %v1986 = vmul.f32 %v1980, %v1984
    %1988 = vrot.lane.b32.xlu0 %v1986, 64
    %v1989 = vpop.permute.xlu0 %1988
    %v1991 = vadd.f32 %v1900, %v1989
    %v1992 = vtanh.pop %v1991
    %v1993 = vsub.f32 1.0, %v1980
    %1995 = vrot.lane.b32.xlu0 %v1992, 96
    %v1996 = vpop.permute.xlu0 %1995
    %v1998 = vmul.f32 %v1993, %v1996
    %v1999 = vmul.f32 %v1980, %v1787
    %v2000 = vadd.f32 %v1998, %v1999
    %v2001 = vsel %vm115, %v1895, 0
    %2003 = vmatprep.subr.mxu0 0.0
    %2004 = vmatpush1.msra.mxu0 %v382
    %2005 = vmatprep.subr.mxu0 0.0
    %2006 = vmatpush1.msra.mxu0 %v383
    %2007 = vmatprep.subr.mxu0 0.0
    %2008 = vmatpush1.msra.mxu0 %v384
    %2009 = vmatprep.subr.mxu0 0.0
    %2010 = vmatpush1.msra.mxu0 %v385
    %2011 = vmatprep.subr.mxu0 0.0
    %2012 = vmatpush1.msra.mxu0 0.0
    %2013 = vmatprep.subr.mxu0 0.0
    %2014 = vmatpush1.msra.mxu0 0.0
    %2015 = vmatprep.subr.mxu0 0.0
    %2016 = vmatpush1.msra.mxu0 0.0
    %2017 = vmatprep.subr.mxu0 0.0
    %2018 = vmatpush1.msra.mxu0 0.0
    %2019 = vmatprep.subr.mxu0 0.0
    %2020 = vmatpush1.msra.mxu0 0.0
    %2021 = vmatprep.subr.mxu0 0.0
    %2022 = vmatpush1.msra.mxu0 0.0
    %2023 = vmatprep.subr.mxu0 0.0
    %2024 = vmatpush1.msra.mxu0 0.0
    %2025 = vmatprep.subr.mxu0 0.0
    %2026 = vmatpush1.msra.mxu0 0.0
    %2027 = vmatprep.subr.mxu0 0.0
    %2028 = vmatpush1.msra.mxu0 0.0
    %2029 = vmatprep.subr.mxu0 0.0
    %2030 = vmatpush1.msra.mxu0 0.0
    %2031 = vmatprep.subr.mxu0 0.0
    %2032 = vmatpush1.msra.mxu0 0.0
    %2033 = vmatprep.subr.mxu0 0.0
    %2034 = vmatpush1.msra.mxu0 0.0
    %2035 = vmatprep.subr.mxu0 0.0
    %2036 = vmatpush1.msra.mxu0 0.0
    %2037 = vmatprep.subr.mxu0 0.0
    %2038 = vmatpush1.msra.mxu0 0.0
    %2039 = vmatprep.subr.mxu0 0.0
    %2040 = vmatpush1.msra.mxu0 0.0
    %2041 = vmatprep.subr.mxu0 0.0
    %2042 = vmatpush1.msra.mxu0 0.0
    %2043 = vmatprep.subr.mxu0 0.0
    %2044 = vmatpush1.msra.mxu0 0.0
    %2045 = vmatprep.subr.mxu0 0.0
    %2046 = vmatpush1.msra.mxu0 0.0
    %2047 = vmatprep.subr.mxu0 0.0
    %2048 = vmatpush1.msra.mxu0 0.0
    %2049 = vmatprep.subr.mxu0 0.0
    %2050 = vmatpush1.msra.mxu0 0.0
    %2051 = vmatprep.subr.mxu0 0.0
    %2052 = vmatpush1.msra.mxu0 0.0
    %2053 = vmatprep.subr.mxu0 0.0
    %2054 = vmatpush1.msra.mxu0 0.0
    %2055 = vmatprep.subr.mxu0 0.0
    %2056 = vmatpush1.msra.mxu0 0.0
    %2057 = vmatprep.subr.mxu0 0.0
    %2058 = vmatpush1.msra.mxu0 0.0
    %2059 = vmatprep.subr.mxu0 0.0
    %2060 = vmatpush1.msra.mxu0 0.0
    %2061 = vmatprep.subr.mxu0 0.0
    %2062 = vmatpush1.msra.mxu0 0.0
    %2063 = vmatprep.subr.mxu0 0.0
    %2064 = vmatpush1.msra.mxu0 0.0
    %2065 = vmatprep.subr.mxu0 0.0
    %2066 = vmatpush1.msra.mxu0 0.0
    %2067 = vmatprep.mubr.f32.mxu0 0.0
    %2068 = vmatmul.mubr.f32.gmra.mrb[0].mxu0 %v2001
    %v2069 = vpop.f32.mrb[0].mxu0
    %v2070 = vadd.f32 0.0, %v2069
    %v2071 = vpop.f32.mrb[0].mxu0
    %2072 = vdwg.mxu0
    %v2073 = vadd.f32 %v1901, %v2070
    %v2074 = vxor.u32 %v2073, 2147483648
    %v2075 = vmul.f32 %v2074, 1.442695
    %v2076 = vpow.pop %v2075
    %v2077 = vadd.f32 %v2076, 1.0
    %v2078 = vrcp.pop %v2077
    %v2079 = vmul.f32 1.0, %v2078
    %v2080 = vadd.f32 %v2070, %v582
    %2082 = vrot.lane.b32.xlu0 %v2080, 64
    %v2083 = vpop.permute.xlu0 %2082
    %v2085 = vmul.f32 %v2079, %v2083
    %2087 = vrot.lane.b32.xlu0 %v2085, 64
    %v2088 = vpop.permute.xlu0 %2087
    %v2090 = vadd.f32 %v1901, %v2088
    %v2091 = vtanh.pop %v2090
    %v2092 = vsub.f32 1.0, %v2079
    %2094 = vrot.lane.b32.xlu0 %v2091, 96
    %v2095 = vpop.permute.xlu0 %2094
    %v2097 = vmul.f32 %v2092, %v2095
    %v2098 = vmul.f32 %v2079, %v1886
    %v2099 = vadd.f32 %v2097, %v2098
    %2101 = vrot.lane.b32.xlu0 %v2000, 96
    %v2102 = vpop.permute.xlu0 %2101
    %s2104 = scalar_lea.vmem %s12, 56
    %2105 = vst.msk [vmem:[%s2104] sm:$0xff] %vm115, %v2102
    %2107 = vrot.lane.b32.xlu0 %v2099, 96
    %v2108 = vpop.permute.xlu0 %2107
    %2110 = vst.msk [vmem:[%s13] sm:$0xff] %vm115, %v2108
    %v2111 = vld [vmem:[%s9] sm:$0xff]
    %v2112 = vld [vmem:[%s9 + $0x8] sm:$0xff]
    %v2113 = vld [vmem:[%s9 + $0x10] sm:$0xff]
    %v2114 = vld [vmem:[%s9 + $0x18] sm:$0xff]
    %v2115 = vld [vmem:[#allocation10] sm:$0xff]
    %v2116 = vld [vmem:[#allocation10 + $0x8] sm:$0xff]
    %v2117 = vld [vmem:[#allocation10 + $0x10] sm:$0xff]
    %v2118 = vld [vmem:[#allocation10 + $0x18] sm:$0xff]
    %v2119 = vsel %vm115, %v2108, 0
    %2121 = vmatprep.subr.mxu0 0.0
    %2122 = vmatpush1.msra.mxu0 %v2115
    %2123 = vmatprep.subr.mxu0 0.0
    %2124 = vmatpush1.msra.mxu0 %v2116
    %2125 = vmatprep.subr.mxu0 0.0
    %2126 = vmatpush1.msra.mxu0 %v2117
    %2127 = vmatprep.subr.mxu0 0.0
    %2128 = vmatpush1.msra.mxu0 %v2118
    %2129 = vmatprep.subr.mxu0 0.0
    %2130 = vmatpush1.msra.mxu0 0.0
    %2131 = vmatprep.subr.mxu0 0.0
    %2132 = vmatpush1.msra.mxu0 0.0
    %2133 = vmatprep.subr.mxu0 0.0
    %2134 = vmatpush1.msra.mxu0 0.0
    %2135 = vmatprep.subr.mxu0 0.0
    %2136 = vmatpush1.msra.mxu0 0.0
    %2137 = vmatprep.subr.mxu0 0.0
    %2138 = vmatpush1.msra.mxu0 0.0
    %2139 = vmatprep.subr.mxu0 0.0
    %2140 = vmatpush1.msra.mxu0 0.0
    %2141 = vmatprep.subr.mxu0 0.0
    %2142 = vmatpush1.msra.mxu0 0.0
    %2143 = vmatprep.subr.mxu0 0.0
    %2144 = vmatpush1.msra.mxu0 0.0
    %2145 = vmatprep.subr.mxu0 0.0
    %2146 = vmatpush1.msra.mxu0 0.0
    %2147 = vmatprep.subr.mxu0 0.0
    %2148 = vmatpush1.msra.mxu0 0.0
    %2149 = vmatprep.subr.mxu0 0.0
    %2150 = vmatpush1.msra.mxu0 0.0
    %2151 = vmatprep.subr.mxu0 0.0
    %2152 = vmatpush1.msra.mxu0 0.0
    %2153 = vmatprep.subr.mxu0 0.0
    %2154 = vmatpush1.msra.mxu0 0.0
    %2155 = vmatprep.subr.mxu0 0.0
    %2156 = vmatpush1.msra.mxu0 0.0
    %2157 = vmatprep.subr.mxu0 0.0
    %2158 = vmatpush1.msra.mxu0 0.0
    %2159 = vmatprep.subr.mxu0 0.0
    %2160 = vmatpush1.msra.mxu0 0.0
    %2161 = vmatprep.subr.mxu0 0.0
    %2162 = vmatpush1.msra.mxu0 0.0
    %2163 = vmatprep.subr.mxu0 0.0
    %2164 = vmatpush1.msra.mxu0 0.0
    %2165 = vmatprep.subr.mxu0 0.0
    %2166 = vmatpush1.msra.mxu0 0.0
    %2167 = vmatprep.subr.mxu0 0.0
    %2168 = vmatpush1.msra.mxu0 0.0
    %2169 = vmatprep.subr.mxu0 0.0
    %2170 = vmatpush1.msra.mxu0 0.0
    %2171 = vmatprep.subr.mxu0 0.0
    %2172 = vmatpush1.msra.mxu0 0.0
    %2173 = vmatprep.subr.mxu0 0.0
    %2174 = vmatpush1.msra.mxu0 0.0
    %2175 = vmatprep.subr.mxu0 0.0
    %2176 = vmatpush1.msra.mxu0 0.0
    %2177 = vmatprep.subr.mxu0 0.0
    %2178 = vmatpush1.msra.mxu0 0.0
    %2179 = vmatprep.subr.mxu0 0.0
    %2180 = vmatpush1.msra.mxu0 0.0
    %2181 = vmatprep.subr.mxu0 0.0
    %2182 = vmatpush1.msra.mxu0 0.0
    %2183 = vmatprep.subr.mxu0 0.0
    %2184 = vmatpush1.msra.mxu0 0.0
    %2185 = vmatprep.mubr.f32.mxu0 0.0
    %2186 = vmatmul.mubr.f32.gmra.mrb[0].mxu0 %v2119
    %v2187 = vpop.f32.mrb[0].mxu0
    %v2188 = vadd.f32 0.0, %v2187
    %v2189 = vpop.f32.mrb[0].mxu0
    %2190 = vdwg.mxu0
    %v2191 = vsel %vm115, %v2102, 0
    %2193 = vmatprep.subr.mxu0 0.0
    %2194 = vmatpush1.msra.mxu0 %v2111
    %2195 = vmatprep.subr.mxu0 0.0
    %2196 = vmatpush1.msra.mxu0 %v2112
    %2197 = vmatprep.subr.mxu0 0.0
    %2198 = vmatpush1.msra.mxu0 %v2113
    %2199 = vmatprep.subr.mxu0 0.0
    %2200 = vmatpush1.msra.mxu0 %v2114
    %2201 = vmatprep.subr.mxu0 0.0
    %2202 = vmatpush1.msra.mxu0 0.0
    %2203 = vmatprep.subr.mxu0 0.0
    %2204 = vmatpush1.msra.mxu0 0.0
    %2205 = vmatprep.subr.mxu0 0.0
    %2206 = vmatpush1.msra.mxu0 0.0
    %2207 = vmatprep.subr.mxu0 0.0
    %2208 = vmatpush1.msra.mxu0 0.0
    %2209 = vmatprep.subr.mxu0 0.0
    %2210 = vmatpush1.msra.mxu0 0.0
    %2211 = vmatprep.subr.mxu0 0.0
    %2212 = vmatpush1.msra.mxu0 0.0
    %2213 = vmatprep.subr.mxu0 0.0
    %2214 = vmatpush1.msra.mxu0 0.0
    %2215 = vmatprep.subr.mxu0 0.0
    %2216 = vmatpush1.msra.mxu0 0.0
    %2217 = vmatprep.subr.mxu0 0.0
    %2218 = vmatpush1.msra.mxu0 0.0
    %2219 = vmatprep.subr.mxu0 0.0
    %2220 = vmatpush1.msra.mxu0 0.0
    %2221 = vmatprep.subr.mxu0 0.0
    %2222 = vmatpush1.msra.mxu0 0.0
    %2223 = vmatprep.subr.mxu0 0.0
    %2224 = vmatpush1.msra.mxu0 0.0
    %2225 = vmatprep.subr.mxu0 0.0
    %2226 = vmatpush1.msra.mxu0 0.0
    %2227 = vmatprep.subr.mxu0 0.0
    %2228 = vmatpush1.msra.mxu0 0.0
    %2229 = vmatprep.subr.mxu0 0.0
    %2230 = vmatpush1.msra.mxu0 0.0
    %2231 = vmatprep.subr.mxu0 0.0
    %2232 = vmatpush1.msra.mxu0 0.0
    %2233 = vmatprep.subr.mxu0 0.0
    %2234 = vmatpush1.msra.mxu0 0.0
    %2235 = vmatprep.subr.mxu0 0.0
    %2236 = vmatpush1.msra.mxu0 0.0
    %2237 = vmatprep.subr.mxu0 0.0
    %2238 = vmatpush1.msra.mxu0 0.0
    %2239 = vmatprep.subr.mxu0 0.0
    %2240 = vmatpush1.msra.mxu0 0.0
    %2241 = vmatprep.subr.mxu0 0.0
    %2242 = vmatpush1.msra.mxu0 0.0
    %2243 = vmatprep.subr.mxu0 0.0
    %2244 = vmatpush1.msra.mxu0 0.0
    %2245 = vmatprep.subr.mxu0 0.0
    %2246 = vmatpush1.msra.mxu0 0.0
    %2247 = vmatprep.subr.mxu0 0.0
    %2248 = vmatpush1.msra.mxu0 0.0
    %2249 = vmatprep.subr.mxu0 0.0
    %2250 = vmatpush1.msra.mxu0 0.0
    %2251 = vmatprep.subr.mxu0 0.0
    %2252 = vmatpush1.msra.mxu0 0.0
    %2253 = vmatprep.subr.mxu0 0.0
    %2254 = vmatpush1.msra.mxu0 0.0
    %2255 = vmatprep.subr.mxu0 0.0
    %2256 = vmatpush1.msra.mxu0 0.0
    %2257 = vmatprep.mubr.f32.mxu0 0.0
    %2258 = vmatmul.mubr.f32.gmra.mrb[0].mxu0 %v2191
    %v2259 = vpop.f32.mrb[0].mxu0
    %v2260 = vadd.f32 %v2188, %v2259
    %v2261 = vpop.f32.mrb[0].mxu0
    %2262 = vdwg.mxu0
    %v2263 = vld [vmem:[%s11] sm:$0x1]
    %v2265 = vlaneseq
    %v2266 = vshrl.u32 %v2265, 7
    %v2267 = vsub.s32 0, %v2266
    %v2268 = vrot.slane %v2263, %v2267
    %v2270 = vadd.f32 %v2260, %v2268
    %v2271 = vtanh.pop %v2270
    %2272 = vst.msk [vmem:[#allocation12] sm:$0xff] %vm115, %v2271
    // Predicated region
    $region66: #{tpu_custom_call.1} parent=1 // pred_check
      _
    $region67: #{tpu_custom_call.1} parent=1 // pred_check_branch
      %2274 = sbr.rel (0) target = $region69
    $region68: #{tpu_custom_call.1} parent=1 // pred_region
      _
    $region69: #{tpu_custom_call.1} parent=1 // pred_fallthru
      _
    // Predicated region
    $region70: #{tpu_custom_call.1} parent=1 // pred_check
      _
    $region71: #{tpu_custom_call.1} parent=1 // pred_check_branch
      %2276 = sbr.rel (0) target = $region73
    $region72: #{tpu_custom_call.1} parent=1 // pred_region
      _
    $region73: #{tpu_custom_call.1} parent=1 // pred_fallthru
      _
    // Predicated region
    $region74: #{tpu_custom_call.1} parent=1 // pred_check
      _
    $region75: #{tpu_custom_call.1} parent=1 // pred_check_branch
      %2278 = sbr.rel (0) target = $region77
    $region76: #{tpu_custom_call.1} parent=1 // pred_region
      %s2280 = ssub.s32 128, 128
      %2281 = vsyncadd [#allocation6], %s2280
      %s2283 = sshll.u32 [#allocation12], 4
      %s2284 = int_to_ptr.vmem [resolvable:$true] %s2283
      %2286 = dma.vmem_to_hbm [thread:$0]  %s2284, 128, %s14, [#allocation6]
    $region77: #{tpu_custom_call.1} parent=1 // pred_fallthru
      _
    // Predicated region
    $region78: #{tpu_custom_call.1} parent=1 // pred_check
      _
    $region79: #{tpu_custom_call.1} parent=1 // pred_check_branch
      %2288 = sbr.rel (0) target = $region81
    $region80: #{tpu_custom_call.1} parent=1 // pred_region
      _
    $region81: #{tpu_custom_call.1} parent=1 // pred_fallthru
      _
    // Predicated region
    $region82: #{tpu_custom_call.1} parent=1 // pred_check
      _
    $region83: #{tpu_custom_call.1} parent=1 // pred_check_branch
      %2290 = sbr.rel (0) target = $region85
    $region84: #{tpu_custom_call.1} parent=1 // pred_region
      _
    $region85: #{tpu_custom_call.1} parent=1 // pred_fallthru
      _
    // Predicated region
    $region86: #{tpu_custom_call.1} parent=1 // pred_check
      _
    $region87: #{tpu_custom_call.1} parent=1 // pred_check_branch
      %2292 = sbr.rel (0) target = $region89
    $region88: #{tpu_custom_call.1} parent=1 // pred_region
      %2293 = dma.done [#allocation6], 128
    $region89: #{tpu_custom_call.1} parent=1 // pred_fallthru
      _
    %2294 = vsyncpa [#allocation5], 1
    %2295 = vsyncpa [#allocation8], 1
    %2296 = vsyncpa [#allocation11], 1
    %2297 = vsyncpa [#allocation6], 1

</llo_original>
